<compile_context>
chip_gen: v7x
topology: tpu7x:2x2x1
jax: 0.10.0
libtpu: 0.0.40
codegen_flags: <defaults>
</compile_context>

<pallas_src>
import functools

import jax
import jax.numpy as jnp
from jax.experimental import pallas as pl
from jax.experimental.pallas import tpu as pltpu


# --------------------------------------------------------------------------
# In-kernel helpers (pure functions on values / refs)
# --------------------------------------------------------------------------

def _ln(x, g, b):
    """LayerNorm over last dim (callers pass residual-fused input)."""
    mu = jnp.mean(x, axis=-1, keepdims=True)
    xc = x - mu
    var = jnp.mean(xc * xc, axis=-1, keepdims=True)
    return xc * jax.lax.rsqrt(var + 1e-5) * g + b


def _mha_into(ctx_ref, q, k, v, mask, *, B, Sq, Sk, Hn, Dh, scale):
    """Multi-head attention on flat (B*S, Hn*Dh) slabs.

    Writes the (B*Sq, Hn*Dh) context into the VMEM scratch `ctx_ref`.
    Static Python loops over (batch, head) — fully unrolled, no grid steps;
    every matmul is an MXU dot on VMEM-resident tiles.
    """
    for b in range(B):
        qb = q[b * Sq:(b + 1) * Sq, :]
        kb = k[b * Sk:(b + 1) * Sk, :]
        vb = v[b * Sk:(b + 1) * Sk, :]
        for h in range(Hn):
            qh = qb[:, h * Dh:(h + 1) * Dh]
            kh = kb[:, h * Dh:(h + 1) * Dh]
            vh = vb[:, h * Dh:(h + 1) * Dh]
            # q @ k^T via dot_general contraction (no transpose materialized).
            s = jax.lax.dot_general(
                qh, kh, (((1,), (1,)), ((), ())),
                preferred_element_type=jnp.float32) * scale
            if mask is not None:
                s = s + mask
            s = s - jnp.max(s, axis=-1, keepdims=True)
            p = jnp.exp(s)
            p = p * pl.reciprocal(jnp.sum(p, axis=-1, keepdims=True), approx=True)
            ctx_ref[b * Sq:(b + 1) * Sq, h * Dh:(h + 1) * Dh] = jnp.dot(
                p, vh, preferred_element_type=jnp.float32)


# --------------------------------------------------------------------------
# Fused BART kernel: encoder (emb-LN + 1 layer) + decoder (emb-LN + 1 layer)
# + tied-embedding LM head — single pallas_call, everything VMEM-resident.
# --------------------------------------------------------------------------

def _bart_kernel(xe_ref, xd_ref,
                 # encoder
                 e_ge_ref, e_be_ref,
                 e_wqkv_ref, e_bqkv_ref, e_wo_ref, e_bo_ref, e_g1_ref, e_b1_ref,
                 e_fc1w_ref, e_fc1b_ref, e_fc2w_ref, e_fc2b_ref,
                 e_g2_ref, e_b2_ref,
                 # decoder
                 d_ge_ref, d_be_ref,
                 sa_wqkv_ref, sa_bqkv_ref, sa_wo_ref, sa_bo_ref,
                 d_g1_ref, d_b1_ref,
                 ca_wq_ref, ca_bq_ref, ca_wkv_ref, ca_bkv_ref,
                 ca_wo_ref, ca_bo_ref, d_g2_ref, d_b2_ref,
                 d_fc1w_ref, d_fc1b_ref, d_fc2w_ref, d_fc2b_ref,
                 d_g3_ref, d_b3_ref,
                 emb_ref, lm_bias_ref,
                 # outputs
                 hid_ref, logits_ref,
                 # scratch
                 ctx_e_ref, ctx_d_ref,
                 *, B, Se, Sd, Hn, Dh):
    D = Hn * Dh
    scale = 1.0 / (Dh ** 0.5)

    # ---------------- encoder ----------------
    x = _ln(xe_ref[...], e_ge_ref[...], e_be_ref[...])        # embedding LN

    qkv = jnp.dot(x, e_wqkv_ref[...],
                  preferred_element_type=jnp.float32) + e_bqkv_ref[...]
    _mha_into(ctx_e_ref, qkv[:, :D], qkv[:, D:2 * D], qkv[:, 2 * D:], None,
              B=B, Sq=Se, Sk=Se, Hn=Hn, Dh=Dh, scale=scale)
    attn = jnp.dot(ctx_e_ref[...], e_wo_ref[...],
                   preferred_element_type=jnp.float32) + e_bo_ref[...]
    x = _ln(x + attn, e_g1_ref[...], e_b1_ref[...])            # residual + LN

    # TODO(synk): HF BART uses exact (erf) GELU; tanh approximation used here.
    hmid = jax.nn.gelu(
        jnp.dot(x, e_fc1w_ref[...], preferred_element_type=jnp.float32)
        + e_fc1b_ref[...], approximate=True)
    ffn = jnp.dot(hmid, e_fc2w_ref[...],
                  preferred_element_type=jnp.float32) + e_fc2b_ref[...]
    enc = _ln(x + ffn, e_g2_ref[...], e_b2_ref[...])           # encoder output
    # `enc` stays a VMEM value — never leaves the chip.

    # ---------------- decoder ----------------
    x = _ln(xd_ref[...], d_ge_ref[...], d_be_ref[...])         # embedding LN

    # causal mask built in-kernel (2-D iota is required on TPU).
    row = jax.lax.broadcasted_iota(jnp.int32, (Sd, Sd), 0)
    col = jax.lax.broadcasted_iota(jnp.int32, (Sd, Sd), 1)
    causal = jnp.where(row >= col, 0.0, -1e9).astype(jnp.float32)

    qkv = jnp.dot(x, sa_wqkv_ref[...],
                  preferred_element_type=jnp.float32) + sa_bqkv_ref[...]
    _mha_into(ctx_d_ref, qkv[:, :D], qkv[:, D:2 * D], qkv[:, 2 * D:], causal,
              B=B, Sq=Sd, Sk=Sd, Hn=Hn, Dh=Dh, scale=scale)
    attn = jnp.dot(ctx_d_ref[...], sa_wo_ref[...],
                   preferred_element_type=jnp.float32) + sa_bo_ref[...]
    x = _ln(x + attn, d_g1_ref[...], d_b1_ref[...])

    # cross-attention (fused KV projection from the in-VMEM encoder output)
    q = jnp.dot(x, ca_wq_ref[...],
                preferred_element_type=jnp.float32) + ca_bq_ref[...]
    kv = jnp.dot(enc, ca_wkv_ref[...],
                 preferred_element_type=jnp.float32) + ca_bkv_ref[...]
    _mha_into(ctx_d_ref, q, kv[:, :D], kv[:, D:], None,
              B=B, Sq=Sd, Sk=Se, Hn=Hn, Dh=Dh, scale=scale)
    attn = jnp.dot(ctx_d_ref[...], ca_wo_ref[...],
                   preferred_element_type=jnp.float32) + ca_bo_ref[...]
    x = _ln(x + attn, d_g2_ref[...], d_b2_ref[...])

    hmid = jax.nn.gelu(
        jnp.dot(x, d_fc1w_ref[...], preferred_element_type=jnp.float32)
        + d_fc1b_ref[...], approximate=True)
    ffn = jnp.dot(hmid, d_fc2w_ref[...],
                  preferred_element_type=jnp.float32) + d_fc2b_ref[...]
    x = _ln(x + ffn, d_g3_ref[...], d_b3_ref[...])

    hid_ref[...] = x
    # LM head: tied embedding via dot_general contraction (no transpose).
    logits_ref[...] = jax.lax.dot_general(
        x, emb_ref[...], (((1,), (1,)), ((), ())),
        preferred_element_type=jnp.float32) + lm_bias_ref[...]


def bart_forward(params, enc_ids, dec_ids, cfg):
    B, Se = enc_ids.shape
    _, Sd = dec_ids.shape
    D, V = cfg.D, cfg.V

    # embedding + learned positional (BART offset = 2) — plain-JAX glue
    pos_e = jnp.arange(Se) + 2
    pos_d = jnp.arange(Sd) + 2
    xe = jnp.take(params["emb"], enc_ids, axis=0) + params["enc_pos"][pos_e][None]
    xd = jnp.take(params["emb"], dec_ids, axis=0) + params["dec_pos"][pos_d][None]

    e = params["enc"]
    el = e["layers"][0]
    d = params["dec"]
    dl = d["layers"][0]
    sa, ca = dl["sa"], dl["ca"]

    hid2d, logits2d = pl.pallas_call(
        functools.partial(_bart_kernel, B=B, Se=Se, Sd=Sd,
                          Hn=cfg.Hn, Dh=cfg.Dh),
        out_shape=(jax.ShapeDtypeStruct((B * Sd, D), jnp.float32),
                   jax.ShapeDtypeStruct((B * Sd, V), jnp.float32)),
        scratch_shapes=[pltpu.VMEM((B * Se, D), jnp.float32),
                        pltpu.VMEM((B * Sd, D), jnp.float32)],
    )(xe.reshape(B * Se, D), xd.reshape(B * Sd, D),
      e["ln_emb_g"], e["ln_emb_b"],
      el["wqkv"], el["bqkv"], el["wo"], el["bo"], el["ln1_g"], el["ln1_b"],
      el["fc1_w"], el["fc1_b"], el["fc2_w"], el["fc2_b"],
      el["ln2_g"], el["ln2_b"],
      d["ln_emb_g"], d["ln_emb_b"],
      sa["wqkv"], sa["bqkv"], sa["wo"], sa["bo"], dl["ln1_g"], dl["ln1_b"],
      ca["wq"], ca["bq"], ca["wkv"], ca["bkv"], ca["wo"], ca["bo"],
      dl["ln2_g"], dl["ln2_b"],
      dl["fc1_w"], dl["fc1_b"], dl["fc2_w"], dl["fc2_b"],
      dl["ln3_g"], dl["ln3_b"],
      params["emb"], params["final_logits_bias"])
    return hid2d.reshape(B, Sd, D), logits2d.reshape(B, Sd, V)


# --------------------------------------------------------------------------
# Fused GRU + Linear(32->1) + Sigmoid kernel
# --------------------------------------------------------------------------

def _gru_kernel(x_ref, wih_ref, bih_ref, whh_ref, bhh_ref,
                wo_ref, bo_ref, o_ref, *, T, B, H):
    # Hoisted input projection: one wide matmul for ALL timesteps.
    xg = jnp.dot(x_ref[...], wih_ref[...],
                 preferred_element_type=jnp.float32) + bih_ref[...]   # (T*B, 3H)
    whh = whh_ref[...]
    bhh = bhh_ref[...]

    h = jnp.zeros((B, H), jnp.float32)
    for t in range(T):                       # fully unrolled serial recurrence
        xg_t = xg[t * B:(t + 1) * B, :]                                 # (B, 3H)
        hg = jnp.dot(h, whh, preferred_element_type=jnp.float32) + bhh  # (B, 3H)
        r = jax.nn.sigmoid(xg_t[:, :H] + hg[:, :H])
        z = jax.nn.sigmoid(xg_t[:, H:2 * H] + hg[:, H:2 * H])
        n = jnp.tanh(xg_t[:, 2 * H:] + r * hg[:, 2 * H:])
        h = (1.0 - z) * n + z * h

    logit = jnp.dot(h, wo_ref[...],
                    preferred_element_type=jnp.float32) + bo_ref[...]
    o_ref[...] = jax.nn.sigmoid(logit)


def gru_forward(gparams, gru_input, cfg):
    T, B, D = gru_input.shape
    H = cfg.gru_H
    return pl.pallas_call(
        functools.partial(_gru_kernel, T=T, B=B, H=H),
        out_shape=jax.ShapeDtypeStruct((B, 1), jnp.float32),
    )(gru_input.reshape(T * B, D),
      gparams["wih"], gparams["bih"], gparams["whh"], gparams["bhh"],
      gparams["w_head"], gparams["b_head"])


# --------------------------------------------------------------------------
# Tiny synthetic BART config / parameter init (weights pre-packed for kernels)
# --------------------------------------------------------------------------

class Cfg:
    V = 64        # vocab (after "resize_token_embeddings")
    D = 32        # d_model
    Hn = 2        # attention heads
    Dh = 16       # head dim
    F = 64        # FFN dim
    max_pos = 32
    gru_H = 32    # GRU hidden size (fixed at 32 in the module)
    # single encoder layer and single decoder layer (fused kernel)


class KeyGen:
    def __init__(self, key):
        self.key = key

    def __call__(self):
        self.key, sub = jax.random.split(self.key)
        return sub


def _w(kg, shape, scale=0.02):
    return scale * jax.random.normal(kg(), shape, dtype=jnp.float32)


def init_params(key, cfg):
    kg = KeyGen(key)
    D, F, V, H = cfg.D, cfg.F, cfg.V, cfg.gru_H
    ones = lambda n: jnp.ones((1, n), jnp.float32)
    zeros = lambda n: jnp.zeros((1, n), jnp.float32)

    def self_attn():
        wq, wk, wv, wo = (_w(kg, (D, D)) for _ in range(4))
        return {"wqkv": jnp.concatenate([wq, wk, wv], axis=1),
                "bqkv": zeros(3 * D), "wo": wo, "bo": zeros(D)}

    def cross_attn():
        wq, wk, wv, wo = (_w(kg, (D, D)) for _ in range(4))
        return {"wq": wq, "bq": zeros(D),
                "wkv": jnp.concatenate([wk, wv], axis=1), "bkv": zeros(2 * D),
                "wo": wo, "bo": zeros(D)}

    params = {
        "emb": _w(kg, (V, D)),
        "final_logits_bias": jnp.zeros((1, V), jnp.float32),
        "enc_pos": _w(kg, (cfg.max_pos + 2, D)),
        "dec_pos": _w(kg, (cfg.max_pos + 2, D)),
        "enc": {
            "ln_emb_g": ones(D), "ln_emb_b": zeros(D),
            "layers": [{
                **self_attn(),
                "ln1_g": ones(D), "ln1_b": zeros(D),
                "fc1_w": _w(kg, (D, F)), "fc1_b": zeros(F),
                "fc2_w": _w(kg, (F, D)), "fc2_b": zeros(D),
                "ln2_g": ones(D), "ln2_b": zeros(D),
            }],
        },
        "dec": {
            "ln_emb_g": ones(D), "ln_emb_b": zeros(D),
            "layers": [{
                "sa": self_attn(),
                "ln1_g": ones(D), "ln1_b": zeros(D),
                "ca": cross_attn(),
                "ln2_g": ones(D), "ln2_b": zeros(D),
                "fc1_w": _w(kg, (D, F)), "fc1_b": zeros(F),
                "fc2_w": _w(kg, (F, D)), "fc2_b": zeros(D),
                "ln3_g": ones(D), "ln3_b": zeros(D),
            }],
        },
        "gru": {
            # torch layout is (3H, D)/(3H, H) in [r|z|n] order; pre-transposed
            # ONCE here so the kernel never materializes a transpose.
            "wih": _w(kg, (3 * H, D), 0.1).T,          # (D, 3H)
            "bih": jnp.zeros((1, 3 * H), jnp.float32),
            "whh": _w(kg, (3 * H, H), 0.1).T,          # (H, 3H)
            "bhh": jnp.zeros((1, 3 * H), jnp.float32),
            "w_head": _w(kg, (1, H), 0.1).T,           # (H, 1)
            "b_head": jnp.zeros((1, 1), jnp.float32),
        },
    }
    return params


# --------------------------------------------------------------------------
# Full forward (mirrors bartWithGRU_CG.forward(encoder_batch, batch, inst_pos))
# --------------------------------------------------------------------------

def bart_with_gru_cg_forward(params, encoder_batch, batch, inst_pos, cfg):
    B, Sd = batch.shape
    D = cfg.D

    last_hidden, logits = bart_forward(params, encoder_batch, batch, cfg)

    # gather + pad_sequence (seq-first, zero-padded) — plain-JAX glue
    # (ragged, data-dependent shapes; no clean static Pallas equivalent)
    tokens_list = []
    for i in range(B):
        pos = inst_pos[i]
        tokens_list.append(last_hidden[pos[:, 0], pos[:, 1], :])
    t_max = max(int(t.shape[0]) for t in tokens_list)
    gru_input = jnp.zeros((t_max, B, D), jnp.float32)
    for i, t in enumerate(tokens_list):
        gru_input = gru_input.at[: t.shape[0], i, :].set(t)

    consist_output = gru_forward(params["gru"], gru_input, cfg)        # (B, 1)
    return logits, consist_output


# --------------------------------------------------------------------------

if __name__ == "__main__":
    cfg = Cfg()
    key = jax.random.PRNGKey(0)
    kp, k1, k2 = jax.random.split(key, 3)
    params = init_params(kp, cfg)

    B, Se, Sd = 2, 8, 8
    encoder_batch = jax.random.randint(k1, (B, Se), 0, cfg.V, dtype=jnp.int32)
    batch = jax.random.randint(k2, (B, Sd), 0, cfg.V, dtype=jnp.int32)
    # inst_pos[i]: (n_i, 2) rows of (batch_index, token_index), variable length
    inst_pos = [
        jnp.array([[0, 1], [0, 3], [0, 5]], dtype=jnp.int32),
        jnp.array([[1, 2], [1, 4]], dtype=jnp.int32),
    ]

    logits, consist = bart_with_gru_cg_forward(params, encoder_batch, batch,
                                               inst_pos, cfg)
    jax.block_until_ready((logits, consist))
    assert logits.shape == (B, Sd, cfg.V)
    assert consist.shape == (B, 1)
    assert bool(jnp.all(jnp.isfinite(logits)))
    assert bool(jnp.all((consist >= 0.0) & (consist <= 1.0)))
    print("KERNEL_OK")
</pallas_src>

<mosaic_0001>
module attributes {stable_mosaic.version = 11 : i64} {
  func.func @_bart_kernel(%arg0: memref<16x32xf32, #tpu.memory_space<vmem>>, %arg1: memref<16x32xf32, #tpu.memory_space<vmem>>, %arg2: memref<1x32xf32, #tpu.memory_space<vmem>>, %arg3: memref<1x32xf32, #tpu.memory_space<vmem>>, %arg4: memref<32x96xf32, #tpu.memory_space<vmem>>, %arg5: memref<1x96xf32, #tpu.memory_space<vmem>>, %arg6: memref<32x32xf32, #tpu.memory_space<vmem>>, %arg7: memref<1x32xf32, #tpu.memory_space<vmem>>, %arg8: memref<1x32xf32, #tpu.memory_space<vmem>>, %arg9: memref<1x32xf32, #tpu.memory_space<vmem>>, %arg10: memref<32x64xf32, #tpu.memory_space<vmem>>, %arg11: memref<1x64xf32, #tpu.memory_space<vmem>>, %arg12: memref<64x32xf32, #tpu.memory_space<vmem>>, %arg13: memref<1x32xf32, #tpu.memory_space<vmem>>, %arg14: memref<1x32xf32, #tpu.memory_space<vmem>>, %arg15: memref<1x32xf32, #tpu.memory_space<vmem>>, %arg16: memref<1x32xf32, #tpu.memory_space<vmem>>, %arg17: memref<1x32xf32, #tpu.memory_space<vmem>>, %arg18: memref<32x96xf32, #tpu.memory_space<vmem>>, %arg19: memref<1x96xf32, #tpu.memory_space<vmem>>, %arg20: memref<32x32xf32, #tpu.memory_space<vmem>>, %arg21: memref<1x32xf32, #tpu.memory_space<vmem>>, %arg22: memref<1x32xf32, #tpu.memory_space<vmem>>, %arg23: memref<1x32xf32, #tpu.memory_space<vmem>>, %arg24: memref<32x32xf32, #tpu.memory_space<vmem>>, %arg25: memref<1x32xf32, #tpu.memory_space<vmem>>, %arg26: memref<32x64xf32, #tpu.memory_space<vmem>>, %arg27: memref<1x64xf32, #tpu.memory_space<vmem>>, %arg28: memref<32x32xf32, #tpu.memory_space<vmem>>, %arg29: memref<1x32xf32, #tpu.memory_space<vmem>>, %arg30: memref<1x32xf32, #tpu.memory_space<vmem>>, %arg31: memref<1x32xf32, #tpu.memory_space<vmem>>, %arg32: memref<32x64xf32, #tpu.memory_space<vmem>>, %arg33: memref<1x64xf32, #tpu.memory_space<vmem>>, %arg34: memref<64x32xf32, #tpu.memory_space<vmem>>, %arg35: memref<1x32xf32, #tpu.memory_space<vmem>>, %arg36: memref<1x32xf32, #tpu.memory_space<vmem>>, %arg37: memref<1x32xf32, #tpu.memory_space<vmem>>, %arg38: memref<64x32xf32, #tpu.memory_space<vmem>>, %arg39: memref<1x64xf32, #tpu.memory_space<vmem>>, %arg40: memref<16x32xf32, #tpu.memory_space<vmem>>, %arg41: memref<16x64xf32, #tpu.memory_space<vmem>>, %arg42: memref<16x32xf32, #tpu.memory_space<vmem>>, %arg43: memref<16x32xf32, #tpu.memory_space<vmem>>) attributes {dimension_semantics = [], scalar_prefetch = 0 : i64, scratch_operands = 2 : i64, tpu.core_type = #tpu.core_type<tc>} {
    %c0 = arith.constant 0 : index
    %c0_0 = arith.constant 0 : index
    %0 = vector.load %arg0[%c0, %c0_0] : memref<16x32xf32, #tpu.memory_space<vmem>>, vector<16x32xf32>
    %c0_1 = arith.constant 0 : index
    %c0_2 = arith.constant 0 : index
    %1 = vector.load %arg2[%c0_1, %c0_2] : memref<1x32xf32, #tpu.memory_space<vmem>>, vector<1x32xf32>
    %c0_3 = arith.constant 0 : index
    %c0_4 = arith.constant 0 : index
    %2 = vector.load %arg3[%c0_3, %c0_4] : memref<1x32xf32, #tpu.memory_space<vmem>>, vector<1x32xf32>
    %cst = arith.constant dense<0.000000e+00> : vector<16xf32>
    %3 = vector.multi_reduction <add>, %0, %cst [1] : vector<16x32xf32> to vector<16xf32>
    %4 = vector.shape_cast %3 : vector<16xf32> to vector<16x1xf32>
    %cst_5 = arith.constant 3.200000e+01 : f32
    %5 = vector.broadcast %cst_5 : f32 to vector<16x1xf32>
    %6 = arith.divf %4, %5 : vector<16x1xf32>
    %7 = vector.broadcast %6 : vector<16x1xf32> to vector<16x32xf32>
    %8 = arith.subf %0, %7 : vector<16x32xf32>
    %9 = arith.mulf %8, %8 : vector<16x32xf32>
    %cst_6 = arith.constant dense<0.000000e+00> : vector<16xf32>
    %10 = vector.multi_reduction <add>, %9, %cst_6 [1] : vector<16x32xf32> to vector<16xf32>
    %11 = vector.shape_cast %10 : vector<16xf32> to vector<16x1xf32>
    %cst_7 = arith.constant 3.200000e+01 : f32
    %12 = vector.broadcast %cst_7 : f32 to vector<16x1xf32>
    %13 = arith.divf %11, %12 : vector<16x1xf32>
    %cst_8 = arith.constant 9.99999974E-6 : f32
    %14 = vector.broadcast %cst_8 : f32 to vector<16x1xf32>
    %15 = arith.addf %13, %14 : vector<16x1xf32>
    %16 = math.rsqrt %15 : vector<16x1xf32>
    %17 = vector.broadcast %16 : vector<16x1xf32> to vector<16x32xf32>
    %18 = arith.mulf %8, %17 : vector<16x32xf32>
    %19 = vector.broadcast %1 : vector<1x32xf32> to vector<16x32xf32>
    %20 = arith.mulf %18, %19 : vector<16x32xf32>
    %21 = vector.broadcast %2 : vector<1x32xf32> to vector<16x32xf32>
    %22 = arith.addf %20, %21 : vector<16x32xf32>
    %c0_9 = arith.constant 0 : index
    %c0_10 = arith.constant 0 : index
    %23 = vector.load %arg4[%c0_9, %c0_10] : memref<32x96xf32, #tpu.memory_space<vmem>>, vector<32x96xf32>
    %cst_11 = arith.constant dense<0.000000e+00> : vector<16x96xf32>
    %24 = tpu.matmul %22, %23, %cst_11 {dimension_numbers = #tpu.dot_dimension_numbers<[1], [0], [0], [1], [0, 0, 1, 1], [], []>} : vector<16x32xf32>, vector<32x96xf32>, vector<16x96xf32> -> vector<16x96xf32>
    %c0_12 = arith.constant 0 : index
    %c0_13 = arith.constant 0 : index
    %25 = vector.load %arg5[%c0_12, %c0_13] : memref<1x96xf32, #tpu.memory_space<vmem>>, vector<1x96xf32>
    %26 = vector.broadcast %25 : vector<1x96xf32> to vector<16x96xf32>
    %27 = arith.addf %24, %26 : vector<16x96xf32>
    %28 = vector.extract_strided_slice %27 {offsets = [0, 0], sizes = [16, 32], strides = [1, 1]} : vector<16x96xf32> to vector<16x32xf32>
    %29 = vector.extract_strided_slice %27 {offsets = [0, 32], sizes = [16, 32], strides = [1, 1]} : vector<16x96xf32> to vector<16x32xf32>
    %30 = vector.extract_strided_slice %27 {offsets = [0, 64], sizes = [16, 32], strides = [1, 1]} : vector<16x96xf32> to vector<16x32xf32>
    %31 = vector.extract_strided_slice %28 {offsets = [0, 0], sizes = [8, 32], strides = [1, 1]} : vector<16x32xf32> to vector<8x32xf32>
    %32 = vector.extract_strided_slice %29 {offsets = [0, 0], sizes = [8, 32], strides = [1, 1]} : vector<16x32xf32> to vector<8x32xf32>
    %33 = vector.extract_strided_slice %30 {offsets = [0, 0], sizes = [8, 32], strides = [1, 1]} : vector<16x32xf32> to vector<8x32xf32>
    %34 = vector.extract_strided_slice %31 {offsets = [0, 0], sizes = [8, 16], strides = [1, 1]} : vector<8x32xf32> to vector<8x16xf32>
    %35 = vector.extract_strided_slice %32 {offsets = [0, 0], sizes = [8, 16], strides = [1, 1]} : vector<8x32xf32> to vector<8x16xf32>
    %36 = vector.extract_strided_slice %33 {offsets = [0, 0], sizes = [8, 16], strides = [1, 1]} : vector<8x32xf32> to vector<8x16xf32>
    %cst_14 = arith.constant dense<0.000000e+00> : vector<8x8xf32>
    %37 = tpu.matmul %34, %35, %cst_14 {dimension_numbers = #tpu.dot_dimension_numbers<[1], [1], [0], [0], [0, 0, 1, 0], [], []>} : vector<8x16xf32>, vector<8x16xf32>, vector<8x8xf32> -> vector<8x8xf32>
    %cst_15 = arith.constant 2.500000e-01 : f32
    %38 = vector.broadcast %cst_15 : f32 to vector<8x8xf32>
    %39 = arith.mulf %37, %38 : vector<8x8xf32>
    %cst_16 = arith.constant dense<0xFF800000> : vector<8xf32>
    %40 = vector.multi_reduction <maximumf>, %39, %cst_16 [1] : vector<8x8xf32> to vector<8xf32>
    %41 = vector.shape_cast %40 : vector<8xf32> to vector<8x1xf32>
    %42 = vector.broadcast %41 : vector<8x1xf32> to vector<8x8xf32>
    %43 = arith.subf %39, %42 : vector<8x8xf32>
    %44 = math.exp %43 : vector<8x8xf32>
    %cst_17 = arith.constant dense<0.000000e+00> : vector<8xf32>
    %45 = vector.multi_reduction <add>, %44, %cst_17 [1] : vector<8x8xf32> to vector<8xf32>
    %46 = vector.shape_cast %45 : vector<8xf32> to vector<8x1xf32>
    %47 = tpu.reciprocal %46 {approx = true} : vector<8x1xf32> -> vector<8x1xf32>
    %48 = vector.broadcast %47 : vector<8x1xf32> to vector<8x8xf32>
    %49 = arith.mulf %44, %48 : vector<8x8xf32>
    %cst_18 = arith.constant dense<0.000000e+00> : vector<8x16xf32>
    %50 = tpu.matmul %49, %36, %cst_18 {dimension_numbers = #tpu.dot_dimension_numbers<[1], [0], [0], [1], [0, 0, 1, 1], [], []>} : vector<8x8xf32>, vector<8x16xf32>, vector<8x16xf32> -> vector<8x16xf32>
    %c0_19 = arith.constant 0 : index
    %c0_20 = arith.constant 0 : index
    %51 = vector.load %arg42[%c0_19, %c0_20] : memref<16x32xf32, #tpu.memory_space<vmem>>, vector<8x16xf32>
    tpu.vector_store %arg42[%c0_19, %c0_20], %50 {strides = array<i32>} : memref<16x32xf32, #tpu.memory_space<vmem>>, vector<8x16xf32>,
    %52 = vector.extract_strided_slice %31 {offsets = [0, 16], sizes = [8, 16], strides = [1, 1]} : vector<8x32xf32> to vector<8x16xf32>
    %53 = vector.extract_strided_slice %32 {offsets = [0, 16], sizes = [8, 16], strides = [1, 1]} : vector<8x32xf32> to vector<8x16xf32>
    %54 = vector.extract_strided_slice %33 {offsets = [0, 16], sizes = [8, 16], strides = [1, 1]} : vector<8x32xf32> to vector<8x16xf32>
    %cst_21 = arith.constant dense<0.000000e+00> : vector<8x8xf32>
    %55 = tpu.matmul %52, %53, %cst_21 {dimension_numbers = #tpu.dot_dimension_numbers<[1], [1], [0], [0], [0, 0, 1, 0], [], []>} : vector<8x16xf32>, vector<8x16xf32>, vector<8x8xf32> -> vector<8x8xf32>
    %cst_22 = arith.constant 2.500000e-01 : f32
    %56 = vector.broadcast %cst_22 : f32 to vector<8x8xf32>
    %57 = arith.mulf %55, %56 : vector<8x8xf32>
    %cst_23 = arith.constant dense<0xFF800000> : vector<8xf32>
    %58 = vector.multi_reduction <maximumf>, %57, %cst_23 [1] : vector<8x8xf32> to vector<8xf32>
    %59 = vector.shape_cast %58 : vector<8xf32> to vector<8x1xf32>
    %60 = vector.broadcast %59 : vector<8x1xf32> to vector<8x8xf32>
    %61 = arith.subf %57, %60 : vector<8x8xf32>
    %62 = math.exp %61 : vector<8x8xf32>
    %cst_24 = arith.constant dense<0.000000e+00> : vector<8xf32>
    %63 = vector.multi_reduction <add>, %62, %cst_24 [1] : vector<8x8xf32> to vector<8xf32>
    %64 = vector.shape_cast %63 : vector<8xf32> to vector<8x1xf32>
    %65 = tpu.reciprocal %64 {approx = true} : vector<8x1xf32> -> vector<8x1xf32>
    %66 = vector.broadcast %65 : vector<8x1xf32> to vector<8x8xf32>
    %67 = arith.mulf %62, %66 : vector<8x8xf32>
    %cst_25 = arith.constant dense<0.000000e+00> : vector<8x16xf32>
    %68 = tpu.matmul %67, %54, %cst_25 {dimension_numbers = #tpu.dot_dimension_numbers<[1], [0], [0], [1], [0, 0, 1, 1], [], []>} : vector<8x8xf32>, vector<8x16xf32>, vector<8x16xf32> -> vector<8x16xf32>
    %c0_26 = arith.constant 0 : index
    %c16 = arith.constant 16 : index
    %69 = vector.load %arg42[%c0_26, %c16] : memref<16x32xf32, #tpu.memory_space<vmem>>, vector<8x16xf32>
    tpu.vector_store %arg42[%c0_26, %c16], %68 {strides = array<i32>} : memref<16x32xf32, #tpu.memory_space<vmem>>, vector<8x16xf32>,
    %70 = vector.extract_strided_slice %28 {offsets = [8, 0], sizes = [8, 32], strides = [1, 1]} : vector<16x32xf32> to vector<8x32xf32>
    %71 = vector.extract_strided_slice %29 {offsets = [8, 0], sizes = [8, 32], strides = [1, 1]} : vector<16x32xf32> to vector<8x32xf32>
    %72 = vector.extract_strided_slice %30 {offsets = [8, 0], sizes = [8, 32], strides = [1, 1]} : vector<16x32xf32> to vector<8x32xf32>
    %73 = vector.extract_strided_slice %70 {offsets = [0, 0], sizes = [8, 16], strides = [1, 1]} : vector<8x32xf32> to vector<8x16xf32>
    %74 = vector.extract_strided_slice %71 {offsets = [0, 0], sizes = [8, 16], strides = [1, 1]} : vector<8x32xf32> to vector<8x16xf32>
    %75 = vector.extract_strided_slice %72 {offsets = [0, 0], sizes = [8, 16], strides = [1, 1]} : vector<8x32xf32> to vector<8x16xf32>
    %cst_27 = arith.constant dense<0.000000e+00> : vector<8x8xf32>
    %76 = tpu.matmul %73, %74, %cst_27 {dimension_numbers = #tpu.dot_dimension_numbers<[1], [1], [0], [0], [0, 0, 1, 0], [], []>} : vector<8x16xf32>, vector<8x16xf32>, vector<8x8xf32> -> vector<8x8xf32>
    %cst_28 = arith.constant 2.500000e-01 : f32
    %77 = vector.broadcast %cst_28 : f32 to vector<8x8xf32>
    %78 = arith.mulf %76, %77 : vector<8x8xf32>
    %cst_29 = arith.constant dense<0xFF800000> : vector<8xf32>
    %79 = vector.multi_reduction <maximumf>, %78, %cst_29 [1] : vector<8x8xf32> to vector<8xf32>
    %80 = vector.shape_cast %79 : vector<8xf32> to vector<8x1xf32>
    %81 = vector.broadcast %80 : vector<8x1xf32> to vector<8x8xf32>
    %82 = arith.subf %78, %81 : vector<8x8xf32>
    %83 = math.exp %82 : vector<8x8xf32>
    %cst_30 = arith.constant dense<0.000000e+00> : vector<8xf32>
    %84 = vector.multi_reduction <add>, %83, %cst_30 [1] : vector<8x8xf32> to vector<8xf32>
    %85 = vector.shape_cast %84 : vector<8xf32> to vector<8x1xf32>
    %86 = tpu.reciprocal %85 {approx = true} : vector<8x1xf32> -> vector<8x1xf32>
    %87 = vector.broadcast %86 : vector<8x1xf32> to vector<8x8xf32>
    %88 = arith.mulf %83, %87 : vector<8x8xf32>
    %cst_31 = arith.constant dense<0.000000e+00> : vector<8x16xf32>
    %89 = tpu.matmul %88, %75, %cst_31 {dimension_numbers = #tpu.dot_dimension_numbers<[1], [0], [0], [1], [0, 0, 1, 1], [], []>} : vector<8x8xf32>, vector<8x16xf32>, vector<8x16xf32> -> vector<8x16xf32>
    %c8 = arith.constant 8 : index
    %c0_32 = arith.constant 0 : index
    %90 = vector.load %arg42[%c8, %c0_32] : memref<16x32xf32, #tpu.memory_space<vmem>>, vector<8x16xf32>
    tpu.vector_store %arg42[%c8, %c0_32], %89 {strides = array<i32>} : memref<16x32xf32, #tpu.memory_space<vmem>>, vector<8x16xf32>,
    %91 = vector.extract_strided_slice %70 {offsets = [0, 16], sizes = [8, 16], strides = [1, 1]} : vector<8x32xf32> to vector<8x16xf32>
    %92 = vector.extract_strided_slice %71 {offsets = [0, 16], sizes = [8, 16], strides = [1, 1]} : vector<8x32xf32> to vector<8x16xf32>
    %93 = vector.extract_strided_slice %72 {offsets = [0, 16], sizes = [8, 16], strides = [1, 1]} : vector<8x32xf32> to vector<8x16xf32>
    %cst_33 = arith.constant dense<0.000000e+00> : vector<8x8xf32>
    %94 = tpu.matmul %91, %92, %cst_33 {dimension_numbers = #tpu.dot_dimension_numbers<[1], [1], [0], [0], [0, 0, 1, 0], [], []>} : vector<8x16xf32>, vector<8x16xf32>, vector<8x8xf32> -> vector<8x8xf32>
    %cst_34 = arith.constant 2.500000e-01 : f32
    %95 = vector.broadcast %cst_34 : f32 to vector<8x8xf32>
    %96 = arith.mulf %94, %95 : vector<8x8xf32>
    %cst_35 = arith.constant dense<0xFF800000> : vector<8xf32>
    %97 = vector.multi_reduction <maximumf>, %96, %cst_35 [1] : vector<8x8xf32> to vector<8xf32>
    %98 = vector.shape_cast %97 : vector<8xf32> to vector<8x1xf32>
    %99 = vector.broadcast %98 : vector<8x1xf32> to vector<8x8xf32>
    %100 = arith.subf %96, %99 : vector<8x8xf32>
    %101 = math.exp %100 : vector<8x8xf32>
    %cst_36 = arith.constant dense<0.000000e+00> : vector<8xf32>
    %102 = vector.multi_reduction <add>, %101, %cst_36 [1] : vector<8x8xf32> to vector<8xf32>
    %103 = vector.shape_cast %102 : vector<8xf32> to vector<8x1xf32>
    %104 = tpu.reciprocal %103 {approx = true} : vector<8x1xf32> -> vector<8x1xf32>
    %105 = vector.broadcast %104 : vector<8x1xf32> to vector<8x8xf32>
    %106 = arith.mulf %101, %105 : vector<8x8xf32>
    %cst_37 = arith.constant dense<0.000000e+00> : vector<8x16xf32>
    %107 = tpu.matmul %106, %93, %cst_37 {dimension_numbers = #tpu.dot_dimension_numbers<[1], [0], [0], [1], [0, 0, 1, 1], [], []>} : vector<8x8xf32>, vector<8x16xf32>, vector<8x16xf32> -> vector<8x16xf32>
    %c8_38 = arith.constant 8 : index
    %c16_39 = arith.constant 16 : index
    %108 = vector.load %arg42[%c8_38, %c16_39] : memref<16x32xf32, #tpu.memory_space<vmem>>, vector<8x16xf32>
    tpu.vector_store %arg42[%c8_38, %c16_39], %107 {strides = array<i32>} : memref<16x32xf32, #tpu.memory_space<vmem>>, vector<8x16xf32>,
    %c0_40 = arith.constant 0 : index
    %c0_41 = arith.constant 0 : index
    %109 = vector.load %arg42[%c0_40, %c0_41] : memref<16x32xf32, #tpu.memory_space<vmem>>, vector<16x32xf32>
    %c0_42 = arith.constant 0 : index
    %c0_43 = arith.constant 0 : index
    %110 = vector.load %arg6[%c0_42, %c0_43] : memref<32x32xf32, #tpu.memory_space<vmem>>, vector<32x32xf32>
    %cst_44 = arith.constant dense<0.000000e+00> : vector<16x32xf32>
    %111 = tpu.matmul %109, %110, %cst_44 {dimension_numbers = #tpu.dot_dimension_numbers<[1], [0], [0], [1], [0, 0, 1, 1], [], []>} : vector<16x32xf32>, vector<32x32xf32>, vector<16x32xf32> -> vector<16x32xf32>
    %c0_45 = arith.constant 0 : index
    %c0_46 = arith.constant 0 : index
    %112 = vector.load %arg7[%c0_45, %c0_46] : memref<1x32xf32, #tpu.memory_space<vmem>>, vector<1x32xf32>
    %113 = vector.broadcast %112 : vector<1x32xf32> to vector<16x32xf32>
    %114 = arith.addf %111, %113 : vector<16x32xf32>
    %115 = arith.addf %22, %114 : vector<16x32xf32>
    %c0_47 = arith.constant 0 : index
    %c0_48 = arith.constant 0 : index
    %116 = vector.load %arg8[%c0_47, %c0_48] : memref<1x32xf32, #tpu.memory_space<vmem>>, vector<1x32xf32>
    %c0_49 = arith.constant 0 : index
    %c0_50 = arith.constant 0 : index
    %117 = vector.load %arg9[%c0_49, %c0_50] : memref<1x32xf32, #tpu.memory_space<vmem>>, vector<1x32xf32>
    %cst_51 = arith.constant dense<0.000000e+00> : vector<16xf32>
    %118 = vector.multi_reduction <add>, %115, %cst_51 [1] : vector<16x32xf32> to vector<16xf32>
    %119 = vector.shape_cast %118 : vector<16xf32> to vector<16x1xf32>
    %cst_52 = arith.constant 3.200000e+01 : f32
    %120 = vector.broadcast %cst_52 : f32 to vector<16x1xf32>
    %121 = arith.divf %119, %120 : vector<16x1xf32>
    %122 = vector.broadcast %121 : vector<16x1xf32> to vector<16x32xf32>
    %123 = arith.subf %115, %122 : vector<16x32xf32>
    %124 = arith.mulf %123, %123 : vector<16x32xf32>
    %cst_53 = arith.constant dense<0.000000e+00> : vector<16xf32>
    %125 = vector.multi_reduction <add>, %124, %cst_53 [1] : vector<16x32xf32> to vector<16xf32>
    %126 = vector.shape_cast %125 : vector<16xf32> to vector<16x1xf32>
    %cst_54 = arith.constant 3.200000e+01 : f32
    %127 = vector.broadcast %cst_54 : f32 to vector<16x1xf32>
    %128 = arith.divf %126, %127 : vector<16x1xf32>
    %cst_55 = arith.constant 9.99999974E-6 : f32
    %129 = vector.broadcast %cst_55 : f32 to vector<16x1xf32>
    %130 = arith.addf %128, %129 : vector<16x1xf32>
    %131 = math.rsqrt %130 : vector<16x1xf32>
    %132 = vector.broadcast %131 : vector<16x1xf32> to vector<16x32xf32>
    %133 = arith.mulf %123, %132 : vector<16x32xf32>
    %134 = vector.broadcast %116 : vector<1x32xf32> to vector<16x32xf32>
    %135 = arith.mulf %133, %134 : vector<16x32xf32>
    %136 = vector.broadcast %117 : vector<1x32xf32> to vector<16x32xf32>
    %137 = arith.addf %135, %136 : vector<16x32xf32>
    %c0_56 = arith.constant 0 : index
    %c0_57 = arith.constant 0 : index
    %138 = vector.load %arg10[%c0_56, %c0_57] : memref<32x64xf32, #tpu.memory_space<vmem>>, vector<32x64xf32>
    %cst_58 = arith.constant dense<0.000000e+00> : vector<16x64xf32>
    %139 = tpu.matmul %137, %138, %cst_58 {dimension_numbers = #tpu.dot_dimension_numbers<[1], [0], [0], [1], [0, 0, 1, 1], [], []>} : vector<16x32xf32>, vector<32x64xf32>, vector<16x64xf32> -> vector<16x64xf32>
    %c0_59 = arith.constant 0 : index
    %c0_60 = arith.constant 0 : index
    %140 = vector.load %arg11[%c0_59, %c0_60] : memref<1x64xf32, #tpu.memory_space<vmem>>, vector<1x64xf32>
    %141 = vector.broadcast %140 : vector<1x64xf32> to vector<16x64xf32>
    %142 = arith.addf %139, %141 : vector<16x64xf32>
    %143 = arith.mulf %142, %142 : vector<16x64xf32>
    %144 = arith.mulf %142, %143 : vector<16x64xf32>
    %cst_61 = arith.constant 4.471500e-02 : f32
    %145 = vector.broadcast %cst_61 : f32 to vector<16x64xf32>
    %146 = arith.mulf %145, %144 : vector<16x64xf32>
    %147 = arith.addf %142, %146 : vector<16x64xf32>
    %cst_62 = arith.constant 0.797884583 : f32
    %148 = vector.broadcast %cst_62 : f32 to vector<16x64xf32>
    %149 = arith.mulf %148, %147 : vector<16x64xf32>
    %150 = math.tanh %149 : vector<16x64xf32>
    %cst_63 = arith.constant 1.000000e+00 : f32
    %151 = vector.broadcast %cst_63 : f32 to vector<16x64xf32>
    %152 = arith.addf %151, %150 : vector<16x64xf32>
    %cst_64 = arith.constant 5.000000e-01 : f32
    %153 = vector.broadcast %cst_64 : f32 to vector<16x64xf32>
    %154 = arith.mulf %153, %152 : vector<16x64xf32>
    %155 = arith.mulf %142, %154 : vector<16x64xf32>
    %c0_65 = arith.constant 0 : index
    %c0_66 = arith.constant 0 : index
    %156 = vector.load %arg12[%c0_65, %c0_66] : memref<64x32xf32, #tpu.memory_space<vmem>>, vector<64x32xf32>
    %cst_67 = arith.constant dense<0.000000e+00> : vector<16x32xf32>
    %157 = tpu.matmul %155, %156, %cst_67 {dimension_numbers = #tpu.dot_dimension_numbers<[1], [0], [0], [1], [0, 0, 1, 1], [], []>} : vector<16x64xf32>, vector<64x32xf32>, vector<16x32xf32> -> vector<16x32xf32>
    %c0_68 = arith.constant 0 : index
    %c0_69 = arith.constant 0 : index
    %158 = vector.load %arg13[%c0_68, %c0_69] : memref<1x32xf32, #tpu.memory_space<vmem>>, vector<1x32xf32>
    %159 = vector.broadcast %158 : vector<1x32xf32> to vector<16x32xf32>
    %160 = arith.addf %157, %159 : vector<16x32xf32>
    %161 = arith.addf %137, %160 : vector<16x32xf32>
    %c0_70 = arith.constant 0 : index
    %c0_71 = arith.constant 0 : index
    %162 = vector.load %arg14[%c0_70, %c0_71] : memref<1x32xf32, #tpu.memory_space<vmem>>, vector<1x32xf32>
    %c0_72 = arith.constant 0 : index
    %c0_73 = arith.constant 0 : index
    %163 = vector.load %arg15[%c0_72, %c0_73] : memref<1x32xf32, #tpu.memory_space<vmem>>, vector<1x32xf32>
    %cst_74 = arith.constant dense<0.000000e+00> : vector<16xf32>
    %164 = vector.multi_reduction <add>, %161, %cst_74 [1] : vector<16x32xf32> to vector<16xf32>
    %165 = vector.shape_cast %164 : vector<16xf32> to vector<16x1xf32>
    %cst_75 = arith.constant 3.200000e+01 : f32
    %166 = vector.broadcast %cst_75 : f32 to vector<16x1xf32>
    %167 = arith.divf %165, %166 : vector<16x1xf32>
    %168 = vector.broadcast %167 : vector<16x1xf32> to vector<16x32xf32>
    %169 = arith.subf %161, %168 : vector<16x32xf32>
    %170 = arith.mulf %169, %169 : vector<16x32xf32>
    %cst_76 = arith.constant dense<0.000000e+00> : vector<16xf32>
    %171 = vector.multi_reduction <add>, %170, %cst_76 [1] : vector<16x32xf32> to vector<16xf32>
    %172 = vector.shape_cast %171 : vector<16xf32> to vector<16x1xf32>
    %cst_77 = arith.constant 3.200000e+01 : f32
    %173 = vector.broadcast %cst_77 : f32 to vector<16x1xf32>
    %174 = arith.divf %172, %173 : vector<16x1xf32>
    %cst_78 = arith.constant 9.99999974E-6 : f32
    %175 = vector.broadcast %cst_78 : f32 to vector<16x1xf32>
    %176 = arith.addf %174, %175 : vector<16x1xf32>
    %177 = math.rsqrt %176 : vector<16x1xf32>
    %178 = vector.broadcast %177 : vector<16x1xf32> to vector<16x32xf32>
    %179 = arith.mulf %169, %178 : vector<16x32xf32>
    %180 = vector.broadcast %162 : vector<1x32xf32> to vector<16x32xf32>
    %181 = arith.mulf %179, %180 : vector<16x32xf32>
    %182 = vector.broadcast %163 : vector<1x32xf32> to vector<16x32xf32>
    %183 = arith.addf %181, %182 : vector<16x32xf32>
    %c0_79 = arith.constant 0 : index
    %c0_80 = arith.constant 0 : index
    %184 = vector.load %arg1[%c0_79, %c0_80] : memref<16x32xf32, #tpu.memory_space<vmem>>, vector<16x32xf32>
    %c0_81 = arith.constant 0 : index
    %c0_82 = arith.constant 0 : index
    %185 = vector.load %arg16[%c0_81, %c0_82] : memref<1x32xf32, #tpu.memory_space<vmem>>, vector<1x32xf32>
    %c0_83 = arith.constant 0 : index
    %c0_84 = arith.constant 0 : index
    %186 = vector.load %arg17[%c0_83, %c0_84] : memref<1x32xf32, #tpu.memory_space<vmem>>, vector<1x32xf32>
    %cst_85 = arith.constant dense<0.000000e+00> : vector<16xf32>
    %187 = vector.multi_reduction <add>, %184, %cst_85 [1] : vector<16x32xf32> to vector<16xf32>
    %188 = vector.shape_cast %187 : vector<16xf32> to vector<16x1xf32>
    %cst_86 = arith.constant 3.200000e+01 : f32
    %189 = vector.broadcast %cst_86 : f32 to vector<16x1xf32>
    %190 = arith.divf %188, %189 : vector<16x1xf32>
    %191 = vector.broadcast %190 : vector<16x1xf32> to vector<16x32xf32>
    %192 = arith.subf %184, %191 : vector<16x32xf32>
    %193 = arith.mulf %192, %192 : vector<16x32xf32>
    %cst_87 = arith.constant dense<0.000000e+00> : vector<16xf32>
    %194 = vector.multi_reduction <add>, %193, %cst_87 [1] : vector<16x32xf32> to vector<16xf32>
    %195 = vector.shape_cast %194 : vector<16xf32> to vector<16x1xf32>
    %cst_88 = arith.constant 3.200000e+01 : f32
    %196 = vector.broadcast %cst_88 : f32 to vector<16x1xf32>
    %197 = arith.divf %195, %196 : vector<16x1xf32>
    %cst_89 = arith.constant 9.99999974E-6 : f32
    %198 = vector.broadcast %cst_89 : f32 to vector<16x1xf32>
    %199 = arith.addf %197, %198 : vector<16x1xf32>
    %200 = math.rsqrt %199 : vector<16x1xf32>
    %201 = vector.broadcast %200 : vector<16x1xf32> to vector<16x32xf32>
    %202 = arith.mulf %192, %201 : vector<16x32xf32>
    %203 = vector.broadcast %185 : vector<1x32xf32> to vector<16x32xf32>
    %204 = arith.mulf %202, %203 : vector<16x32xf32>
    %205 = vector.broadcast %186 : vector<1x32xf32> to vector<16x32xf32>
    %206 = arith.addf %204, %205 : vector<16x32xf32>
    %207 = tpu.iota {dimensions = array<i32: 0>} : vector<8x8xi32>
    %208 = tpu.iota {dimensions = array<i32: 1>} : vector<8x8xi32>
    %209 = arith.cmpi sge, %207, %208 : vector<8x8xi32>
    %cst_90 = arith.constant 0.000000e+00 : f32
    %cst_91 = arith.constant -1.000000e+09 : f32
    %210 = vector.broadcast %cst_90 : f32 to vector<8x8xf32>
    %211 = vector.broadcast %cst_91 : f32 to vector<8x8xf32>
    %212 = arith.select %209, %210, %211 : vector<8x8xi1>, vector<8x8xf32>
    %c0_92 = arith.constant 0 : index
    %c0_93 = arith.constant 0 : index
    %213 = vector.load %arg18[%c0_92, %c0_93] : memref<32x96xf32, #tpu.memory_space<vmem>>, vector<32x96xf32>
    %cst_94 = arith.constant dense<0.000000e+00> : vector<16x96xf32>
    %214 = tpu.matmul %206, %213, %cst_94 {dimension_numbers = #tpu.dot_dimension_numbers<[1], [0], [0], [1], [0, 0, 1, 1], [], []>} : vector<16x32xf32>, vector<32x96xf32>, vector<16x96xf32> -> vector<16x96xf32>
    %c0_95 = arith.constant 0 : index
    %c0_96 = arith.constant 0 : index
    %215 = vector.load %arg19[%c0_95, %c0_96] : memref<1x96xf32, #tpu.memory_space<vmem>>, vector<1x96xf32>
    %216 = vector.broadcast %215 : vector<1x96xf32> to vector<16x96xf32>
    %217 = arith.addf %214, %216 : vector<16x96xf32>
    %218 = vector.extract_strided_slice %217 {offsets = [0, 0], sizes = [16, 32], strides = [1, 1]} : vector<16x96xf32> to vector<16x32xf32>
    %219 = vector.extract_strided_slice %217 {offsets = [0, 32], sizes = [16, 32], strides = [1, 1]} : vector<16x96xf32> to vector<16x32xf32>
    %220 = vector.extract_strided_slice %217 {offsets = [0, 64], sizes = [16, 32], strides = [1, 1]} : vector<16x96xf32> to vector<16x32xf32>
    %221 = vector.extract_strided_slice %218 {offsets = [0, 0], sizes = [8, 32], strides = [1, 1]} : vector<16x32xf32> to vector<8x32xf32>
    %222 = vector.extract_strided_slice %219 {offsets = [0, 0], sizes = [8, 32], strides = [1, 1]} : vector<16x32xf32> to vector<8x32xf32>
    %223 = vector.extract_strided_slice %220 {offsets = [0, 0], sizes = [8, 32], strides = [1, 1]} : vector<16x32xf32> to vector<8x32xf32>
    %224 = vector.extract_strided_slice %221 {offsets = [0, 0], sizes = [8, 16], strides = [1, 1]} : vector<8x32xf32> to vector<8x16xf32>
    %225 = vector.extract_strided_slice %222 {offsets = [0, 0], sizes = [8, 16], strides = [1, 1]} : vector<8x32xf32> to vector<8x16xf32>
    %226 = vector.extract_strided_slice %223 {offsets = [0, 0], sizes = [8, 16], strides = [1, 1]} : vector<8x32xf32> to vector<8x16xf32>
    %cst_97 = arith.constant dense<0.000000e+00> : vector<8x8xf32>
    %227 = tpu.matmul %224, %225, %cst_97 {dimension_numbers = #tpu.dot_dimension_numbers<[1], [1], [0], [0], [0, 0, 1, 0], [], []>} : vector<8x16xf32>, vector<8x16xf32>, vector<8x8xf32> -> vector<8x8xf32>
    %cst_98 = arith.constant 2.500000e-01 : f32
    %228 = vector.broadcast %cst_98 : f32 to vector<8x8xf32>
    %229 = arith.mulf %227, %228 : vector<8x8xf32>
    %230 = arith.addf %229, %212 : vector<8x8xf32>
    %cst_99 = arith.constant dense<0xFF800000> : vector<8xf32>
    %231 = vector.multi_reduction <maximumf>, %230, %cst_99 [1] : vector<8x8xf32> to vector<8xf32>
    %232 = vector.shape_cast %231 : vector<8xf32> to vector<8x1xf32>
    %233 = vector.broadcast %232 : vector<8x1xf32> to vector<8x8xf32>
    %234 = arith.subf %230, %233 : vector<8x8xf32>
    %235 = math.exp %234 : vector<8x8xf32>
    %cst_100 = arith.constant dense<0.000000e+00> : vector<8xf32>
    %236 = vector.multi_reduction <add>, %235, %cst_100 [1] : vector<8x8xf32> to vector<8xf32>
    %237 = vector.shape_cast %236 : vector<8xf32> to vector<8x1xf32>
    %238 = tpu.reciprocal %237 {approx = true} : vector<8x1xf32> -> vector<8x1xf32>
    %239 = vector.broadcast %238 : vector<8x1xf32> to vector<8x8xf32>
    %240 = arith.mulf %235, %239 : vector<8x8xf32>
    %cst_101 = arith.constant dense<0.000000e+00> : vector<8x16xf32>
    %241 = tpu.matmul %240, %226, %cst_101 {dimension_numbers = #tpu.dot_dimension_numbers<[1], [0], [0], [1], [0, 0, 1, 1], [], []>} : vector<8x8xf32>, vector<8x16xf32>, vector<8x16xf32> -> vector<8x16xf32>
    %c0_102 = arith.constant 0 : index
    %c0_103 = arith.constant 0 : index
    %242 = vector.load %arg43[%c0_102, %c0_103] : memref<16x32xf32, #tpu.memory_space<vmem>>, vector<8x16xf32>
    tpu.vector_store %arg43[%c0_102, %c0_103], %241 {strides = array<i32>} : memref<16x32xf32, #tpu.memory_space<vmem>>, vector<8x16xf32>,
    %243 = vector.extract_strided_slice %221 {offsets = [0, 16], sizes = [8, 16], strides = [1, 1]} : vector<8x32xf32> to vector<8x16xf32>
    %244 = vector.extract_strided_slice %222 {offsets = [0, 16], sizes = [8, 16], strides = [1, 1]} : vector<8x32xf32> to vector<8x16xf32>
    %245 = vector.extract_strided_slice %223 {offsets = [0, 16], sizes = [8, 16], strides = [1, 1]} : vector<8x32xf32> to vector<8x16xf32>
    %cst_104 = arith.constant dense<0.000000e+00> : vector<8x8xf32>
    %246 = tpu.matmul %243, %244, %cst_104 {dimension_numbers = #tpu.dot_dimension_numbers<[1], [1], [0], [0], [0, 0, 1, 0], [], []>} : vector<8x16xf32>, vector<8x16xf32>, vector<8x8xf32> -> vector<8x8xf32>
    %cst_105 = arith.constant 2.500000e-01 : f32
    %247 = vector.broadcast %cst_105 : f32 to vector<8x8xf32>
    %248 = arith.mulf %246, %247 : vector<8x8xf32>
    %249 = arith.addf %248, %212 : vector<8x8xf32>
    %cst_106 = arith.constant dense<0xFF800000> : vector<8xf32>
    %250 = vector.multi_reduction <maximumf>, %249, %cst_106 [1] : vector<8x8xf32> to vector<8xf32>
    %251 = vector.shape_cast %250 : vector<8xf32> to vector<8x1xf32>
    %252 = vector.broadcast %251 : vector<8x1xf32> to vector<8x8xf32>
    %253 = arith.subf %249, %252 : vector<8x8xf32>
    %254 = math.exp %253 : vector<8x8xf32>
    %cst_107 = arith.constant dense<0.000000e+00> : vector<8xf32>
    %255 = vector.multi_reduction <add>, %254, %cst_107 [1] : vector<8x8xf32> to vector<8xf32>
    %256 = vector.shape_cast %255 : vector<8xf32> to vector<8x1xf32>
    %257 = tpu.reciprocal %256 {approx = true} : vector<8x1xf32> -> vector<8x1xf32>
    %258 = vector.broadcast %257 : vector<8x1xf32> to vector<8x8xf32>
    %259 = arith.mulf %254, %258 : vector<8x8xf32>
    %cst_108 = arith.constant dense<0.000000e+00> : vector<8x16xf32>
    %260 = tpu.matmul %259, %245, %cst_108 {dimension_numbers = #tpu.dot_dimension_numbers<[1], [0], [0], [1], [0, 0, 1, 1], [], []>} : vector<8x8xf32>, vector<8x16xf32>, vector<8x16xf32> -> vector<8x16xf32>
    %c0_109 = arith.constant 0 : index
    %c16_110 = arith.constant 16 : index
    %261 = vector.load %arg43[%c0_109, %c16_110] : memref<16x32xf32, #tpu.memory_space<vmem>>, vector<8x16xf32>
    tpu.vector_store %arg43[%c0_109, %c16_110], %260 {strides = array<i32>} : memref<16x32xf32, #tpu.memory_space<vmem>>, vector<8x16xf32>,
    %262 = vector.extract_strided_slice %218 {offsets = [8, 0], sizes = [8, 32], strides = [1, 1]} : vector<16x32xf32> to vector<8x32xf32>
    %263 = vector.extract_strided_slice %219 {offsets = [8, 0], sizes = [8, 32], strides = [1, 1]} : vector<16x32xf32> to vector<8x32xf32>
    %264 = vector.extract_strided_slice %220 {offsets = [8, 0], sizes = [8, 32], strides = [1, 1]} : vector<16x32xf32> to vector<8x32xf32>
    %265 = vector.extract_strided_slice %262 {offsets = [0, 0], sizes = [8, 16], strides = [1, 1]} : vector<8x32xf32> to vector<8x16xf32>
    %266 = vector.extract_strided_slice %263 {offsets = [0, 0], sizes = [8, 16], strides = [1, 1]} : vector<8x32xf32> to vector<8x16xf32>
    %267 = vector.extract_strided_slice %264 {offsets = [0, 0], sizes = [8, 16], strides = [1, 1]} : vector<8x32xf32> to vector<8x16xf32>
    %cst_111 = arith.constant dense<0.000000e+00> : vector<8x8xf32>
    %268 = tpu.matmul %265, %266, %cst_111 {dimension_numbers = #tpu.dot_dimension_numbers<[1], [1], [0], [0], [0, 0, 1, 0], [], []>} : vector<8x16xf32>, vector<8x16xf32>, vector<8x8xf32> -> vector<8x8xf32>
    %cst_112 = arith.constant 2.500000e-01 : f32
    %269 = vector.broadcast %cst_112 : f32 to vector<8x8xf32>
    %270 = arith.mulf %268, %269 : vector<8x8xf32>
    %271 = arith.addf %270, %212 : vector<8x8xf32>
    %cst_113 = arith.constant dense<0xFF800000> : vector<8xf32>
    %272 = vector.multi_reduction <maximumf>, %271, %cst_113 [1] : vector<8x8xf32> to vector<8xf32>
    %273 = vector.shape_cast %272 : vector<8xf32> to vector<8x1xf32>
    %274 = vector.broadcast %273 : vector<8x1xf32> to vector<8x8xf32>
    %275 = arith.subf %271, %274 : vector<8x8xf32>
    %276 = math.exp %275 : vector<8x8xf32>
    %cst_114 = arith.constant dense<0.000000e+00> : vector<8xf32>
    %277 = vector.multi_reduction <add>, %276, %cst_114 [1] : vector<8x8xf32> to vector<8xf32>
    %278 = vector.shape_cast %277 : vector<8xf32> to vector<8x1xf32>
    %279 = tpu.reciprocal %278 {approx = true} : vector<8x1xf32> -> vector<8x1xf32>
    %280 = vector.broadcast %279 : vector<8x1xf32> to vector<8x8xf32>
    %281 = arith.mulf %276, %280 : vector<8x8xf32>
    %cst_115 = arith.constant dense<0.000000e+00> : vector<8x16xf32>
    %282 = tpu.matmul %281, %267, %cst_115 {dimension_numbers = #tpu.dot_dimension_numbers<[1], [0], [0], [1], [0, 0, 1, 1], [], []>} : vector<8x8xf32>, vector<8x16xf32>, vector<8x16xf32> -> vector<8x16xf32>
    %c8_116 = arith.constant 8 : index
    %c0_117 = arith.constant 0 : index
    %283 = vector.load %arg43[%c8_116, %c0_117] : memref<16x32xf32, #tpu.memory_space<vmem>>, vector<8x16xf32>
    tpu.vector_store %arg43[%c8_116, %c0_117], %282 {strides = array<i32>} : memref<16x32xf32, #tpu.memory_space<vmem>>, vector<8x16xf32>,
    %284 = vector.extract_strided_slice %262 {offsets = [0, 16], sizes = [8, 16], strides = [1, 1]} : vector<8x32xf32> to vector<8x16xf32>
    %285 = vector.extract_strided_slice %263 {offsets = [0, 16], sizes = [8, 16], strides = [1, 1]} : vector<8x32xf32> to vector<8x16xf32>
    %286 = vector.extract_strided_slice %264 {offsets = [0, 16], sizes = [8, 16], strides = [1, 1]} : vector<8x32xf32> to vector<8x16xf32>
    %cst_118 = arith.constant dense<0.000000e+00> : vector<8x8xf32>
    %287 = tpu.matmul %284, %285, %cst_118 {dimension_numbers = #tpu.dot_dimension_numbers<[1], [1], [0], [0], [0, 0, 1, 0], [], []>} : vector<8x16xf32>, vector<8x16xf32>, vector<8x8xf32> -> vector<8x8xf32>
    %cst_119 = arith.constant 2.500000e-01 : f32
    %288 = vector.broadcast %cst_119 : f32 to vector<8x8xf32>
    %289 = arith.mulf %287, %288 : vector<8x8xf32>
    %290 = arith.addf %289, %212 : vector<8x8xf32>
    %cst_120 = arith.constant dense<0xFF800000> : vector<8xf32>
    %291 = vector.multi_reduction <maximumf>, %290, %cst_120 [1] : vector<8x8xf32> to vector<8xf32>
    %292 = vector.shape_cast %291 : vector<8xf32> to vector<8x1xf32>
    %293 = vector.broadcast %292 : vector<8x1xf32> to vector<8x8xf32>
    %294 = arith.subf %290, %293 : vector<8x8xf32>
    %295 = math.exp %294 : vector<8x8xf32>
    %cst_121 = arith.constant dense<0.000000e+00> : vector<8xf32>
    %296 = vector.multi_reduction <add>, %295, %cst_121 [1] : vector<8x8xf32> to vector<8xf32>
    %297 = vector.shape_cast %296 : vector<8xf32> to vector<8x1xf32>
    %298 = tpu.reciprocal %297 {approx = true} : vector<8x1xf32> -> vector<8x1xf32>
    %299 = vector.broadcast %298 : vector<8x1xf32> to vector<8x8xf32>
    %300 = arith.mulf %295, %299 : vector<8x8xf32>
    %cst_122 = arith.constant dense<0.000000e+00> : vector<8x16xf32>
    %301 = tpu.matmul %300, %286, %cst_122 {dimension_numbers = #tpu.dot_dimension_numbers<[1], [0], [0], [1], [0, 0, 1, 1], [], []>} : vector<8x8xf32>, vector<8x16xf32>, vector<8x16xf32> -> vector<8x16xf32>
    %c8_123 = arith.constant 8 : index
    %c16_124 = arith.constant 16 : index
    %302 = vector.load %arg43[%c8_123, %c16_124] : memref<16x32xf32, #tpu.memory_space<vmem>>, vector<8x16xf32>
    tpu.vector_store %arg43[%c8_123, %c16_124], %301 {strides = array<i32>} : memref<16x32xf32, #tpu.memory_space<vmem>>, vector<8x16xf32>,
    %c0_125 = arith.constant 0 : index
    %c0_126 = arith.constant 0 : index
    %303 = vector.load %arg43[%c0_125, %c0_126] : memref<16x32xf32, #tpu.memory_space<vmem>>, vector<16x32xf32>
    %c0_127 = arith.constant 0 : index
    %c0_128 = arith.constant 0 : index
    %304 = vector.load %arg20[%c0_127, %c0_128] : memref<32x32xf32, #tpu.memory_space<vmem>>, vector<32x32xf32>
    %cst_129 = arith.constant dense<0.000000e+00> : vector<16x32xf32>
    %305 = tpu.matmul %303, %304, %cst_129 {dimension_numbers = #tpu.dot_dimension_numbers<[1], [0], [0], [1], [0, 0, 1, 1], [], []>} : vector<16x32xf32>, vector<32x32xf32>, vector<16x32xf32> -> vector<16x32xf32>
    %c0_130 = arith.constant 0 : index
    %c0_131 = arith.constant 0 : index
    %306 = vector.load %arg21[%c0_130, %c0_131] : memref<1x32xf32, #tpu.memory_space<vmem>>, vector<1x32xf32>
    %307 = vector.broadcast %306 : vector<1x32xf32> to vector<16x32xf32>
    %308 = arith.addf %305, %307 : vector<16x32xf32>
    %309 = arith.addf %206, %308 : vector<16x32xf32>
    %c0_132 = arith.constant 0 : index
    %c0_133 = arith.constant 0 : index
    %310 = vector.load %arg22[%c0_132, %c0_133] : memref<1x32xf32, #tpu.memory_space<vmem>>, vector<1x32xf32>
    %c0_134 = arith.constant 0 : index
    %c0_135 = arith.constant 0 : index
    %311 = vector.load %arg23[%c0_134, %c0_135] : memref<1x32xf32, #tpu.memory_space<vmem>>, vector<1x32xf32>
    %cst_136 = arith.constant dense<0.000000e+00> : vector<16xf32>
    %312 = vector.multi_reduction <add>, %309, %cst_136 [1] : vector<16x32xf32> to vector<16xf32>
    %313 = vector.shape_cast %312 : vector<16xf32> to vector<16x1xf32>
    %cst_137 = arith.constant 3.200000e+01 : f32
    %314 = vector.broadcast %cst_137 : f32 to vector<16x1xf32>
    %315 = arith.divf %313, %314 : vector<16x1xf32>
    %316 = vector.broadcast %315 : vector<16x1xf32> to vector<16x32xf32>
    %317 = arith.subf %309, %316 : vector<16x32xf32>
    %318 = arith.mulf %317, %317 : vector<16x32xf32>
    %cst_138 = arith.constant dense<0.000000e+00> : vector<16xf32>
    %319 = vector.multi_reduction <add>, %318, %cst_138 [1] : vector<16x32xf32> to vector<16xf32>
    %320 = vector.shape_cast %319 : vector<16xf32> to vector<16x1xf32>
    %cst_139 = arith.constant 3.200000e+01 : f32
    %321 = vector.broadcast %cst_139 : f32 to vector<16x1xf32>
    %322 = arith.divf %320, %321 : vector<16x1xf32>
    %cst_140 = arith.constant 9.99999974E-6 : f32
    %323 = vector.broadcast %cst_140 : f32 to vector<16x1xf32>
    %324 = arith.addf %322, %323 : vector<16x1xf32>
    %325 = math.rsqrt %324 : vector<16x1xf32>
    %326 = vector.broadcast %325 : vector<16x1xf32> to vector<16x32xf32>
    %327 = arith.mulf %317, %326 : vector<16x32xf32>
    %328 = vector.broadcast %310 : vector<1x32xf32> to vector<16x32xf32>
    %329 = arith.mulf %327, %328 : vector<16x32xf32>
    %330 = vector.broadcast %311 : vector<1x32xf32> to vector<16x32xf32>
    %331 = arith.addf %329, %330 : vector<16x32xf32>
    %c0_141 = arith.constant 0 : index
    %c0_142 = arith.constant 0 : index
    %332 = vector.load %arg24[%c0_141, %c0_142] : memref<32x32xf32, #tpu.memory_space<vmem>>, vector<32x32xf32>
    %cst_143 = arith.constant dense<0.000000e+00> : vector<16x32xf32>
    %333 = tpu.matmul %331, %332, %cst_143 {dimension_numbers = #tpu.dot_dimension_numbers<[1], [0], [0], [1], [0, 0, 1, 1], [], []>} : vector<16x32xf32>, vector<32x32xf32>, vector<16x32xf32> -> vector<16x32xf32>
    %c0_144 = arith.constant 0 : index
    %c0_145 = arith.constant 0 : index
    %334 = vector.load %arg25[%c0_144, %c0_145] : memref<1x32xf32, #tpu.memory_space<vmem>>, vector<1x32xf32>
    %335 = vector.broadcast %334 : vector<1x32xf32> to vector<16x32xf32>
    %336 = arith.addf %333, %335 : vector<16x32xf32>
    %c0_146 = arith.constant 0 : index
    %c0_147 = arith.constant 0 : index
    %337 = vector.load %arg26[%c0_146, %c0_147] : memref<32x64xf32, #tpu.memory_space<vmem>>, vector<32x64xf32>
    %cst_148 = arith.constant dense<0.000000e+00> : vector<16x64xf32>
    %338 = tpu.matmul %183, %337, %cst_148 {dimension_numbers = #tpu.dot_dimension_numbers<[1], [0], [0], [1], [0, 0, 1, 1], [], []>} : vector<16x32xf32>, vector<32x64xf32>, vector<16x64xf32> -> vector<16x64xf32>
    %c0_149 = arith.constant 0 : index
    %c0_150 = arith.constant 0 : index
    %339 = vector.load %arg27[%c0_149, %c0_150] : memref<1x64xf32, #tpu.memory_space<vmem>>, vector<1x64xf32>
    %340 = vector.broadcast %339 : vector<1x64xf32> to vector<16x64xf32>
    %341 = arith.addf %338, %340 : vector<16x64xf32>
    %342 = vector.extract_strided_slice %341 {offsets = [0, 0], sizes = [16, 32], strides = [1, 1]} : vector<16x64xf32> to vector<16x32xf32>
    %343 = vector.extract_strided_slice %341 {offsets = [0, 32], sizes = [16, 32], strides = [1, 1]} : vector<16x64xf32> to vector<16x32xf32>
    %344 = vector.extract_strided_slice %336 {offsets = [0, 0], sizes = [8, 32], strides = [1, 1]} : vector<16x32xf32> to vector<8x32xf32>
    %345 = vector.extract_strided_slice %342 {offsets = [0, 0], sizes = [8, 32], strides = [1, 1]} : vector<16x32xf32> to vector<8x32xf32>
    %346 = vector.extract_strided_slice %343 {offsets = [0, 0], sizes = [8, 32], strides = [1, 1]} : vector<16x32xf32> to vector<8x32xf32>
    %347 = vector.extract_strided_slice %344 {offsets = [0, 0], sizes = [8, 16], strides = [1, 1]} : vector<8x32xf32> to vector<8x16xf32>
    %348 = vector.extract_strided_slice %345 {offsets = [0, 0], sizes = [8, 16], strides = [1, 1]} : vector<8x32xf32> to vector<8x16xf32>
    %349 = vector.extract_strided_slice %346 {offsets = [0, 0], sizes = [8, 16], strides = [1, 1]} : vector<8x32xf32> to vector<8x16xf32>
    %cst_151 = arith.constant dense<0.000000e+00> : vector<8x8xf32>
    %350 = tpu.matmul %347, %348, %cst_151 {dimension_numbers = #tpu.dot_dimension_numbers<[1], [1], [0], [0], [0, 0, 1, 0], [], []>} : vector<8x16xf32>, vector<8x16xf32>, vector<8x8xf32> -> vector<8x8xf32>
    %cst_152 = arith.constant 2.500000e-01 : f32
    %351 = vector.broadcast %cst_152 : f32 to vector<8x8xf32>
    %352 = arith.mulf %350, %351 : vector<8x8xf32>
    %cst_153 = arith.constant dense<0xFF800000> : vector<8xf32>
    %353 = vector.multi_reduction <maximumf>, %352, %cst_153 [1] : vector<8x8xf32> to vector<8xf32>
    %354 = vector.shape_cast %353 : vector<8xf32> to vector<8x1xf32>
    %355 = vector.broadcast %354 : vector<8x1xf32> to vector<8x8xf32>
    %356 = arith.subf %352, %355 : vector<8x8xf32>
    %357 = math.exp %356 : vector<8x8xf32>
    %cst_154 = arith.constant dense<0.000000e+00> : vector<8xf32>
    %358 = vector.multi_reduction <add>, %357, %cst_154 [1] : vector<8x8xf32> to vector<8xf32>
    %359 = vector.shape_cast %358 : vector<8xf32> to vector<8x1xf32>
    %360 = tpu.reciprocal %359 {approx = true} : vector<8x1xf32> -> vector<8x1xf32>
    %361 = vector.broadcast %360 : vector<8x1xf32> to vector<8x8xf32>
    %362 = arith.mulf %357, %361 : vector<8x8xf32>
    %cst_155 = arith.constant dense<0.000000e+00> : vector<8x16xf32>
    %363 = tpu.matmul %362, %349, %cst_155 {dimension_numbers = #tpu.dot_dimension_numbers<[1], [0], [0], [1], [0, 0, 1, 1], [], []>} : vector<8x8xf32>, vector<8x16xf32>, vector<8x16xf32> -> vector<8x16xf32>
    %c0_156 = arith.constant 0 : index
    %c0_157 = arith.constant 0 : index
    %364 = vector.load %arg43[%c0_156, %c0_157] : memref<16x32xf32, #tpu.memory_space<vmem>>, vector<8x16xf32>
    tpu.vector_store %arg43[%c0_156, %c0_157], %363 {strides = array<i32>} : memref<16x32xf32, #tpu.memory_space<vmem>>, vector<8x16xf32>,
    %365 = vector.extract_strided_slice %344 {offsets = [0, 16], sizes = [8, 16], strides = [1, 1]} : vector<8x32xf32> to vector<8x16xf32>
    %366 = vector.extract_strided_slice %345 {offsets = [0, 16], sizes = [8, 16], strides = [1, 1]} : vector<8x32xf32> to vector<8x16xf32>
    %367 = vector.extract_strided_slice %346 {offsets = [0, 16], sizes = [8, 16], strides = [1, 1]} : vector<8x32xf32> to vector<8x16xf32>
    %cst_158 = arith.constant dense<0.000000e+00> : vector<8x8xf32>
    %368 = tpu.matmul %365, %366, %cst_158 {dimension_numbers = #tpu.dot_dimension_numbers<[1], [1], [0], [0], [0, 0, 1, 0], [], []>} : vector<8x16xf32>, vector<8x16xf32>, vector<8x8xf32> -> vector<8x8xf32>
    %cst_159 = arith.constant 2.500000e-01 : f32
    %369 = vector.broadcast %cst_159 : f32 to vector<8x8xf32>
    %370 = arith.mulf %368, %369 : vector<8x8xf32>
    %cst_160 = arith.constant dense<0xFF800000> : vector<8xf32>
    %371 = vector.multi_reduction <maximumf>, %370, %cst_160 [1] : vector<8x8xf32> to vector<8xf32>
    %372 = vector.shape_cast %371 : vector<8xf32> to vector<8x1xf32>
    %373 = vector.broadcast %372 : vector<8x1xf32> to vector<8x8xf32>
    %374 = arith.subf %370, %373 : vector<8x8xf32>
    %375 = math.exp %374 : vector<8x8xf32>
    %cst_161 = arith.constant dense<0.000000e+00> : vector<8xf32>
    %376 = vector.multi_reduction <add>, %375, %cst_161 [1] : vector<8x8xf32> to vector<8xf32>
    %377 = vector.shape_cast %376 : vector<8xf32> to vector<8x1xf32>
    %378 = tpu.reciprocal %377 {approx = true} : vector<8x1xf32> -> vector<8x1xf32>
    %379 = vector.broadcast %378 : vector<8x1xf32> to vector<8x8xf32>
    %380 = arith.mulf %375, %379 : vector<8x8xf32>
    %cst_162 = arith.constant dense<0.000000e+00> : vector<8x16xf32>
    %381 = tpu.matmul %380, %367, %cst_162 {dimension_numbers = #tpu.dot_dimension_numbers<[1], [0], [0], [1], [0, 0, 1, 1], [], []>} : vector<8x8xf32>, vector<8x16xf32>, vector<8x16xf32> -> vector<8x16xf32>
    %c0_163 = arith.constant 0 : index
    %c16_164 = arith.constant 16 : index
    %382 = vector.load %arg43[%c0_163, %c16_164] : memref<16x32xf32, #tpu.memory_space<vmem>>, vector<8x16xf32>
    tpu.vector_store %arg43[%c0_163, %c16_164], %381 {strides = array<i32>} : memref<16x32xf32, #tpu.memory_space<vmem>>, vector<8x16xf32>,
    %383 = vector.extract_strided_slice %336 {offsets = [8, 0], sizes = [8, 32], strides = [1, 1]} : vector<16x32xf32> to vector<8x32xf32>
    %384 = vector.extract_strided_slice %342 {offsets = [8, 0], sizes = [8, 32], strides = [1, 1]} : vector<16x32xf32> to vector<8x32xf32>
    %385 = vector.extract_strided_slice %343 {offsets = [8, 0], sizes = [8, 32], strides = [1, 1]} : vector<16x32xf32> to vector<8x32xf32>
    %386 = vector.extract_strided_slice %383 {offsets = [0, 0], sizes = [8, 16], strides = [1, 1]} : vector<8x32xf32> to vector<8x16xf32>
    %387 = vector.extract_strided_slice %384 {offsets = [0, 0], sizes = [8, 16], strides = [1, 1]} : vector<8x32xf32> to vector<8x16xf32>
    %388 = vector.extract_strided_slice %385 {offsets = [0, 0], sizes = [8, 16], strides = [1, 1]} : vector<8x32xf32> to vector<8x16xf32>
    %cst_165 = arith.constant dense<0.000000e+00> : vector<8x8xf32>
    %389 = tpu.matmul %386, %387, %cst_165 {dimension_numbers = #tpu.dot_dimension_numbers<[1], [1], [0], [0], [0, 0, 1, 0], [], []>} : vector<8x16xf32>, vector<8x16xf32>, vector<8x8xf32> -> vector<8x8xf32>
    %cst_166 = arith.constant 2.500000e-01 : f32
    %390 = vector.broadcast %cst_166 : f32 to vector<8x8xf32>
    %391 = arith.mulf %389, %390 : vector<8x8xf32>
    %cst_167 = arith.constant dense<0xFF800000> : vector<8xf32>
    %392 = vector.multi_reduction <maximumf>, %391, %cst_167 [1] : vector<8x8xf32> to vector<8xf32>
    %393 = vector.shape_cast %392 : vector<8xf32> to vector<8x1xf32>
    %394 = vector.broadcast %393 : vector<8x1xf32> to vector<8x8xf32>
    %395 = arith.subf %391, %394 : vector<8x8xf32>
    %396 = math.exp %395 : vector<8x8xf32>
    %cst_168 = arith.constant dense<0.000000e+00> : vector<8xf32>
    %397 = vector.multi_reduction <add>, %396, %cst_168 [1] : vector<8x8xf32> to vector<8xf32>
    %398 = vector.shape_cast %397 : vector<8xf32> to vector<8x1xf32>
    %399 = tpu.reciprocal %398 {approx = true} : vector<8x1xf32> -> vector<8x1xf32>
    %400 = vector.broadcast %399 : vector<8x1xf32> to vector<8x8xf32>
    %401 = arith.mulf %396, %400 : vector<8x8xf32>
    %cst_169 = arith.constant dense<0.000000e+00> : vector<8x16xf32>
    %402 = tpu.matmul %401, %388, %cst_169 {dimension_numbers = #tpu.dot_dimension_numbers<[1], [0], [0], [1], [0, 0, 1, 1], [], []>} : vector<8x8xf32>, vector<8x16xf32>, vector<8x16xf32> -> vector<8x16xf32>
    %c8_170 = arith.constant 8 : index
    %c0_171 = arith.constant 0 : index
    %403 = vector.load %arg43[%c8_170, %c0_171] : memref<16x32xf32, #tpu.memory_space<vmem>>, vector<8x16xf32>
    tpu.vector_store %arg43[%c8_170, %c0_171], %402 {strides = array<i32>} : memref<16x32xf32, #tpu.memory_space<vmem>>, vector<8x16xf32>,
    %404 = vector.extract_strided_slice %383 {offsets = [0, 16], sizes = [8, 16], strides = [1, 1]} : vector<8x32xf32> to vector<8x16xf32>
    %405 = vector.extract_strided_slice %384 {offsets = [0, 16], sizes = [8, 16], strides = [1, 1]} : vector<8x32xf32> to vector<8x16xf32>
    %406 = vector.extract_strided_slice %385 {offsets = [0, 16], sizes = [8, 16], strides = [1, 1]} : vector<8x32xf32> to vector<8x16xf32>
    %cst_172 = arith.constant dense<0.000000e+00> : vector<8x8xf32>
    %407 = tpu.matmul %404, %405, %cst_172 {dimension_numbers = #tpu.dot_dimension_numbers<[1], [1], [0], [0], [0, 0, 1, 0], [], []>} : vector<8x16xf32>, vector<8x16xf32>, vector<8x8xf32> -> vector<8x8xf32>
    %cst_173 = arith.constant 2.500000e-01 : f32
    %408 = vector.broadcast %cst_173 : f32 to vector<8x8xf32>
    %409 = arith.mulf %407, %408 : vector<8x8xf32>
    %cst_174 = arith.constant dense<0xFF800000> : vector<8xf32>
    %410 = vector.multi_reduction <maximumf>, %409, %cst_174 [1] : vector<8x8xf32> to vector<8xf32>
    %411 = vector.shape_cast %410 : vector<8xf32> to vector<8x1xf32>
    %412 = vector.broadcast %411 : vector<8x1xf32> to vector<8x8xf32>
    %413 = arith.subf %409, %412 : vector<8x8xf32>
    %414 = math.exp %413 : vector<8x8xf32>
    %cst_175 = arith.constant dense<0.000000e+00> : vector<8xf32>
    %415 = vector.multi_reduction <add>, %414, %cst_175 [1] : vector<8x8xf32> to vector<8xf32>
    %416 = vector.shape_cast %415 : vector<8xf32> to vector<8x1xf32>
    %417 = tpu.reciprocal %416 {approx = true} : vector<8x1xf32> -> vector<8x1xf32>
    %418 = vector.broadcast %417 : vector<8x1xf32> to vector<8x8xf32>
    %419 = arith.mulf %414, %418 : vector<8x8xf32>
    %cst_176 = arith.constant dense<0.000000e+00> : vector<8x16xf32>
    %420 = tpu.matmul %419, %406, %cst_176 {dimension_numbers = #tpu.dot_dimension_numbers<[1], [0], [0], [1], [0, 0, 1, 1], [], []>} : vector<8x8xf32>, vector<8x16xf32>, vector<8x16xf32> -> vector<8x16xf32>
    %c8_177 = arith.constant 8 : index
    %c16_178 = arith.constant 16 : index
    %421 = vector.load %arg43[%c8_177, %c16_178] : memref<16x32xf32, #tpu.memory_space<vmem>>, vector<8x16xf32>
    tpu.vector_store %arg43[%c8_177, %c16_178], %420 {strides = array<i32>} : memref<16x32xf32, #tpu.memory_space<vmem>>, vector<8x16xf32>,
    %c0_179 = arith.constant 0 : index
    %c0_180 = arith.constant 0 : index
    %422 = vector.load %arg43[%c0_179, %c0_180] : memref<16x32xf32, #tpu.memory_space<vmem>>, vector<16x32xf32>
    %c0_181 = arith.constant 0 : index
    %c0_182 = arith.constant 0 : index
    %423 = vector.load %arg28[%c0_181, %c0_182] : memref<32x32xf32, #tpu.memory_space<vmem>>, vector<32x32xf32>
    %cst_183 = arith.constant dense<0.000000e+00> : vector<16x32xf32>
    %424 = tpu.matmul %422, %423, %cst_183 {dimension_numbers = #tpu.dot_dimension_numbers<[1], [0], [0], [1], [0, 0, 1, 1], [], []>} : vector<16x32xf32>, vector<32x32xf32>, vector<16x32xf32> -> vector<16x32xf32>
    %c0_184 = arith.constant 0 : index
    %c0_185 = arith.constant 0 : index
    %425 = vector.load %arg29[%c0_184, %c0_185] : memref<1x32xf32, #tpu.memory_space<vmem>>, vector<1x32xf32>
    %426 = vector.broadcast %425 : vector<1x32xf32> to vector<16x32xf32>
    %427 = arith.addf %424, %426 : vector<16x32xf32>
    %428 = arith.addf %331, %427 : vector<16x32xf32>
    %c0_186 = arith.constant 0 : index
    %c0_187 = arith.constant 0 : index
    %429 = vector.load %arg30[%c0_186, %c0_187] : memref<1x32xf32, #tpu.memory_space<vmem>>, vector<1x32xf32>
    %c0_188 = arith.constant 0 : index
    %c0_189 = arith.constant 0 : index
    %430 = vector.load %arg31[%c0_188, %c0_189] : memref<1x32xf32, #tpu.memory_space<vmem>>, vector<1x32xf32>
    %cst_190 = arith.constant dense<0.000000e+00> : vector<16xf32>
    %431 = vector.multi_reduction <add>, %428, %cst_190 [1] : vector<16x32xf32> to vector<16xf32>
    %432 = vector.shape_cast %431 : vector<16xf32> to vector<16x1xf32>
    %cst_191 = arith.constant 3.200000e+01 : f32
    %433 = vector.broadcast %cst_191 : f32 to vector<16x1xf32>
    %434 = arith.divf %432, %433 : vector<16x1xf32>
    %435 = vector.broadcast %434 : vector<16x1xf32> to vector<16x32xf32>
    %436 = arith.subf %428, %435 : vector<16x32xf32>
    %437 = arith.mulf %436, %436 : vector<16x32xf32>
    %cst_192 = arith.constant dense<0.000000e+00> : vector<16xf32>
    %438 = vector.multi_reduction <add>, %437, %cst_192 [1] : vector<16x32xf32> to vector<16xf32>
    %439 = vector.shape_cast %438 : vector<16xf32> to vector<16x1xf32>
    %cst_193 = arith.constant 3.200000e+01 : f32
    %440 = vector.broadcast %cst_193 : f32 to vector<16x1xf32>
    %441 = arith.divf %439, %440 : vector<16x1xf32>
    %cst_194 = arith.constant 9.99999974E-6 : f32
    %442 = vector.broadcast %cst_194 : f32 to vector<16x1xf32>
    %443 = arith.addf %441, %442 : vector<16x1xf32>
    %444 = math.rsqrt %443 : vector<16x1xf32>
    %445 = vector.broadcast %444 : vector<16x1xf32> to vector<16x32xf32>
    %446 = arith.mulf %436, %445 : vector<16x32xf32>
    %447 = vector.broadcast %429 : vector<1x32xf32> to vector<16x32xf32>
    %448 = arith.mulf %446, %447 : vector<16x32xf32>
    %449 = vector.broadcast %430 : vector<1x32xf32> to vector<16x32xf32>
    %450 = arith.addf %448, %449 : vector<16x32xf32>
    %c0_195 = arith.constant 0 : index
    %c0_196 = arith.constant 0 : index
    %451 = vector.load %arg32[%c0_195, %c0_196] : memref<32x64xf32, #tpu.memory_space<vmem>>, vector<32x64xf32>
    %cst_197 = arith.constant dense<0.000000e+00> : vector<16x64xf32>
    %452 = tpu.matmul %450, %451, %cst_197 {dimension_numbers = #tpu.dot_dimension_numbers<[1], [0], [0], [1], [0, 0, 1, 1], [], []>} : vector<16x32xf32>, vector<32x64xf32>, vector<16x64xf32> -> vector<16x64xf32>
    %c0_198 = arith.constant 0 : index
    %c0_199 = arith.constant 0 : index
    %453 = vector.load %arg33[%c0_198, %c0_199] : memref<1x64xf32, #tpu.memory_space<vmem>>, vector<1x64xf32>
    %454 = vector.broadcast %453 : vector<1x64xf32> to vector<16x64xf32>
    %455 = arith.addf %452, %454 : vector<16x64xf32>
    %456 = arith.mulf %455, %455 : vector<16x64xf32>
    %457 = arith.mulf %455, %456 : vector<16x64xf32>
    %cst_200 = arith.constant 4.471500e-02 : f32
    %458 = vector.broadcast %cst_200 : f32 to vector<16x64xf32>
    %459 = arith.mulf %458, %457 : vector<16x64xf32>
    %460 = arith.addf %455, %459 : vector<16x64xf32>
    %cst_201 = arith.constant 0.797884583 : f32
    %461 = vector.broadcast %cst_201 : f32 to vector<16x64xf32>
    %462 = arith.mulf %461, %460 : vector<16x64xf32>
    %463 = math.tanh %462 : vector<16x64xf32>
    %cst_202 = arith.constant 1.000000e+00 : f32
    %464 = vector.broadcast %cst_202 : f32 to vector<16x64xf32>
    %465 = arith.addf %464, %463 : vector<16x64xf32>
    %cst_203 = arith.constant 5.000000e-01 : f32
    %466 = vector.broadcast %cst_203 : f32 to vector<16x64xf32>
    %467 = arith.mulf %466, %465 : vector<16x64xf32>
    %468 = arith.mulf %455, %467 : vector<16x64xf32>
    %c0_204 = arith.constant 0 : index
    %c0_205 = arith.constant 0 : index
    %469 = vector.load %arg34[%c0_204, %c0_205] : memref<64x32xf32, #tpu.memory_space<vmem>>, vector<64x32xf32>
    %cst_206 = arith.constant dense<0.000000e+00> : vector<16x32xf32>
    %470 = tpu.matmul %468, %469, %cst_206 {dimension_numbers = #tpu.dot_dimension_numbers<[1], [0], [0], [1], [0, 0, 1, 1], [], []>} : vector<16x64xf32>, vector<64x32xf32>, vector<16x32xf32> -> vector<16x32xf32>
    %c0_207 = arith.constant 0 : index
    %c0_208 = arith.constant 0 : index
    %471 = vector.load %arg35[%c0_207, %c0_208] : memref<1x32xf32, #tpu.memory_space<vmem>>, vector<1x32xf32>
    %472 = vector.broadcast %471 : vector<1x32xf32> to vector<16x32xf32>
    %473 = arith.addf %470, %472 : vector<16x32xf32>
    %474 = arith.addf %450, %473 : vector<16x32xf32>
    %c0_209 = arith.constant 0 : index
    %c0_210 = arith.constant 0 : index
    %475 = vector.load %arg36[%c0_209, %c0_210] : memref<1x32xf32, #tpu.memory_space<vmem>>, vector<1x32xf32>
    %c0_211 = arith.constant 0 : index
    %c0_212 = arith.constant 0 : index
    %476 = vector.load %arg37[%c0_211, %c0_212] : memref<1x32xf32, #tpu.memory_space<vmem>>, vector<1x32xf32>
    %cst_213 = arith.constant dense<0.000000e+00> : vector<16xf32>
    %477 = vector.multi_reduction <add>, %474, %cst_213 [1] : vector<16x32xf32> to vector<16xf32>
    %478 = vector.shape_cast %477 : vector<16xf32> to vector<16x1xf32>
    %cst_214 = arith.constant 3.200000e+01 : f32
    %479 = vector.broadcast %cst_214 : f32 to vector<16x1xf32>
    %480 = arith.divf %478, %479 : vector<16x1xf32>
    %481 = vector.broadcast %480 : vector<16x1xf32> to vector<16x32xf32>
    %482 = arith.subf %474, %481 : vector<16x32xf32>
    %483 = arith.mulf %482, %482 : vector<16x32xf32>
    %cst_215 = arith.constant dense<0.000000e+00> : vector<16xf32>
    %484 = vector.multi_reduction <add>, %483, %cst_215 [1] : vector<16x32xf32> to vector<16xf32>
    %485 = vector.shape_cast %484 : vector<16xf32> to vector<16x1xf32>
    %cst_216 = arith.constant 3.200000e+01 : f32
    %486 = vector.broadcast %cst_216 : f32 to vector<16x1xf32>
    %487 = arith.divf %485, %486 : vector<16x1xf32>
    %cst_217 = arith.constant 9.99999974E-6 : f32
    %488 = vector.broadcast %cst_217 : f32 to vector<16x1xf32>
    %489 = arith.addf %487, %488 : vector<16x1xf32>
    %490 = math.rsqrt %489 : vector<16x1xf32>
    %491 = vector.broadcast %490 : vector<16x1xf32> to vector<16x32xf32>
    %492 = arith.mulf %482, %491 : vector<16x32xf32>
    %493 = vector.broadcast %475 : vector<1x32xf32> to vector<16x32xf32>
    %494 = arith.mulf %492, %493 : vector<16x32xf32>
    %495 = vector.broadcast %476 : vector<1x32xf32> to vector<16x32xf32>
    %496 = arith.addf %494, %495 : vector<16x32xf32>
    %c0_218 = arith.constant 0 : index
    %c0_219 = arith.constant 0 : index
    %497 = vector.load %arg40[%c0_218, %c0_219] : memref<16x32xf32, #tpu.memory_space<vmem>>, vector<16x32xf32>
    tpu.vector_store %arg40[%c0_218, %c0_219], %496 {strides = array<i32>} : memref<16x32xf32, #tpu.memory_space<vmem>>, vector<16x32xf32>,
    %c0_220 = arith.constant 0 : index
    %c0_221 = arith.constant 0 : index
    %498 = vector.load %arg38[%c0_220, %c0_221] : memref<64x32xf32, #tpu.memory_space<vmem>>, vector<64x32xf32>
    %cst_222 = arith.constant dense<0.000000e+00> : vector<16x64xf32>
    %499 = tpu.matmul %496, %498, %cst_222 {dimension_numbers = #tpu.dot_dimension_numbers<[1], [1], [0], [0], [0, 0, 1, 0], [], []>} : vector<16x32xf32>, vector<64x32xf32>, vector<16x64xf32> -> vector<16x64xf32>
    %c0_223 = arith.constant 0 : index
    %c0_224 = arith.constant 0 : index
    %500 = vector.load %arg39[%c0_223, %c0_224] : memref<1x64xf32, #tpu.memory_space<vmem>>, vector<1x64xf32>
    %501 = vector.broadcast %500 : vector<1x64xf32> to vector<16x64xf32>
    %502 = arith.addf %499, %501 : vector<16x64xf32>
    %c0_225 = arith.constant 0 : index
    %c0_226 = arith.constant 0 : index
    %503 = vector.load %arg41[%c0_225, %c0_226] : memref<16x64xf32, #tpu.memory_space<vmem>>, vector<16x64xf32>
    tpu.vector_store %arg41[%c0_225, %c0_226], %502 {strides = array<i32>} : memref<16x64xf32, #tpu.memory_space<vmem>>, vector<16x64xf32>,
    return
  }
}

</mosaic_0001>

<llo_original>
// kernel: tpu_custom_call.1
$region0: #{tpu_custom_call.1}
  #allocation0 [shape = 'u32[]', space=smem, size = 0x4, offset = 0x4, fixed_abs, tag = 'smem constant byte address 0x4 - core index']
  #allocation1 [shape = 'u32[144,128]{1,0:T(1,128)}', space=vmem, size = 0x12000, scoped, tag = 'internal scratch']
  #allocation2 [shape = 'f32[16,32]{1,0:T(8,128)}', space=vmem, size = 0x2000, scoped, tag = 'scratch operand']
  #allocation3 [shape = 'f32[16,32]{1,0:T(8,128)}', space=vmem, size = 0x2000, scoped, tag = 'scratch operand']
  %s0 = inlined_call_operand.smem [shape: u32[42], index: -1, kind: input, shape index: {}]
  %s1 = sld [smem:[%s0]]
  %s2 = scalar_lea.smem %s0, 1
  %s3 = sld [smem:[%s2]]
  %s4 = scalar_lea.smem %s0, 2
  %s5 = sld [smem:[%s4]]
  %s6 = scalar_lea.smem %s0, 3
  %s7 = sld [smem:[%s6]]
  %s8 = scalar_lea.smem %s0, 4
  %s9 = sld [smem:[%s8]]
  %s10 = scalar_lea.smem %s0, 5
  %s11 = sld [smem:[%s10]]
  %s12 = scalar_lea.smem %s0, 6
  %s13 = sld [smem:[%s12]]
  %s14 = scalar_lea.smem %s0, 7
  %s15 = sld [smem:[%s14]]
  %s16 = scalar_lea.smem %s0, 8
  %s17 = sld [smem:[%s16]]
  %s18 = scalar_lea.smem %s0, 9
  %s19 = sld [smem:[%s18]]
  %s20 = scalar_lea.smem %s0, 10
  %s21 = sld [smem:[%s20]]
  %s22 = scalar_lea.smem %s0, 11
  %s23 = sld [smem:[%s22]]
  %s24 = scalar_lea.smem %s0, 12
  %s25 = sld [smem:[%s24]]
  %s26 = scalar_lea.smem %s0, 13
  %s27 = sld [smem:[%s26]]
  %s28 = scalar_lea.smem %s0, 14
  %s29 = sld [smem:[%s28]]
  %s30 = scalar_lea.smem %s0, 15
  %s31 = sld [smem:[%s30]]
  %s32 = scalar_lea.smem %s0, 16
  %s33 = sld [smem:[%s32]]
  %s34 = scalar_lea.smem %s0, 17
  %s35 = sld [smem:[%s34]]
  %s36 = scalar_lea.smem %s0, 18
  %s37 = sld [smem:[%s36]]
  %s38 = scalar_lea.smem %s0, 19
  %s39 = sld [smem:[%s38]]
  %s40 = scalar_lea.smem %s0, 20
  %s41 = sld [smem:[%s40]]
  %s42 = scalar_lea.smem %s0, 21
  %s43 = sld [smem:[%s42]]
  %s44 = scalar_lea.smem %s0, 22
  %s45 = sld [smem:[%s44]]
  %s46 = scalar_lea.smem %s0, 23
  %s47 = sld [smem:[%s46]]
  %s48 = scalar_lea.smem %s0, 24
  %s49 = sld [smem:[%s48]]
  %s50 = scalar_lea.smem %s0, 25
  %s51 = sld [smem:[%s50]]
  %s52 = scalar_lea.smem %s0, 26
  %s53 = sld [smem:[%s52]]
  %s54 = scalar_lea.smem %s0, 27
  %s55 = sld [smem:[%s54]]
  %s56 = scalar_lea.smem %s0, 28
  %s57 = sld [smem:[%s56]]
  %s58 = scalar_lea.smem %s0, 29
  %s59 = sld [smem:[%s58]]
  %s60 = scalar_lea.smem %s0, 30
  %s61 = sld [smem:[%s60]]
  %s62 = scalar_lea.smem %s0, 31
  %s63 = sld [smem:[%s62]]
  %s64 = scalar_lea.smem %s0, 32
  %s65 = sld [smem:[%s64]]
  %s66 = scalar_lea.smem %s0, 33
  %s67 = sld [smem:[%s66]]
  %s68 = scalar_lea.smem %s0, 34
  %s69 = sld [smem:[%s68]]
  %s70 = scalar_lea.smem %s0, 35
  %s71 = sld [smem:[%s70]]
  %s72 = scalar_lea.smem %s0, 36
  %s73 = sld [smem:[%s72]]
  %s74 = scalar_lea.smem %s0, 37
  %s75 = sld [smem:[%s74]]
  %s76 = scalar_lea.smem %s0, 38
  %s77 = sld [smem:[%s76]]
  %s78 = scalar_lea.smem %s0, 39
  %s79 = sld [smem:[%s78]]
  %s80 = scalar_lea.smem %s0, 40
  %s81 = sld [smem:[%s80]]
  %s82 = scalar_lea.smem %s0, 41
  %s83 = sld [smem:[%s82]]
  %84 = xla_tuple %s81, %s83
  %s85 = sld [smem:[#allocation0]]
  $region250: #{tpu_custom_call.1} parent=0
    _
  %s87 = ssub.s32 1, %s85
  %s88 = scalar_select 0, %s87, %s85
  $region1: #{tpu_custom_call.1} parent=0
    #allocation4 [shape = 'u8[8192]{0}', space=vmem, size = 0x2000, scoped, tag = 'input window, operand 0, single buffered']
    #allocation5 [shape = 's32[1]{0}', space=sflag, size = 0x4, scoped, tag = 'scoped memory for tpu_custom_call.1']
    #allocation6 [shape = 's32[1]{0}', space=sflag, size = 0x4, scoped, tag = 'scoped memory for tpu_custom_call.1']
    #allocation7 [shape = 'u8[8192]{0}', space=vmem, size = 0x2000, scoped, tag = 'input window, operand 1, single buffered']
    #allocation8 [shape = 's32[1]{0}', space=sflag, size = 0x4, scoped, tag = 'scoped memory for tpu_custom_call.1']
    #allocation9 [shape = 'u8[512]{0}', space=vmem, size = 0x400, scoped, tag = 'input window, operand 5, single buffered']
    #allocation10 [shape = 'u8[512]{0}', space=vmem, size = 0x400, scoped, tag = 'input window, operand 7, single buffered']
    #allocation11 [shape = 's32[1]{0}', space=sflag, size = 0x4, scoped, tag = 'scoped memory for tpu_custom_call.1']
    #allocation12 [shape = 'u8[512]{0}', space=vmem, size = 0x400, scoped, tag = 'input window, operand 8, single buffered']
    #allocation13 [shape = 'u8[512]{0}', space=vmem, size = 0x400, scoped, tag = 'input window, operand 9, single buffered']
    #allocation14 [shape = 's32[1]{0}', space=sflag, size = 0x4, scoped, tag = 'scoped memory for tpu_custom_call.1']
    #allocation15 [shape = 'u8[512]{0}', space=vmem, size = 0x400, scoped, tag = 'input window, operand 11, single buffered']
    #allocation16 [shape = 'u8[512]{0}', space=vmem, size = 0x400, scoped, tag = 'input window, operand 13, single buffered']
    #allocation17 [shape = 's32[1]{0}', space=sflag, size = 0x4, scoped, tag = 'scoped memory for tpu_custom_call.1']
    #allocation18 [shape = 'u8[512]{0}', space=vmem, size = 0x400, scoped, tag = 'input window, operand 14, single buffered']
    #allocation19 [shape = 'u8[512]{0}', space=vmem, size = 0x400, scoped, tag = 'input window, operand 15, single buffered']
    #allocation20 [shape = 's32[1]{0}', space=sflag, size = 0x4, scoped, tag = 'scoped memory for tpu_custom_call.1']
    #allocation21 [shape = 'u8[512]{0}', space=vmem, size = 0x400, scoped, tag = 'input window, operand 16, single buffered']
    #allocation22 [shape = 'u8[512]{0}', space=vmem, size = 0x400, scoped, tag = 'input window, operand 17, single buffered']
    #allocation23 [shape = 's32[1]{0}', space=sflag, size = 0x4, scoped, tag = 'scoped memory for tpu_custom_call.1']
    #allocation24 [shape = 'u8[512]{0}', space=vmem, size = 0x400, scoped, tag = 'input window, operand 19, single buffered']
    #allocation25 [shape = 'u8[512]{0}', space=vmem, size = 0x400, scoped, tag = 'input window, operand 21, single buffered']
    #allocation26 [shape = 's32[1]{0}', space=sflag, size = 0x4, scoped, tag = 'scoped memory for tpu_custom_call.1']
    #allocation27 [shape = 'u8[512]{0}', space=vmem, size = 0x400, scoped, tag = 'input window, operand 22, single buffered']
    #allocation28 [shape = 'u8[512]{0}', space=vmem, size = 0x400, scoped, tag = 'input window, operand 23, single buffered']
    #allocation29 [shape = 's32[1]{0}', space=sflag, size = 0x4, scoped, tag = 'scoped memory for tpu_custom_call.1']
    #allocation30 [shape = 'u8[512]{0}', space=vmem, size = 0x400, scoped, tag = 'input window, operand 25, single buffered']
    #allocation31 [shape = 'u8[512]{0}', space=vmem, size = 0x400, scoped, tag = 'input window, operand 27, single buffered']
    #allocation32 [shape = 's32[1]{0}', space=sflag, size = 0x4, scoped, tag = 'scoped memory for tpu_custom_call.1']
    #allocation33 [shape = 'u8[8192]{0}', space=vmem, size = 0x2000, scoped, tag = 'output window, operand 0, single buffered']
    #allocation34 [shape = 'u8[8192]{0}', space=vmem, size = 0x2000, scoped, tag = 'output window, operand 1, single buffered']
    #allocation35 [shape = 's32[1]{0}', space=sflag, size = 0x4, scoped, tag = 'scoped memory for tpu_custom_call.1']
    %89 = vsyncpa [#allocation5], 0
    %90 = vsyncpa [#allocation8], 0
    %91 = vsyncpa [#allocation11], 0
    %92 = vsyncpa [#allocation14], 0
    %93 = vsyncpa [#allocation17], 0
    %94 = vsyncpa [#allocation20], 0
    %95 = vsyncpa [#allocation23], 0
    %96 = vsyncpa [#allocation26], 0
    %97 = vsyncpa [#allocation29], 0
    %98 = vsyncpa [#allocation32], 0
    %99 = vsyncpa [#allocation6], 0
    %100 = vsyncpa [#allocation35], 0
    // Predicated region
    $region2: #{tpu_custom_call.1} parent=1 // pred_check
      _
    $region3: #{tpu_custom_call.1} parent=1 // pred_check_branch
      %102 = sbr.rel (0) target = $region5
    $region4: #{tpu_custom_call.1} parent=1 // pred_region
      %s104 = ssub.s32 256, 256
      %105 = vsyncadd [#allocation5], %s104
      %s106 = sshll.u32 [#allocation4], 4
      %s107 = int_to_ptr.vmem [resolvable:$true] %s106
      %112 = dma.hbm_to_vmem [thread:$0]  %s1, 256, %s107, [#allocation5], 128, 128, 8
    $region5: #{tpu_custom_call.1} parent=1 // pred_fallthru
      _
    // Predicated region
    $region6: #{tpu_custom_call.1} parent=1 // pred_check
      _
    $region7: #{tpu_custom_call.1} parent=1 // pred_check_branch
      %114 = sbr.rel (0) target = $region9
    $region8: #{tpu_custom_call.1} parent=1 // pred_region
      %s116 = ssub.s32 256, 256
      %117 = vsyncadd [#allocation8], %s116
      %s118 = sshll.u32 [#allocation7], 4
      %s119 = int_to_ptr.vmem [resolvable:$true] %s118
      %124 = dma.hbm_to_vmem [thread:$0]  %s3, 256, %s119, [#allocation8], 128, 128, 8
    $region9: #{tpu_custom_call.1} parent=1 // pred_fallthru
      _
    // Predicated region
    $region10: #{tpu_custom_call.1} parent=1 // pred_check
      _
    $region11: #{tpu_custom_call.1} parent=1 // pred_check_branch
      %126 = sbr.rel (0) target = $region13
    $region12: #{tpu_custom_call.1} parent=1 // pred_region
      _
    $region13: #{tpu_custom_call.1} parent=1 // pred_fallthru
      _
    // Predicated region
    $region14: #{tpu_custom_call.1} parent=1 // pred_check
      _
    $region15: #{tpu_custom_call.1} parent=1 // pred_check_branch
      %128 = sbr.rel (0) target = $region17
    $region16: #{tpu_custom_call.1} parent=1 // pred_region
      _
    $region17: #{tpu_custom_call.1} parent=1 // pred_fallthru
      _
    // Predicated region
    $region18: #{tpu_custom_call.1} parent=1 // pred_check
      _
    $region19: #{tpu_custom_call.1} parent=1 // pred_check_branch
      %130 = sbr.rel (0) target = $region21
    $region20: #{tpu_custom_call.1} parent=1 // pred_region
      _
    $region21: #{tpu_custom_call.1} parent=1 // pred_fallthru
      _
    // Predicated region
    $region22: #{tpu_custom_call.1} parent=1 // pred_check
      _
    $region23: #{tpu_custom_call.1} parent=1 // pred_check_branch
      %132 = sbr.rel (0) target = $region25
    $region24: #{tpu_custom_call.1} parent=1 // pred_region
      %s134 = ssub.s32 16, 16
      %135 = vsyncadd [#allocation8], %s134
      %s137 = sshll.u32 [#allocation9], 4
      %s138 = int_to_ptr.vmem [resolvable:$true] %s137
      %140 = dma.hbm_to_vmem [thread:$0]  %s11, 16, %s138, [#allocation8]
    $region25: #{tpu_custom_call.1} parent=1 // pred_fallthru
      _
    // Predicated region
    $region26: #{tpu_custom_call.1} parent=1 // pred_check
      _
    $region27: #{tpu_custom_call.1} parent=1 // pred_check_branch
      %142 = sbr.rel (0) target = $region29
    $region28: #{tpu_custom_call.1} parent=1 // pred_region
      _
    $region29: #{tpu_custom_call.1} parent=1 // pred_fallthru
      _
    // Predicated region
    $region30: #{tpu_custom_call.1} parent=1 // pred_check
      _
    $region31: #{tpu_custom_call.1} parent=1 // pred_check_branch
      %144 = sbr.rel (0) target = $region33
    $region32: #{tpu_custom_call.1} parent=1 // pred_region
      %s146 = ssub.s32 16, 16
      %147 = vsyncadd [#allocation11], %s146
      %s149 = sshll.u32 [#allocation10], 4
      %s150 = int_to_ptr.vmem [resolvable:$true] %s149
      %152 = dma.hbm_to_vmem [thread:$0]  %s15, 16, %s150, [#allocation11]
    $region33: #{tpu_custom_call.1} parent=1 // pred_fallthru
      _
    // Predicated region
    $region34: #{tpu_custom_call.1} parent=1 // pred_check
      _
    $region35: #{tpu_custom_call.1} parent=1 // pred_check_branch
      %154 = sbr.rel (0) target = $region37
    $region36: #{tpu_custom_call.1} parent=1 // pred_region
      %s156 = ssub.s32 16, 16
      %157 = vsyncadd [#allocation11], %s156
      %s159 = sshll.u32 [#allocation12], 4
      %s160 = int_to_ptr.vmem [resolvable:$true] %s159
      %162 = dma.hbm_to_vmem [thread:$0]  %s17, 16, %s160, [#allocation11]
    $region37: #{tpu_custom_call.1} parent=1 // pred_fallthru
      _
    // Predicated region
    $region38: #{tpu_custom_call.1} parent=1 // pred_check
      _
    $region39: #{tpu_custom_call.1} parent=1 // pred_check_branch
      %164 = sbr.rel (0) target = $region41
    $region40: #{tpu_custom_call.1} parent=1 // pred_region
      %s166 = ssub.s32 16, 16
      %167 = vsyncadd [#allocation14], %s166
      %s169 = sshll.u32 [#allocation13], 4
      %s170 = int_to_ptr.vmem [resolvable:$true] %s169
      %172 = dma.hbm_to_vmem [thread:$0]  %s19, 16, %s170, [#allocation14]
    $region41: #{tpu_custom_call.1} parent=1 // pred_fallthru
      _
    // Predicated region
    $region42: #{tpu_custom_call.1} parent=1 // pred_check
      _
    $region43: #{tpu_custom_call.1} parent=1 // pred_check_branch
      %174 = sbr.rel (0) target = $region45
    $region44: #{tpu_custom_call.1} parent=1 // pred_region
      _
    $region45: #{tpu_custom_call.1} parent=1 // pred_fallthru
      _
    // Predicated region
    $region46: #{tpu_custom_call.1} parent=1 // pred_check
      _
    $region47: #{tpu_custom_call.1} parent=1 // pred_check_branch
      %176 = sbr.rel (0) target = $region49
    $region48: #{tpu_custom_call.1} parent=1 // pred_region
      %s178 = ssub.s32 16, 16
      %179 = vsyncadd [#allocation14], %s178
      %s181 = sshll.u32 [#allocation15], 4
      %s182 = int_to_ptr.vmem [resolvable:$true] %s181
      %184 = dma.hbm_to_vmem [thread:$0]  %s23, 16, %s182, [#allocation14]
    $region49: #{tpu_custom_call.1} parent=1 // pred_fallthru
      _
    // Predicated region
    $region50: #{tpu_custom_call.1} parent=1 // pred_check
      _
    $region51: #{tpu_custom_call.1} parent=1 // pred_check_branch
      %186 = sbr.rel (0) target = $region53
    $region52: #{tpu_custom_call.1} parent=1 // pred_region
      _
    $region53: #{tpu_custom_call.1} parent=1 // pred_fallthru
      _
    // Predicated region
    $region54: #{tpu_custom_call.1} parent=1 // pred_check
      _
    $region55: #{tpu_custom_call.1} parent=1 // pred_check_branch
      %188 = sbr.rel (0) target = $region57
    $region56: #{tpu_custom_call.1} parent=1 // pred_region
      %s190 = ssub.s32 16, 16
      %191 = vsyncadd [#allocation17], %s190
      %s193 = sshll.u32 [#allocation16], 4
      %s194 = int_to_ptr.vmem [resolvable:$true] %s193
      %196 = dma.hbm_to_vmem [thread:$0]  %s27, 16, %s194, [#allocation17]
    $region57: #{tpu_custom_call.1} parent=1 // pred_fallthru
      _
    // Predicated region
    $region58: #{tpu_custom_call.1} parent=1 // pred_check
      _
    $region59: #{tpu_custom_call.1} parent=1 // pred_check_branch
      %198 = sbr.rel (0) target = $region61
    $region60: #{tpu_custom_call.1} parent=1 // pred_region
      %s200 = ssub.s32 16, 16
      %201 = vsyncadd [#allocation17], %s200
      %s203 = sshll.u32 [#allocation18], 4
      %s204 = int_to_ptr.vmem [resolvable:$true] %s203
      %206 = dma.hbm_to_vmem [thread:$0]  %s29, 16, %s204, [#allocation17]
    $region61: #{tpu_custom_call.1} parent=1 // pred_fallthru
      _
    // Predicated region
    $region62: #{tpu_custom_call.1} parent=1 // pred_check
      _
    $region63: #{tpu_custom_call.1} parent=1 // pred_check_branch
      %208 = sbr.rel (0) target = $region65
    $region64: #{tpu_custom_call.1} parent=1 // pred_region
      %s210 = ssub.s32 16, 16
      %211 = vsyncadd [#allocation20], %s210
      %s213 = sshll.u32 [#allocation19], 4
      %s214 = int_to_ptr.vmem [resolvable:$true] %s213
      %216 = dma.hbm_to_vmem [thread:$0]  %s31, 16, %s214, [#allocation20]
    $region65: #{tpu_custom_call.1} parent=1 // pred_fallthru
      _
    // Predicated region
    $region66: #{tpu_custom_call.1} parent=1 // pred_check
      _
    $region67: #{tpu_custom_call.1} parent=1 // pred_check_branch
      %218 = sbr.rel (0) target = $region69
    $region68: #{tpu_custom_call.1} parent=1 // pred_region
      %s220 = ssub.s32 16, 16
      %221 = vsyncadd [#allocation20], %s220
      %s223 = sshll.u32 [#allocation21], 4
      %s224 = int_to_ptr.vmem [resolvable:$true] %s223
      %226 = dma.hbm_to_vmem [thread:$0]  %s33, 16, %s224, [#allocation20]
    $region69: #{tpu_custom_call.1} parent=1 // pred_fallthru
      _
    // Predicated region
    $region70: #{tpu_custom_call.1} parent=1 // pred_check
      _
    $region71: #{tpu_custom_call.1} parent=1 // pred_check_branch
      %228 = sbr.rel (0) target = $region73
    $region72: #{tpu_custom_call.1} parent=1 // pred_region
      %s230 = ssub.s32 16, 16
      %231 = vsyncadd [#allocation23], %s230
      %s233 = sshll.u32 [#allocation22], 4
      %s234 = int_to_ptr.vmem [resolvable:$true] %s233
      %236 = dma.hbm_to_vmem [thread:$0]  %s35, 16, %s234, [#allocation23]
    $region73: #{tpu_custom_call.1} parent=1 // pred_fallthru
      _
    // Predicated region
    $region74: #{tpu_custom_call.1} parent=1 // pred_check
      _
    $region75: #{tpu_custom_call.1} parent=1 // pred_check_branch
      %238 = sbr.rel (0) target = $region77
    $region76: #{tpu_custom_call.1} parent=1 // pred_region
      _
    $region77: #{tpu_custom_call.1} parent=1 // pred_fallthru
      _
    // Predicated region
    $region78: #{tpu_custom_call.1} parent=1 // pred_check
      _
    $region79: #{tpu_custom_call.1} parent=1 // pred_check_branch
      %240 = sbr.rel (0) target = $region81
    $region80: #{tpu_custom_call.1} parent=1 // pred_region
      %s242 = ssub.s32 16, 16
      %243 = vsyncadd [#allocation23], %s242
      %s245 = sshll.u32 [#allocation24], 4
      %s246 = int_to_ptr.vmem [resolvable:$true] %s245
      %248 = dma.hbm_to_vmem [thread:$0]  %s39, 16, %s246, [#allocation23]
    $region81: #{tpu_custom_call.1} parent=1 // pred_fallthru
      _
    // Predicated region
    $region82: #{tpu_custom_call.1} parent=1 // pred_check
      _
    $region83: #{tpu_custom_call.1} parent=1 // pred_check_branch
      %250 = sbr.rel (0) target = $region85
    $region84: #{tpu_custom_call.1} parent=1 // pred_region
      _
    $region85: #{tpu_custom_call.1} parent=1 // pred_fallthru
      _
    // Predicated region
    $region86: #{tpu_custom_call.1} parent=1 // pred_check
      _
    $region87: #{tpu_custom_call.1} parent=1 // pred_check_branch
      %252 = sbr.rel (0) target = $region89
    $region88: #{tpu_custom_call.1} parent=1 // pred_region
      %s254 = ssub.s32 16, 16
      %255 = vsyncadd [#allocation26], %s254
      %s257 = sshll.u32 [#allocation25], 4
      %s258 = int_to_ptr.vmem [resolvable:$true] %s257
      %260 = dma.hbm_to_vmem [thread:$0]  %s43, 16, %s258, [#allocation26]
    $region89: #{tpu_custom_call.1} parent=1 // pred_fallthru
      _
    // Predicated region
    $region90: #{tpu_custom_call.1} parent=1 // pred_check
      _
    $region91: #{tpu_custom_call.1} parent=1 // pred_check_branch
      %262 = sbr.rel (0) target = $region93
    $region92: #{tpu_custom_call.1} parent=1 // pred_region
      %s264 = ssub.s32 16, 16
      %265 = vsyncadd [#allocation26], %s264
      %s267 = sshll.u32 [#allocation27], 4
      %s268 = int_to_ptr.vmem [resolvable:$true] %s267
      %270 = dma.hbm_to_vmem [thread:$0]  %s45, 16, %s268, [#allocation26]
    $region93: #{tpu_custom_call.1} parent=1 // pred_fallthru
      _
    // Predicated region
    $region94: #{tpu_custom_call.1} parent=1 // pred_check
      _
    $region95: #{tpu_custom_call.1} parent=1 // pred_check_branch
      %272 = sbr.rel (0) target = $region97
    $region96: #{tpu_custom_call.1} parent=1 // pred_region
      %s274 = ssub.s32 16, 16
      %275 = vsyncadd [#allocation29], %s274
      %s277 = sshll.u32 [#allocation28], 4
      %s278 = int_to_ptr.vmem [resolvable:$true] %s277
      %280 = dma.hbm_to_vmem [thread:$0]  %s47, 16, %s278, [#allocation29]
    $region97: #{tpu_custom_call.1} parent=1 // pred_fallthru
      _
    // Predicated region
    $region98: #{tpu_custom_call.1} parent=1 // pred_check
      _
    $region99: #{tpu_custom_call.1} parent=1 // pred_check_branch
      %282 = sbr.rel (0) target = $region101
    $region100: #{tpu_custom_call.1} parent=1 // pred_region
      _
    $region101: #{tpu_custom_call.1} parent=1 // pred_fallthru
      _
    // Predicated region
    $region102: #{tpu_custom_call.1} parent=1 // pred_check
      _
    $region103: #{tpu_custom_call.1} parent=1 // pred_check_branch
      %284 = sbr.rel (0) target = $region105
    $region104: #{tpu_custom_call.1} parent=1 // pred_region
      %s286 = ssub.s32 16, 16
      %287 = vsyncadd [#allocation29], %s286
      %s289 = sshll.u32 [#allocation30], 4
      %s290 = int_to_ptr.vmem [resolvable:$true] %s289
      %292 = dma.hbm_to_vmem [thread:$0]  %s51, 16, %s290, [#allocation29]
    $region105: #{tpu_custom_call.1} parent=1 // pred_fallthru
      _
    // Predicated region
    $region106: #{tpu_custom_call.1} parent=1 // pred_check
      _
    $region107: #{tpu_custom_call.1} parent=1 // pred_check_branch
      %294 = sbr.rel (0) target = $region109
    $region108: #{tpu_custom_call.1} parent=1 // pred_region
      _
    $region109: #{tpu_custom_call.1} parent=1 // pred_fallthru
      _
    // Predicated region
    $region110: #{tpu_custom_call.1} parent=1 // pred_check
      _
    $region111: #{tpu_custom_call.1} parent=1 // pred_check_branch
      %296 = sbr.rel (0) target = $region113
    $region112: #{tpu_custom_call.1} parent=1 // pred_region
      %s298 = ssub.s32 16, 16
      %299 = vsyncadd [#allocation32], %s298
      %s301 = sshll.u32 [#allocation31], 4
      %s302 = int_to_ptr.vmem [resolvable:$true] %s301
      %304 = dma.hbm_to_vmem [thread:$0]  %s55, 16, %s302, [#allocation32]
    $region113: #{tpu_custom_call.1} parent=1 // pred_fallthru
      _
    // Predicated region
    $region114: #{tpu_custom_call.1} parent=1 // pred_check
      _
    $region115: #{tpu_custom_call.1} parent=1 // pred_check_branch
      %306 = sbr.rel (0) target = $region117
    $region116: #{tpu_custom_call.1} parent=1 // pred_region
      _
    $region117: #{tpu_custom_call.1} parent=1 // pred_fallthru
      _
    // Predicated region
    $region118: #{tpu_custom_call.1} parent=1 // pred_check
      _
    $region119: #{tpu_custom_call.1} parent=1 // pred_check_branch
      %308 = sbr.rel (0) target = $region121
    $region120: #{tpu_custom_call.1} parent=1 // pred_region
      _
    $region121: #{tpu_custom_call.1} parent=1 // pred_fallthru
      _
    // Predicated region
    $region122: #{tpu_custom_call.1} parent=1 // pred_check
      _
    $region123: #{tpu_custom_call.1} parent=1 // pred_check_branch
      %310 = sbr.rel (0) target = $region125
    $region124: #{tpu_custom_call.1} parent=1 // pred_region
      _
    $region125: #{tpu_custom_call.1} parent=1 // pred_fallthru
      _
    // Predicated region
    $region126: #{tpu_custom_call.1} parent=1 // pred_check
      _
    $region127: #{tpu_custom_call.1} parent=1 // pred_check_branch
      %312 = sbr.rel (0) target = $region129
    $region128: #{tpu_custom_call.1} parent=1 // pred_region
      _
    $region129: #{tpu_custom_call.1} parent=1 // pred_fallthru
      _
    // Predicated region
    $region130: #{tpu_custom_call.1} parent=1 // pred_check
      _
    $region131: #{tpu_custom_call.1} parent=1 // pred_check_branch
      %314 = sbr.rel (0) target = $region133
    $region132: #{tpu_custom_call.1} parent=1 // pred_region
      _
    $region133: #{tpu_custom_call.1} parent=1 // pred_fallthru
      _
    // Predicated region
    $region134: #{tpu_custom_call.1} parent=1 // pred_check
      _
    $region135: #{tpu_custom_call.1} parent=1 // pred_check_branch
      %316 = sbr.rel (0) target = $region137
    $region136: #{tpu_custom_call.1} parent=1 // pred_region
      _
    $region137: #{tpu_custom_call.1} parent=1 // pred_fallthru
      _
    // Predicated region
    $region138: #{tpu_custom_call.1} parent=1 // pred_check
      _
    $region139: #{tpu_custom_call.1} parent=1 // pred_check_branch
      %318 = sbr.rel (0) target = $region141
    $region140: #{tpu_custom_call.1} parent=1 // pred_region
      _
    $region141: #{tpu_custom_call.1} parent=1 // pred_fallthru
      _
    // Predicated region
    $region142: #{tpu_custom_call.1} parent=1 // pred_check
      _
    $region143: #{tpu_custom_call.1} parent=1 // pred_check_branch
      %320 = sbr.rel (0) target = $region145
    $region144: #{tpu_custom_call.1} parent=1 // pred_region
      _
    $region145: #{tpu_custom_call.1} parent=1 // pred_fallthru
      _
    // Predicated region
    $region146: #{tpu_custom_call.1} parent=1 // pred_check
      _
    $region147: #{tpu_custom_call.1} parent=1 // pred_check_branch
      %322 = sbr.rel (0) target = $region149
    $region148: #{tpu_custom_call.1} parent=1 // pred_region
      _
    $region149: #{tpu_custom_call.1} parent=1 // pred_fallthru
      _
    // Predicated region
    $region150: #{tpu_custom_call.1} parent=1 // pred_check
      _
    $region151: #{tpu_custom_call.1} parent=1 // pred_check_branch
      %324 = sbr.rel (0) target = $region153
    $region152: #{tpu_custom_call.1} parent=1 // pred_region
      _
    $region153: #{tpu_custom_call.1} parent=1 // pred_fallthru
      _
    // Predicated region
    $region154: #{tpu_custom_call.1} parent=1 // pred_check
      _
    $region155: #{tpu_custom_call.1} parent=1 // pred_check_branch
      %326 = sbr.rel (0) target = $region157
    $region156: #{tpu_custom_call.1} parent=1 // pred_region
      _
    $region157: #{tpu_custom_call.1} parent=1 // pred_fallthru
      _
    // Predicated region
    $region158: #{tpu_custom_call.1} parent=1 // pred_check
      _
    $region159: #{tpu_custom_call.1} parent=1 // pred_check_branch
      %328 = sbr.rel (0) target = $region161
    $region160: #{tpu_custom_call.1} parent=1 // pred_region
      _
    $region161: #{tpu_custom_call.1} parent=1 // pred_fallthru
      _
    // Predicated region
    $region162: #{tpu_custom_call.1} parent=1 // pred_check
      _
    $region163: #{tpu_custom_call.1} parent=1 // pred_check_branch
      %330 = sbr.rel (0) target = $region165
    $region164: #{tpu_custom_call.1} parent=1 // pred_region
      %331 = dma.done [#allocation5], 256
    $region165: #{tpu_custom_call.1} parent=1 // pred_fallthru
      _
    // Predicated region
    $region166: #{tpu_custom_call.1} parent=1 // pred_check
      _
    $region167: #{tpu_custom_call.1} parent=1 // pred_check_branch
      %333 = sbr.rel (0) target = $region169
    $region168: #{tpu_custom_call.1} parent=1 // pred_region
      %334 = dma.done [#allocation8], 256
    $region169: #{tpu_custom_call.1} parent=1 // pred_fallthru
      _
    // Predicated region
    $region170: #{tpu_custom_call.1} parent=1 // pred_check
      _
    $region171: #{tpu_custom_call.1} parent=1 // pred_check_branch
      %336 = sbr.rel (0) target = $region173
    $region172: #{tpu_custom_call.1} parent=1 // pred_region
      %337 = dma.done [#allocation8], 16
    $region173: #{tpu_custom_call.1} parent=1 // pred_fallthru
      _
    // Predicated region
    $region174: #{tpu_custom_call.1} parent=1 // pred_check
      _
    $region175: #{tpu_custom_call.1} parent=1 // pred_check_branch
      %339 = sbr.rel (0) target = $region177
    $region176: #{tpu_custom_call.1} parent=1 // pred_region
      %340 = dma.done [#allocation11], 16
    $region177: #{tpu_custom_call.1} parent=1 // pred_fallthru
      _
    // Predicated region
    $region178: #{tpu_custom_call.1} parent=1 // pred_check
      _
    $region179: #{tpu_custom_call.1} parent=1 // pred_check_branch
      %342 = sbr.rel (0) target = $region181
    $region180: #{tpu_custom_call.1} parent=1 // pred_region
      %343 = dma.done [#allocation11], 16
    $region181: #{tpu_custom_call.1} parent=1 // pred_fallthru
      _
    // Predicated region
    $region182: #{tpu_custom_call.1} parent=1 // pred_check
      _
    $region183: #{tpu_custom_call.1} parent=1 // pred_check_branch
      %345 = sbr.rel (0) target = $region185
    $region184: #{tpu_custom_call.1} parent=1 // pred_region
      %346 = dma.done [#allocation14], 16
    $region185: #{tpu_custom_call.1} parent=1 // pred_fallthru
      _
    // Predicated region
    $region186: #{tpu_custom_call.1} parent=1 // pred_check
      _
    $region187: #{tpu_custom_call.1} parent=1 // pred_check_branch
      %348 = sbr.rel (0) target = $region189
    $region188: #{tpu_custom_call.1} parent=1 // pred_region
      %349 = dma.done [#allocation14], 16
    $region189: #{tpu_custom_call.1} parent=1 // pred_fallthru
      _
    // Predicated region
    $region190: #{tpu_custom_call.1} parent=1 // pred_check
      _
    $region191: #{tpu_custom_call.1} parent=1 // pred_check_branch
      %351 = sbr.rel (0) target = $region193
    $region192: #{tpu_custom_call.1} parent=1 // pred_region
      %352 = dma.done [#allocation17], 16
    $region193: #{tpu_custom_call.1} parent=1 // pred_fallthru
      _
    // Predicated region
    $region194: #{tpu_custom_call.1} parent=1 // pred_check
      _
    $region195: #{tpu_custom_call.1} parent=1 // pred_check_branch
      %354 = sbr.rel (0) target = $region197
    $region196: #{tpu_custom_call.1} parent=1 // pred_region
      %355 = dma.done [#allocation17], 16
    $region197: #{tpu_custom_call.1} parent=1 // pred_fallthru
      _
    // Predicated region
    $region198: #{tpu_custom_call.1} parent=1 // pred_check
      _
    $region199: #{tpu_custom_call.1} parent=1 // pred_check_branch
      %357 = sbr.rel (0) target = $region201
    $region200: #{tpu_custom_call.1} parent=1 // pred_region
      %358 = dma.done [#allocation20], 16
    $region201: #{tpu_custom_call.1} parent=1 // pred_fallthru
      _
    // Predicated region
    $region202: #{tpu_custom_call.1} parent=1 // pred_check
      _
    $region203: #{tpu_custom_call.1} parent=1 // pred_check_branch
      %360 = sbr.rel (0) target = $region205
    $region204: #{tpu_custom_call.1} parent=1 // pred_region
      %361 = dma.done [#allocation20], 16
    $region205: #{tpu_custom_call.1} parent=1 // pred_fallthru
      _
    // Predicated region
    $region206: #{tpu_custom_call.1} parent=1 // pred_check
      _
    $region207: #{tpu_custom_call.1} parent=1 // pred_check_branch
      %363 = sbr.rel (0) target = $region209
    $region208: #{tpu_custom_call.1} parent=1 // pred_region
      %364 = dma.done [#allocation23], 16
    $region209: #{tpu_custom_call.1} parent=1 // pred_fallthru
      _
    // Predicated region
    $region210: #{tpu_custom_call.1} parent=1 // pred_check
      _
    $region211: #{tpu_custom_call.1} parent=1 // pred_check_branch
      %366 = sbr.rel (0) target = $region213
    $region212: #{tpu_custom_call.1} parent=1 // pred_region
      %367 = dma.done [#allocation23], 16
    $region213: #{tpu_custom_call.1} parent=1 // pred_fallthru
      _
    // Predicated region
    $region214: #{tpu_custom_call.1} parent=1 // pred_check
      _
    $region215: #{tpu_custom_call.1} parent=1 // pred_check_branch
      %369 = sbr.rel (0) target = $region217
    $region216: #{tpu_custom_call.1} parent=1 // pred_region
      %370 = dma.done [#allocation26], 16
    $region217: #{tpu_custom_call.1} parent=1 // pred_fallthru
      _
    // Predicated region
    $region218: #{tpu_custom_call.1} parent=1 // pred_check
      _
    $region219: #{tpu_custom_call.1} parent=1 // pred_check_branch
      %372 = sbr.rel (0) target = $region221
    $region220: #{tpu_custom_call.1} parent=1 // pred_region
      %373 = dma.done [#allocation26], 16
    $region221: #{tpu_custom_call.1} parent=1 // pred_fallthru
      _
    // Predicated region
    $region222: #{tpu_custom_call.1} parent=1 // pred_check
      _
    $region223: #{tpu_custom_call.1} parent=1 // pred_check_branch
      %375 = sbr.rel (0) target = $region225
    $region224: #{tpu_custom_call.1} parent=1 // pred_region
      %376 = dma.done [#allocation29], 16
    $region225: #{tpu_custom_call.1} parent=1 // pred_fallthru
      _
    // Predicated region
    $region226: #{tpu_custom_call.1} parent=1 // pred_check
      _
    $region227: #{tpu_custom_call.1} parent=1 // pred_check_branch
      %378 = sbr.rel (0) target = $region229
    $region228: #{tpu_custom_call.1} parent=1 // pred_region
      %379 = dma.done [#allocation29], 16
    $region229: #{tpu_custom_call.1} parent=1 // pred_fallthru
      _
    // Predicated region
    $region230: #{tpu_custom_call.1} parent=1 // pred_check
      _
    $region231: #{tpu_custom_call.1} parent=1 // pred_check_branch
      %381 = sbr.rel (0) target = $region233
    $region232: #{tpu_custom_call.1} parent=1 // pred_region
      %382 = dma.done [#allocation32], 16
    $region233: #{tpu_custom_call.1} parent=1 // pred_fallthru
      _
    %v383 = vld [vmem:[#allocation4] sm:$0xff]
    %v384 = vld [vmem:[#allocation4 + $0x8] sm:$0xff]
    %v385 = vld [vmem:[%s5] sm:$0x1]
    %v386 = vld [vmem:[%s7] sm:$0x1]
    %vm387 = vcmask 261120
    %v388 = vsel %vm387, %v383, 0.0
    %389 = vadd.xlane.f32.xlu0 %v388
    %v390 = vpop.xlane.xlu0 %389
    %v391 = vsel %vm387, %v384, 0.0
    %392 = vadd.xlane.f32.xlu0 %v391
    %v393 = vpop.xlane.xlu0 %392
    %v394 = vrcp.pop 32.0
    %v395 = vmul.f32 %v390, %v394
    %v396 = vmul.f32 %v393, %v394
    %v397 = vsub.f32 %v383, %v395
    %v398 = vsub.f32 %v384, %v396
    %v399 = vmul.f32 %v397, %v397
    %v400 = vmul.f32 %v398, %v398
    %v401 = vsel %vm387, %v399, 0.0
    %402 = vadd.xlane.f32.xlu0 %v401
    %v403 = vpop.xlane.xlu0 %402
    %v404 = vsel %vm387, %v400, 0.0
    %405 = vadd.xlane.f32.xlu0 %v404
    %v406 = vpop.xlane.xlu0 %405
    %v407 = vmul.f32 %v403, %v394
    %v408 = vmul.f32 %v406, %v394
    %v409 = vadd.f32 %v407, 1e-05
    %v410 = vadd.f32 %v408, 1e-05
    %v411 = vrsqrt.pop %v409
    %v412 = vrsqrt.pop %v410
    %v413 = vmul.f32 %v397, %v411
    %v414 = vmul.f32 %v398, %v412
    %v416 = vlaneseq
    %v417 = vshrl.u32 %v416, 7
    %v418 = vsub.s32 0, %v417
    %v419 = vrot.slane %v385, %v418
    %v421 = vmul.f32 %v413, %v419
    %v422 = vmul.f32 %v414, %v419
    %v424 = vlaneseq
    %v425 = vshrl.u32 %v424, 7
    %v426 = vsub.s32 0, %v425
    %v427 = vrot.slane %v386, %v426
    %v429 = vadd.f32 %v421, %v427
    %v430 = vadd.f32 %v422, %v427
    %v431 = vld [vmem:[%s9] sm:$0xff]
    %v432 = vld [vmem:[%s9 + $0x8] sm:$0xff]
    %v433 = vld [vmem:[%s9 + $0x10] sm:$0xff]
    %v434 = vld [vmem:[%s9 + $0x18] sm:$0xff]
    %v435 = vld [vmem:[#allocation9] sm:$0x1]
    %v437 = vlaneseq
    %v438 = vshrl.u32 %v437, 7
    %v439 = vsub.s32 0, %v438
    %v440 = vrot.slane %v435, %v439
    %v443 = vsel %vm387, %v429, 0
    %v446 = vsel %vm387, %v430, 0
    %448 = vmatprep.subr.mxu0 0.0
    %449 = vmatpush1.msra.mxu0 %v431
    %450 = vmatprep.subr.mxu0 0.0
    %451 = vmatpush1.msra.mxu0 %v432
    %452 = vmatprep.subr.mxu0 0.0
    %453 = vmatpush1.msra.mxu0 %v433
    %454 = vmatprep.subr.mxu0 0.0
    %455 = vmatpush1.msra.mxu0 %v434
    %456 = vmatprep.subr.mxu0 0.0
    %457 = vmatpush1.msra.mxu0 0.0
    %458 = vmatprep.subr.mxu0 0.0
    %459 = vmatpush1.msra.mxu0 0.0
    %460 = vmatprep.subr.mxu0 0.0
    %461 = vmatpush1.msra.mxu0 0.0
    %462 = vmatprep.subr.mxu0 0.0
    %463 = vmatpush1.msra.mxu0 0.0
    %464 = vmatprep.subr.mxu0 0.0
    %465 = vmatpush1.msra.mxu0 0.0
    %466 = vmatprep.subr.mxu0 0.0
    %467 = vmatpush1.msra.mxu0 0.0
    %468 = vmatprep.subr.mxu0 0.0
    %469 = vmatpush1.msra.mxu0 0.0
    %470 = vmatprep.subr.mxu0 0.0
    %471 = vmatpush1.msra.mxu0 0.0
    %472 = vmatprep.subr.mxu0 0.0
    %473 = vmatpush1.msra.mxu0 0.0
    %474 = vmatprep.subr.mxu0 0.0
    %475 = vmatpush1.msra.mxu0 0.0
    %476 = vmatprep.subr.mxu0 0.0
    %477 = vmatpush1.msra.mxu0 0.0
    %478 = vmatprep.subr.mxu0 0.0
    %479 = vmatpush1.msra.mxu0 0.0
    %480 = vmatprep.subr.mxu0 0.0
    %481 = vmatpush1.msra.mxu0 0.0
    %482 = vmatprep.subr.mxu0 0.0
    %483 = vmatpush1.msra.mxu0 0.0
    %484 = vmatprep.subr.mxu0 0.0
    %485 = vmatpush1.msra.mxu0 0.0
    %486 = vmatprep.subr.mxu0 0.0
    %487 = vmatpush1.msra.mxu0 0.0
    %488 = vmatprep.subr.mxu0 0.0
    %489 = vmatpush1.msra.mxu0 0.0
    %490 = vmatprep.subr.mxu0 0.0
    %491 = vmatpush1.msra.mxu0 0.0
    %492 = vmatprep.subr.mxu0 0.0
    %493 = vmatpush1.msra.mxu0 0.0
    %494 = vmatprep.subr.mxu0 0.0
    %495 = vmatpush1.msra.mxu0 0.0
    %496 = vmatprep.subr.mxu0 0.0
    %497 = vmatpush1.msra.mxu0 0.0
    %498 = vmatprep.subr.mxu0 0.0
    %499 = vmatpush1.msra.mxu0 0.0
    %500 = vmatprep.subr.mxu0 0.0
    %501 = vmatpush1.msra.mxu0 0.0
    %502 = vmatprep.subr.mxu0 0.0
    %503 = vmatpush1.msra.mxu0 0.0
    %504 = vmatprep.subr.mxu0 0.0
    %505 = vmatpush1.msra.mxu0 0.0
    %506 = vmatprep.subr.mxu0 0.0
    %507 = vmatpush1.msra.mxu0 0.0
    %508 = vmatprep.subr.mxu0 0.0
    %509 = vmatpush1.msra.mxu0 0.0
    %510 = vmatprep.subr.mxu0 0.0
    %511 = vmatpush1.msra.mxu0 0.0
    %512 = vmatprep.mubr.f32.mxu0 0.0
    %513 = vmatmul.mubr.f32.gmra.mrb[0].mxu0 %v443
    %v514 = vpop.f32.mrb[0].mxu0
    %v515 = vadd.f32 %v440, %v514
    %v516 = vpop.f32.mrb[0].mxu0
    %517 = vmatprep.mubr.f32.mxu0 0.0
    %518 = vmatmul.mubr.f32.gmra.mrb[0].mxu0 %v446
    %v519 = vpop.f32.mrb[0].mxu0
    %v520 = vadd.f32 %v440, %v519
    %v521 = vpop.f32.mrb[0].mxu0
    %522 = vdwg.mxu0
    %524 = vrot.lane.b32.xlu0 %v515, 96
    %v525 = vpop.permute.xlu0 %524
    %vm526 = vcmask 130048
    %v527 = vsel %vm526, %v515, 0
    %v529 = vsel %vm526, %v525, 0
    %531 = vmatprep.subr.mxu0 0.0
    %532 = vmatpush1.xpose.msra.mxu0 %v529
    %533 = vmatprep.subr.mxu0 0.0
    %534 = vmatpush1.xpose.msra.mxu0 0.0
    %535 = vmatprep.subr.mxu0 0.0
    %536 = vmatpush1.xpose.msra.mxu0 0.0
    %537 = vmatprep.subr.mxu0 0.0
    %538 = vmatpush1.xpose.msra.mxu0 0.0
    %539 = vmatprep.subr.mxu0 0.0
    %540 = vmatpush1.xpose.msra.mxu0 0.0
    %541 = vmatprep.subr.mxu0 0.0
    %542 = vmatpush1.xpose.msra.mxu0 0.0
    %543 = vmatprep.subr.mxu0 0.0
    %544 = vmatpush1.xpose.msra.mxu0 0.0
    %545 = vmatprep.subr.mxu0 0.0
    %546 = vmatpush1.xpose.msra.mxu0 0.0
    %547 = vmatprep.subr.mxu0 0.0
    %548 = vmatpush1.xpose.msra.mxu0 0.0
    %549 = vmatprep.subr.mxu0 0.0
    %550 = vmatpush1.xpose.msra.mxu0 0.0
    %551 = vmatprep.subr.mxu0 0.0
    %552 = vmatpush1.xpose.msra.mxu0 0.0
    %553 = vmatprep.subr.mxu0 0.0
    %554 = vmatpush1.xpose.msra.mxu0 0.0
    %555 = vmatprep.subr.mxu0 0.0
    %556 = vmatpush1.xpose.msra.mxu0 0.0
    %557 = vmatprep.subr.mxu0 0.0
    %558 = vmatpush1.xpose.msra.mxu0 0.0
    %559 = vmatprep.subr.mxu0 0.0
    %560 = vmatpush1.xpose.msra.mxu0 0.0
    %561 = vmatprep.subr.mxu0 0.0
    %562 = vmatpush1.xpose.msra.mxu0 0.0
    %563 = vmatprep.subr.mxu0 0.0
    %564 = vmatpush1.xpose.msra.mxu0 0.0
    %565 = vmatprep.subr.mxu0 0.0
    %566 = vmatpush1.xpose.msra.mxu0 0.0
    %567 = vmatprep.subr.mxu0 0.0
    %568 = vmatpush1.xpose.msra.mxu0 0.0
    %569 = vmatprep.subr.mxu0 0.0
    %570 = vmatpush1.xpose.msra.mxu0 0.0
    %571 = vmatprep.subr.mxu0 0.0
    %572 = vmatpush1.xpose.msra.mxu0 0.0
    %573 = vmatprep.subr.mxu0 0.0
    %574 = vmatpush1.xpose.msra.mxu0 0.0
    %575 = vmatprep.subr.mxu0 0.0
    %576 = vmatpush1.xpose.msra.mxu0 0.0
    %577 = vmatprep.subr.mxu0 0.0
    %578 = vmatpush1.xpose.msra.mxu0 0.0
    %579 = vmatprep.subr.mxu0 0.0
    %580 = vmatpush1.xpose.msra.mxu0 0.0
    %581 = vmatprep.subr.mxu0 0.0
    %582 = vmatpush1.xpose.msra.mxu0 0.0
    %583 = vmatprep.subr.mxu0 0.0
    %584 = vmatpush1.xpose.msra.mxu0 0.0
    %585 = vmatprep.subr.mxu0 0.0
    %586 = vmatpush1.xpose.msra.mxu0 0.0
    %587 = vmatprep.subr.mxu0 0.0
    %588 = vmatpush1.xpose.msra.mxu0 0.0
    %589 = vmatprep.subr.mxu0 0.0
    %590 = vmatpush1.xpose.msra.mxu0 0.0
    %591 = vmatprep.subr.mxu0 0.0
    %592 = vmatpush1.xpose.msra.mxu0 0.0
    %593 = vmatprep.subr.mxu0 0.0
    %594 = vmatpush1.xpose.msra.mxu0 0.0
    %595 = vmatprep.mubr.f32.mxu0 0.0
    %596 = vmatmul.mubr.f32.gmra.mrb[0].mxu0 %v527
    %v597 = vpop.f32.mrb[0].mxu0
    %v598 = vadd.f32 0.0, %v597
    %v599 = vpop.f32.mrb[0].mxu0
    %600 = vdwg.mxu0
    %v601 = vmul.f32 %v598, 0.25
    %vm602 = vcmask 64512
    %v603 = vsel %vm602, %v601, -inf
    %604 = vmax.xlane.f32.xlu0 %v603
    %v605 = vpop.xlane.xlu0 %604
    %v606 = vsub.f32 %v601, %v605
    %v607 = vmul.f32 %v606, 1.442695
    %v608 = vpow.pop %v607
    %v609 = vsel %vm602, %v608, 0.0
    %610 = vadd.xlane.f32.xlu0 %v609
    %v611 = vpop.xlane.xlu0 %610
    %v612 = vrcp.pop %v611
    %v613 = vmul.f32 %v608, %v612
    %614 = vrot.lane.b32.xlu0 %v515, 64
    %v615 = vpop.permute.xlu0 %614
    %v618 = vsel %vm602, %v613, 0
    %620 = vmatprep.subr.mxu0 0.0
    %621 = vmatpush1.msra.mxu0 %v615
    %622 = vmatprep.subr.mxu0 0.0
    %623 = vmatpush1.msra.mxu0 0.0
    %624 = vmatprep.subr.mxu0 0.0
    %625 = vmatpush1.msra.mxu0 0.0
    %626 = vmatprep.subr.mxu0 0.0
    %627 = vmatpush1.msra.mxu0 0.0
    %628 = vmatprep.subr.mxu0 0.0
    %629 = vmatpush1.msra.mxu0 0.0
    %630 = vmatprep.subr.mxu0 0.0
    %631 = vmatpush1.msra.mxu0 0.0
    %632 = vmatprep.subr.mxu0 0.0
    %633 = vmatpush1.msra.mxu0 0.0
    %634 = vmatprep.subr.mxu0 0.0
    %635 = vmatpush1.msra.mxu0 0.0
    %636 = vmatprep.subr.mxu0 0.0
    %637 = vmatpush1.msra.mxu0 0.0
    %638 = vmatprep.subr.mxu0 0.0
    %639 = vmatpush1.msra.mxu0 0.0
    %640 = vmatprep.subr.mxu0 0.0
    %641 = vmatpush1.msra.mxu0 0.0
    %642 = vmatprep.subr.mxu0 0.0
    %643 = vmatpush1.msra.mxu0 0.0
    %644 = vmatprep.subr.mxu0 0.0
    %645 = vmatpush1.msra.mxu0 0.0
    %646 = vmatprep.subr.mxu0 0.0
    %647 = vmatpush1.msra.mxu0 0.0
    %648 = vmatprep.subr.mxu0 0.0
    %649 = vmatpush1.msra.mxu0 0.0
    %650 = vmatprep.subr.mxu0 0.0
    %651 = vmatpush1.msra.mxu0 0.0
    %652 = vmatprep.subr.mxu0 0.0
    %653 = vmatpush1.msra.mxu0 0.0
    %654 = vmatprep.subr.mxu0 0.0
    %655 = vmatpush1.msra.mxu0 0.0
    %656 = vmatprep.subr.mxu0 0.0
    %657 = vmatpush1.msra.mxu0 0.0
    %658 = vmatprep.subr.mxu0 0.0
    %659 = vmatpush1.msra.mxu0 0.0
    %660 = vmatprep.subr.mxu0 0.0
    %661 = vmatpush1.msra.mxu0 0.0
    %662 = vmatprep.subr.mxu0 0.0
    %663 = vmatpush1.msra.mxu0 0.0
    %664 = vmatprep.subr.mxu0 0.0
    %665 = vmatpush1.msra.mxu0 0.0
    %666 = vmatprep.subr.mxu0 0.0
    %667 = vmatpush1.msra.mxu0 0.0
    %668 = vmatprep.subr.mxu0 0.0
    %669 = vmatpush1.msra.mxu0 0.0
    %670 = vmatprep.subr.mxu0 0.0
    %671 = vmatpush1.msra.mxu0 0.0
    %672 = vmatprep.subr.mxu0 0.0
    %673 = vmatpush1.msra.mxu0 0.0
    %674 = vmatprep.subr.mxu0 0.0
    %675 = vmatpush1.msra.mxu0 0.0
    %676 = vmatprep.subr.mxu0 0.0
    %677 = vmatpush1.msra.mxu0 0.0
    %678 = vmatprep.subr.mxu0 0.0
    %679 = vmatpush1.msra.mxu0 0.0
    %680 = vmatprep.subr.mxu0 0.0
    %681 = vmatpush1.msra.mxu0 0.0
    %682 = vmatprep.subr.mxu0 0.0
    %683 = vmatpush1.msra.mxu0 0.0
    %684 = vmatprep.mubr.f32.mxu0 0.0
    %685 = vmatmul.mubr.f32.gmra.mrb[0].mxu0 %v618
    %v686 = vpop.f32.mrb[0].mxu0
    %v687 = vadd.f32 0.0, %v686
    %v688 = vpop.f32.mrb[0].mxu0
    %689 = vdwg.mxu0
    %690 = vst.msk [vmem:[#allocation2] sm:$0xff] %vm526, %v687
    %691 = vrot.lane.b32.xlu0 %v515, 112
    %v692 = vpop.permute.xlu0 %691
    %693 = vrot.lane.b32.xlu0 %v515, 80
    %v694 = vpop.permute.xlu0 %693
    %v695 = vsel %vm526, %v692, 0
    %v697 = vsel %vm526, %v694, 0
    %699 = vmatprep.subr.mxu0 0.0
    %700 = vmatpush1.xpose.msra.mxu0 %v697
    %701 = vmatprep.subr.mxu0 0.0
    %702 = vmatpush1.xpose.msra.mxu0 0.0
    %703 = vmatprep.subr.mxu0 0.0
    %704 = vmatpush1.xpose.msra.mxu0 0.0
    %705 = vmatprep.subr.mxu0 0.0
    %706 = vmatpush1.xpose.msra.mxu0 0.0
    %707 = vmatprep.subr.mxu0 0.0
    %708 = vmatpush1.xpose.msra.mxu0 0.0
    %709 = vmatprep.subr.mxu0 0.0
    %710 = vmatpush1.xpose.msra.mxu0 0.0
    %711 = vmatprep.subr.mxu0 0.0
    %712 = vmatpush1.xpose.msra.mxu0 0.0
    %713 = vmatprep.subr.mxu0 0.0
    %714 = vmatpush1.xpose.msra.mxu0 0.0
    %715 = vmatprep.subr.mxu0 0.0
    %716 = vmatpush1.xpose.msra.mxu0 0.0
    %717 = vmatprep.subr.mxu0 0.0
    %718 = vmatpush1.xpose.msra.mxu0 0.0
    %719 = vmatprep.subr.mxu0 0.0
    %720 = vmatpush1.xpose.msra.mxu0 0.0
    %721 = vmatprep.subr.mxu0 0.0
    %722 = vmatpush1.xpose.msra.mxu0 0.0
    %723 = vmatprep.subr.mxu0 0.0
    %724 = vmatpush1.xpose.msra.mxu0 0.0
    %725 = vmatprep.subr.mxu0 0.0
    %726 = vmatpush1.xpose.msra.mxu0 0.0
    %727 = vmatprep.subr.mxu0 0.0
    %728 = vmatpush1.xpose.msra.mxu0 0.0
    %729 = vmatprep.subr.mxu0 0.0
    %730 = vmatpush1.xpose.msra.mxu0 0.0
    %731 = vmatprep.subr.mxu0 0.0
    %732 = vmatpush1.xpose.msra.mxu0 0.0
    %733 = vmatprep.subr.mxu0 0.0
    %734 = vmatpush1.xpose.msra.mxu0 0.0
    %735 = vmatprep.subr.mxu0 0.0
    %736 = vmatpush1.xpose.msra.mxu0 0.0
    %737 = vmatprep.subr.mxu0 0.0
    %738 = vmatpush1.xpose.msra.mxu0 0.0
    %739 = vmatprep.subr.mxu0 0.0
    %740 = vmatpush1.xpose.msra.mxu0 0.0
    %741 = vmatprep.subr.mxu0 0.0
    %742 = vmatpush1.xpose.msra.mxu0 0.0
    %743 = vmatprep.subr.mxu0 0.0
    %744 = vmatpush1.xpose.msra.mxu0 0.0
    %745 = vmatprep.subr.mxu0 0.0
    %746 = vmatpush1.xpose.msra.mxu0 0.0
    %747 = vmatprep.subr.mxu0 0.0
    %748 = vmatpush1.xpose.msra.mxu0 0.0
    %749 = vmatprep.subr.mxu0 0.0
    %750 = vmatpush1.xpose.msra.mxu0 0.0
    %751 = vmatprep.subr.mxu0 0.0
    %752 = vmatpush1.xpose.msra.mxu0 0.0
    %753 = vmatprep.subr.mxu0 0.0
    %754 = vmatpush1.xpose.msra.mxu0 0.0
    %755 = vmatprep.subr.mxu0 0.0
    %756 = vmatpush1.xpose.msra.mxu0 0.0
    %757 = vmatprep.subr.mxu0 0.0
    %758 = vmatpush1.xpose.msra.mxu0 0.0
    %759 = vmatprep.subr.mxu0 0.0
    %760 = vmatpush1.xpose.msra.mxu0 0.0
    %761 = vmatprep.subr.mxu0 0.0
    %762 = vmatpush1.xpose.msra.mxu0 0.0
    %763 = vmatprep.mubr.f32.mxu0 0.0
    %764 = vmatmul.mubr.f32.gmra.mrb[0].mxu0 %v695
    %v765 = vpop.f32.mrb[0].mxu0
    %v766 = vadd.f32 0.0, %v765
    %v767 = vpop.f32.mrb[0].mxu0
    %768 = vdwg.mxu0
    %v769 = vmul.f32 %v766, 0.25
    %v770 = vsel %vm602, %v769, -inf
    %771 = vmax.xlane.f32.xlu0 %v770
    %v772 = vpop.xlane.xlu0 %771
    %v773 = vsub.f32 %v769, %v772
    %v774 = vmul.f32 %v773, 1.442695
    %v775 = vpow.pop %v774
    %v776 = vsel %vm602, %v775, 0.0
    %777 = vadd.xlane.f32.xlu0 %v776
    %v778 = vpop.xlane.xlu0 %777
    %v779 = vrcp.pop %v778
    %v780 = vmul.f32 %v775, %v779
    %781 = vrot.lane.b32.xlu0 %v515, 48
    %v782 = vpop.permute.xlu0 %781
    %v785 = vsel %vm602, %v780, 0
    %787 = vmatprep.subr.mxu0 0.0
    %788 = vmatpush1.msra.mxu0 %v782
    %789 = vmatprep.subr.mxu0 0.0
    %790 = vmatpush1.msra.mxu0 0.0
    %791 = vmatprep.subr.mxu0 0.0
    %792 = vmatpush1.msra.mxu0 0.0
    %793 = vmatprep.subr.mxu0 0.0
    %794 = vmatpush1.msra.mxu0 0.0
    %795 = vmatprep.subr.mxu0 0.0
    %796 = vmatpush1.msra.mxu0 0.0
    %797 = vmatprep.subr.mxu0 0.0
    %798 = vmatpush1.msra.mxu0 0.0
    %799 = vmatprep.subr.mxu0 0.0
    %800 = vmatpush1.msra.mxu0 0.0
    %801 = vmatprep.subr.mxu0 0.0
    %802 = vmatpush1.msra.mxu0 0.0
    %803 = vmatprep.subr.mxu0 0.0
    %804 = vmatpush1.msra.mxu0 0.0
    %805 = vmatprep.subr.mxu0 0.0
    %806 = vmatpush1.msra.mxu0 0.0
    %807 = vmatprep.subr.mxu0 0.0
    %808 = vmatpush1.msra.mxu0 0.0
    %809 = vmatprep.subr.mxu0 0.0
    %810 = vmatpush1.msra.mxu0 0.0
    %811 = vmatprep.subr.mxu0 0.0
    %812 = vmatpush1.msra.mxu0 0.0
    %813 = vmatprep.subr.mxu0 0.0
    %814 = vmatpush1.msra.mxu0 0.0
    %815 = vmatprep.subr.mxu0 0.0
    %816 = vmatpush1.msra.mxu0 0.0
    %817 = vmatprep.subr.mxu0 0.0
    %818 = vmatpush1.msra.mxu0 0.0
    %819 = vmatprep.subr.mxu0 0.0
    %820 = vmatpush1.msra.mxu0 0.0
    %821 = vmatprep.subr.mxu0 0.0
    %822 = vmatpush1.msra.mxu0 0.0
    %823 = vmatprep.subr.mxu0 0.0
    %824 = vmatpush1.msra.mxu0 0.0
    %825 = vmatprep.subr.mxu0 0.0
    %826 = vmatpush1.msra.mxu0 0.0
    %827 = vmatprep.subr.mxu0 0.0
    %828 = vmatpush1.msra.mxu0 0.0
    %829 = vmatprep.subr.mxu0 0.0
    %830 = vmatpush1.msra.mxu0 0.0
    %831 = vmatprep.subr.mxu0 0.0
    %832 = vmatpush1.msra.mxu0 0.0
    %833 = vmatprep.subr.mxu0 0.0
    %834 = vmatpush1.msra.mxu0 0.0
    %835 = vmatprep.subr.mxu0 0.0
    %836 = vmatpush1.msra.mxu0 0.0
    %837 = vmatprep.subr.mxu0 0.0
    %838 = vmatpush1.msra.mxu0 0.0
    %839 = vmatprep.subr.mxu0 0.0
    %840 = vmatpush1.msra.mxu0 0.0
    %841 = vmatprep.subr.mxu0 0.0
    %842 = vmatpush1.msra.mxu0 0.0
    %843 = vmatprep.subr.mxu0 0.0
    %844 = vmatpush1.msra.mxu0 0.0
    %845 = vmatprep.subr.mxu0 0.0
    %846 = vmatpush1.msra.mxu0 0.0
    %847 = vmatprep.subr.mxu0 0.0
    %848 = vmatpush1.msra.mxu0 0.0
    %849 = vmatprep.subr.mxu0 0.0
    %850 = vmatpush1.msra.mxu0 0.0
    %851 = vmatprep.mubr.f32.mxu0 0.0
    %852 = vmatmul.mubr.f32.gmra.mrb[0].mxu0 %v785
    %v853 = vpop.f32.mrb[0].mxu0
    %v854 = vadd.f32 0.0, %v853
    %v855 = vpop.f32.mrb[0].mxu0
    %856 = vdwg.mxu0
    %858 = vrot.lane.b32.xlu0 %v854, 16
    %v859 = vpop.permute.xlu0 %858
    %vm861 = vcmask 261248
    %862 = vst.msk [vmem:[#allocation2] sm:$0xff] %vm861, %v859
    %864 = vrot.lane.b32.xlu0 %v520, 96
    %v865 = vpop.permute.xlu0 %864
    %v866 = vsel %vm526, %v520, 0
    %v868 = vsel %vm526, %v865, 0
    %870 = vmatprep.subr.mxu0 0.0
    %871 = vmatpush1.xpose.msra.mxu0 %v868
    %872 = vmatprep.subr.mxu0 0.0
    %873 = vmatpush1.xpose.msra.mxu0 0.0
    %874 = vmatprep.subr.mxu0 0.0
    %875 = vmatpush1.xpose.msra.mxu0 0.0
    %876 = vmatprep.subr.mxu0 0.0
    %877 = vmatpush1.xpose.msra.mxu0 0.0
    %878 = vmatprep.subr.mxu0 0.0
    %879 = vmatpush1.xpose.msra.mxu0 0.0
    %880 = vmatprep.subr.mxu0 0.0
    %881 = vmatpush1.xpose.msra.mxu0 0.0
    %882 = vmatprep.subr.mxu0 0.0
    %883 = vmatpush1.xpose.msra.mxu0 0.0
    %884 = vmatprep.subr.mxu0 0.0
    %885 = vmatpush1.xpose.msra.mxu0 0.0
    %886 = vmatprep.subr.mxu0 0.0
    %887 = vmatpush1.xpose.msra.mxu0 0.0
    %888 = vmatprep.subr.mxu0 0.0
    %889 = vmatpush1.xpose.msra.mxu0 0.0
    %890 = vmatprep.subr.mxu0 0.0
    %891 = vmatpush1.xpose.msra.mxu0 0.0
    %892 = vmatprep.subr.mxu0 0.0
    %893 = vmatpush1.xpose.msra.mxu0 0.0
    %894 = vmatprep.subr.mxu0 0.0
    %895 = vmatpush1.xpose.msra.mxu0 0.0
    %896 = vmatprep.subr.mxu0 0.0
    %897 = vmatpush1.xpose.msra.mxu0 0.0
    %898 = vmatprep.subr.mxu0 0.0
    %899 = vmatpush1.xpose.msra.mxu0 0.0
    %900 = vmatprep.subr.mxu0 0.0
    %901 = vmatpush1.xpose.msra.mxu0 0.0
    %902 = vmatprep.subr.mxu0 0.0
    %903 = vmatpush1.xpose.msra.mxu0 0.0
    %904 = vmatprep.subr.mxu0 0.0
    %905 = vmatpush1.xpose.msra.mxu0 0.0
    %906 = vmatprep.subr.mxu0 0.0
    %907 = vmatpush1.xpose.msra.mxu0 0.0
    %908 = vmatprep.subr.mxu0 0.0
    %909 = vmatpush1.xpose.msra.mxu0 0.0
    %910 = vmatprep.subr.mxu0 0.0
    %911 = vmatpush1.xpose.msra.mxu0 0.0
    %912 = vmatprep.subr.mxu0 0.0
    %913 = vmatpush1.xpose.msra.mxu0 0.0
    %914 = vmatprep.subr.mxu0 0.0
    %915 = vmatpush1.xpose.msra.mxu0 0.0
    %916 = vmatprep.subr.mxu0 0.0
    %917 = vmatpush1.xpose.msra.mxu0 0.0
    %918 = vmatprep.subr.mxu0 0.0
    %919 = vmatpush1.xpose.msra.mxu0 0.0
    %920 = vmatprep.subr.mxu0 0.0
    %921 = vmatpush1.xpose.msra.mxu0 0.0
    %922 = vmatprep.subr.mxu0 0.0
    %923 = vmatpush1.xpose.msra.mxu0 0.0
    %924 = vmatprep.subr.mxu0 0.0
    %925 = vmatpush1.xpose.msra.mxu0 0.0
    %926 = vmatprep.subr.mxu0 0.0
    %927 = vmatpush1.xpose.msra.mxu0 0.0
    %928 = vmatprep.subr.mxu0 0.0
    %929 = vmatpush1.xpose.msra.mxu0 0.0
    %930 = vmatprep.subr.mxu0 0.0
    %931 = vmatpush1.xpose.msra.mxu0 0.0
    %932 = vmatprep.subr.mxu0 0.0
    %933 = vmatpush1.xpose.msra.mxu0 0.0
    %934 = vmatprep.mubr.f32.mxu0 0.0
    %935 = vmatmul.mubr.f32.gmra.mrb[0].mxu0 %v866
    %v936 = vpop.f32.mrb[0].mxu0
    %v937 = vadd.f32 0.0, %v936
    %v938 = vpop.f32.mrb[0].mxu0
    %939 = vdwg.mxu0
    %v940 = vmul.f32 %v937, 0.25
    %v941 = vsel %vm602, %v940, -inf
    %942 = vmax.xlane.f32.xlu0 %v941
    %v943 = vpop.xlane.xlu0 %942
    %v944 = vsub.f32 %v940, %v943
    %v945 = vmul.f32 %v944, 1.442695
    %v946 = vpow.pop %v945
    %v947 = vsel %vm602, %v946, 0.0
    %948 = vadd.xlane.f32.xlu0 %v947
    %v949 = vpop.xlane.xlu0 %948
    %v950 = vrcp.pop %v949
    %v951 = vmul.f32 %v946, %v950
    %952 = vrot.lane.b32.xlu0 %v520, 64
    %v953 = vpop.permute.xlu0 %952
    %v956 = vsel %vm602, %v951, 0
    %958 = vmatprep.subr.mxu0 0.0
    %959 = vmatpush1.msra.mxu0 %v953
    %960 = vmatprep.subr.mxu0 0.0
    %961 = vmatpush1.msra.mxu0 0.0
    %962 = vmatprep.subr.mxu0 0.0
    %963 = vmatpush1.msra.mxu0 0.0
    %964 = vmatprep.subr.mxu0 0.0
    %965 = vmatpush1.msra.mxu0 0.0
    %966 = vmatprep.subr.mxu0 0.0
    %967 = vmatpush1.msra.mxu0 0.0
    %968 = vmatprep.subr.mxu0 0.0
    %969 = vmatpush1.msra.mxu0 0.0
    %970 = vmatprep.subr.mxu0 0.0
    %971 = vmatpush1.msra.mxu0 0.0
    %972 = vmatprep.subr.mxu0 0.0
    %973 = vmatpush1.msra.mxu0 0.0
    %974 = vmatprep.subr.mxu0 0.0
    %975 = vmatpush1.msra.mxu0 0.0
    %976 = vmatprep.subr.mxu0 0.0
    %977 = vmatpush1.msra.mxu0 0.0
    %978 = vmatprep.subr.mxu0 0.0
    %979 = vmatpush1.msra.mxu0 0.0
    %980 = vmatprep.subr.mxu0 0.0
    %981 = vmatpush1.msra.mxu0 0.0
    %982 = vmatprep.subr.mxu0 0.0
    %983 = vmatpush1.msra.mxu0 0.0
    %984 = vmatprep.subr.mxu0 0.0
    %985 = vmatpush1.msra.mxu0 0.0
    %986 = vmatprep.subr.mxu0 0.0
    %987 = vmatpush1.msra.mxu0 0.0
    %988 = vmatprep.subr.mxu0 0.0
    %989 = vmatpush1.msra.mxu0 0.0
    %990 = vmatprep.subr.mxu0 0.0
    %991 = vmatpush1.msra.mxu0 0.0
    %992 = vmatprep.subr.mxu0 0.0
    %993 = vmatpush1.msra.mxu0 0.0
    %994 = vmatprep.subr.mxu0 0.0
    %995 = vmatpush1.msra.mxu0 0.0
    %996 = vmatprep.subr.mxu0 0.0
    %997 = vmatpush1.msra.mxu0 0.0
    %998 = vmatprep.subr.mxu0 0.0
    %999 = vmatpush1.msra.mxu0 0.0
    %1000 = vmatprep.subr.mxu0 0.0
    %1001 = vmatpush1.msra.mxu0 0.0
    %1002 = vmatprep.subr.mxu0 0.0
    %1003 = vmatpush1.msra.mxu0 0.0
    %1004 = vmatprep.subr.mxu0 0.0
    %1005 = vmatpush1.msra.mxu0 0.0
    %1006 = vmatprep.subr.mxu0 0.0
    %1007 = vmatpush1.msra.mxu0 0.0
    %1008 = vmatprep.subr.mxu0 0.0
    %1009 = vmatpush1.msra.mxu0 0.0
    %1010 = vmatprep.subr.mxu0 0.0
    %1011 = vmatpush1.msra.mxu0 0.0
    %1012 = vmatprep.subr.mxu0 0.0
    %1013 = vmatpush1.msra.mxu0 0.0
    %1014 = vmatprep.subr.mxu0 0.0
    %1015 = vmatpush1.msra.mxu0 0.0
    %1016 = vmatprep.subr.mxu0 0.0
    %1017 = vmatpush1.msra.mxu0 0.0
    %1018 = vmatprep.subr.mxu0 0.0
    %1019 = vmatpush1.msra.mxu0 0.0
    %1020 = vmatprep.subr.mxu0 0.0
    %1021 = vmatpush1.msra.mxu0 0.0
    %1022 = vmatprep.mubr.f32.mxu0 0.0
    %1023 = vmatmul.mubr.f32.gmra.mrb[0].mxu0 %v956
    %v1024 = vpop.f32.mrb[0].mxu0
    %v1025 = vadd.f32 0.0, %v1024
    %v1026 = vpop.f32.mrb[0].mxu0
    %1027 = vdwg.mxu0
    %1028 = vst.msk [vmem:[#allocation2 + $0x8] sm:$0xff] %vm526, %v1025
    %1029 = vrot.lane.b32.xlu0 %v520, 112
    %v1030 = vpop.permute.xlu0 %1029
    %1031 = vrot.lane.b32.xlu0 %v520, 80
    %v1032 = vpop.permute.xlu0 %1031
    %v1033 = vsel %vm526, %v1030, 0
    %v1035 = vsel %vm526, %v1032, 0
    %1037 = vmatprep.subr.mxu0 0.0
    %1038 = vmatpush1.xpose.msra.mxu0 %v1035
    %1039 = vmatprep.subr.mxu0 0.0
    %1040 = vmatpush1.xpose.msra.mxu0 0.0
    %1041 = vmatprep.subr.mxu0 0.0
    %1042 = vmatpush1.xpose.msra.mxu0 0.0
    %1043 = vmatprep.subr.mxu0 0.0
    %1044 = vmatpush1.xpose.msra.mxu0 0.0
    %1045 = vmatprep.subr.mxu0 0.0
    %1046 = vmatpush1.xpose.msra.mxu0 0.0
    %1047 = vmatprep.subr.mxu0 0.0
    %1048 = vmatpush1.xpose.msra.mxu0 0.0
    %1049 = vmatprep.subr.mxu0 0.0
    %1050 = vmatpush1.xpose.msra.mxu0 0.0
    %1051 = vmatprep.subr.mxu0 0.0
    %1052 = vmatpush1.xpose.msra.mxu0 0.0
    %1053 = vmatprep.subr.mxu0 0.0
    %1054 = vmatpush1.xpose.msra.mxu0 0.0
    %1055 = vmatprep.subr.mxu0 0.0
    %1056 = vmatpush1.xpose.msra.mxu0 0.0
    %1057 = vmatprep.subr.mxu0 0.0
    %1058 = vmatpush1.xpose.msra.mxu0 0.0
    %1059 = vmatprep.subr.mxu0 0.0
    %1060 = vmatpush1.xpose.msra.mxu0 0.0
    %1061 = vmatprep.subr.mxu0 0.0
    %1062 = vmatpush1.xpose.msra.mxu0 0.0
    %1063 = vmatprep.subr.mxu0 0.0
    %1064 = vmatpush1.xpose.msra.mxu0 0.0
    %1065 = vmatprep.subr.mxu0 0.0
    %1066 = vmatpush1.xpose.msra.mxu0 0.0
    %1067 = vmatprep.subr.mxu0 0.0
    %1068 = vmatpush1.xpose.msra.mxu0 0.0
    %1069 = vmatprep.subr.mxu0 0.0
    %1070 = vmatpush1.xpose.msra.mxu0 0.0
    %1071 = vmatprep.subr.mxu0 0.0
    %1072 = vmatpush1.xpose.msra.mxu0 0.0
    %1073 = vmatprep.subr.mxu0 0.0
    %1074 = vmatpush1.xpose.msra.mxu0 0.0
    %1075 = vmatprep.subr.mxu0 0.0
    %1076 = vmatpush1.xpose.msra.mxu0 0.0
    %1077 = vmatprep.subr.mxu0 0.0
    %1078 = vmatpush1.xpose.msra.mxu0 0.0
    %1079 = vmatprep.subr.mxu0 0.0
    %1080 = vmatpush1.xpose.msra.mxu0 0.0
    %1081 = vmatprep.subr.mxu0 0.0
    %1082 = vmatpush1.xpose.msra.mxu0 0.0
    %1083 = vmatprep.subr.mxu0 0.0
    %1084 = vmatpush1.xpose.msra.mxu0 0.0
    %1085 = vmatprep.subr.mxu0 0.0
    %1086 = vmatpush1.xpose.msra.mxu0 0.0
    %1087 = vmatprep.subr.mxu0 0.0
    %1088 = vmatpush1.xpose.msra.mxu0 0.0
    %1089 = vmatprep.subr.mxu0 0.0
    %1090 = vmatpush1.xpose.msra.mxu0 0.0
    %1091 = vmatprep.subr.mxu0 0.0
    %1092 = vmatpush1.xpose.msra.mxu0 0.0
    %1093 = vmatprep.subr.mxu0 0.0
    %1094 = vmatpush1.xpose.msra.mxu0 0.0
    %1095 = vmatprep.subr.mxu0 0.0
    %1096 = vmatpush1.xpose.msra.mxu0 0.0
    %1097 = vmatprep.subr.mxu0 0.0
    %1098 = vmatpush1.xpose.msra.mxu0 0.0
    %1099 = vmatprep.subr.mxu0 0.0
    %1100 = vmatpush1.xpose.msra.mxu0 0.0
    %1101 = vmatprep.mubr.f32.mxu0 0.0
    %1102 = vmatmul.mubr.f32.gmra.mrb[0].mxu0 %v1033
    %v1103 = vpop.f32.mrb[0].mxu0
    %v1104 = vadd.f32 0.0, %v1103
    %v1105 = vpop.f32.mrb[0].mxu0
    %1106 = vdwg.mxu0
    %v1107 = vmul.f32 %v1104, 0.25
    %v1108 = vsel %vm602, %v1107, -inf
    %1109 = vmax.xlane.f32.xlu0 %v1108
    %v1110 = vpop.xlane.xlu0 %1109
    %v1111 = vsub.f32 %v1107, %v1110
    %v1112 = vmul.f32 %v1111, 1.442695
    %v1113 = vpow.pop %v1112
    %v1114 = vsel %vm602, %v1113, 0.0
    %1115 = vadd.xlane.f32.xlu0 %v1114
    %v1116 = vpop.xlane.xlu0 %1115
    %v1117 = vrcp.pop %v1116
    %v1118 = vmul.f32 %v1113, %v1117
    %1119 = vrot.lane.b32.xlu0 %v520, 48
    %v1120 = vpop.permute.xlu0 %1119
    %v1123 = vsel %vm602, %v1118, 0
    %1125 = vmatprep.subr.mxu0 0.0
    %1126 = vmatpush1.msra.mxu0 %v1120
    %1127 = vmatprep.subr.mxu0 0.0
    %1128 = vmatpush1.msra.mxu0 0.0
    %1129 = vmatprep.subr.mxu0 0.0
    %1130 = vmatpush1.msra.mxu0 0.0
    %1131 = vmatprep.subr.mxu0 0.0
    %1132 = vmatpush1.msra.mxu0 0.0
    %1133 = vmatprep.subr.mxu0 0.0
    %1134 = vmatpush1.msra.mxu0 0.0
    %1135 = vmatprep.subr.mxu0 0.0
    %1136 = vmatpush1.msra.mxu0 0.0
    %1137 = vmatprep.subr.mxu0 0.0
    %1138 = vmatpush1.msra.mxu0 0.0
    %1139 = vmatprep.subr.mxu0 0.0
    %1140 = vmatpush1.msra.mxu0 0.0
    %1141 = vmatprep.subr.mxu0 0.0
    %1142 = vmatpush1.msra.mxu0 0.0
    %1143 = vmatprep.subr.mxu0 0.0
    %1144 = vmatpush1.msra.mxu0 0.0
    %1145 = vmatprep.subr.mxu0 0.0
    %1146 = vmatpush1.msra.mxu0 0.0
    %1147 = vmatprep.subr.mxu0 0.0
    %1148 = vmatpush1.msra.mxu0 0.0
    %1149 = vmatprep.subr.mxu0 0.0
    %1150 = vmatpush1.msra.mxu0 0.0
    %1151 = vmatprep.subr.mxu0 0.0
    %1152 = vmatpush1.msra.mxu0 0.0
    %1153 = vmatprep.subr.mxu0 0.0
    %1154 = vmatpush1.msra.mxu0 0.0
    %1155 = vmatprep.subr.mxu0 0.0
    %1156 = vmatpush1.msra.mxu0 0.0
    %1157 = vmatprep.subr.mxu0 0.0
    %1158 = vmatpush1.msra.mxu0 0.0
    %1159 = vmatprep.subr.mxu0 0.0
    %1160 = vmatpush1.msra.mxu0 0.0
    %1161 = vmatprep.subr.mxu0 0.0
    %1162 = vmatpush1.msra.mxu0 0.0
    %1163 = vmatprep.subr.mxu0 0.0
    %1164 = vmatpush1.msra.mxu0 0.0
    %1165 = vmatprep.subr.mxu0 0.0
    %1166 = vmatpush1.msra.mxu0 0.0
    %1167 = vmatprep.subr.mxu0 0.0
    %1168 = vmatpush1.msra.mxu0 0.0
    %1169 = vmatprep.subr.mxu0 0.0
    %1170 = vmatpush1.msra.mxu0 0.0
    %1171 = vmatprep.subr.mxu0 0.0
    %1172 = vmatpush1.msra.mxu0 0.0
    %1173 = vmatprep.subr.mxu0 0.0
    %1174 = vmatpush1.msra.mxu0 0.0
    %1175 = vmatprep.subr.mxu0 0.0
    %1176 = vmatpush1.msra.mxu0 0.0
    %1177 = vmatprep.subr.mxu0 0.0
    %1178 = vmatpush1.msra.mxu0 0.0
    %1179 = vmatprep.subr.mxu0 0.0
    %1180 = vmatpush1.msra.mxu0 0.0
    %1181 = vmatprep.subr.mxu0 0.0
    %1182 = vmatpush1.msra.mxu0 0.0
    %1183 = vmatprep.subr.mxu0 0.0
    %1184 = vmatpush1.msra.mxu0 0.0
    %1185 = vmatprep.subr.mxu0 0.0
    %1186 = vmatpush1.msra.mxu0 0.0
    %1187 = vmatprep.subr.mxu0 0.0
    %1188 = vmatpush1.msra.mxu0 0.0
    %1189 = vmatprep.mubr.f32.mxu0 0.0
    %1190 = vmatmul.mubr.f32.gmra.mrb[0].mxu0 %v1123
    %v1191 = vpop.f32.mrb[0].mxu0
    %v1192 = vadd.f32 0.0, %v1191
    %v1193 = vpop.f32.mrb[0].mxu0
    %1194 = vdwg.mxu0
    %1196 = vrot.lane.b32.xlu0 %v1192, 16
    %v1197 = vpop.permute.xlu0 %1196
    %1199 = vst.msk [vmem:[#allocation2 + $0x8] sm:$0xff] %vm861, %v1197
    %v1200 = vld [vmem:[#allocation2] sm:$0xff]
    %v1201 = vld [vmem:[#allocation2 + $0x8] sm:$0xff]
    %v1202 = vld [vmem:[%s13] sm:$0xff]
    %v1203 = vld [vmem:[%s13 + $0x8] sm:$0xff]
    %v1204 = vld [vmem:[%s13 + $0x10] sm:$0xff]
    %v1205 = vld [vmem:[%s13 + $0x18] sm:$0xff]
    %v1206 = vld [vmem:[#allocation10] sm:$0x1]
    %v1208 = vlaneseq
    %v1209 = vshrl.u32 %v1208, 7
    %v1210 = vsub.s32 0, %v1209
    %v1211 = vrot.slane %v1206, %v1210
    %v1214 = vsel %vm387, %v1200, 0
    %v1217 = vsel %vm387, %v1201, 0
    %1219 = vmatprep.subr.mxu0 0.0
    %1220 = vmatpush1.msra.mxu0 %v1202
    %1221 = vmatprep.subr.mxu0 0.0
    %1222 = vmatpush1.msra.mxu0 %v1203
    %1223 = vmatprep.subr.mxu0 0.0
    %1224 = vmatpush1.msra.mxu0 %v1204
    %1225 = vmatprep.subr.mxu0 0.0
    %1226 = vmatpush1.msra.mxu0 %v1205
    %1227 = vmatprep.subr.mxu0 0.0
    %1228 = vmatpush1.msra.mxu0 0.0
    %1229 = vmatprep.subr.mxu0 0.0
    %1230 = vmatpush1.msra.mxu0 0.0
    %1231 = vmatprep.subr.mxu0 0.0
    %1232 = vmatpush1.msra.mxu0 0.0
    %1233 = vmatprep.subr.mxu0 0.0
    %1234 = vmatpush1.msra.mxu0 0.0
    %1235 = vmatprep.subr.mxu0 0.0
    %1236 = vmatpush1.msra.mxu0 0.0
    %1237 = vmatprep.subr.mxu0 0.0
    %1238 = vmatpush1.msra.mxu0 0.0
    %1239 = vmatprep.subr.mxu0 0.0
    %1240 = vmatpush1.msra.mxu0 0.0
    %1241 = vmatprep.subr.mxu0 0.0
    %1242 = vmatpush1.msra.mxu0 0.0
    %1243 = vmatprep.subr.mxu0 0.0
    %1244 = vmatpush1.msra.mxu0 0.0
    %1245 = vmatprep.subr.mxu0 0.0
    %1246 = vmatpush1.msra.mxu0 0.0
    %1247 = vmatprep.subr.mxu0 0.0
    %1248 = vmatpush1.msra.mxu0 0.0
    %1249 = vmatprep.subr.mxu0 0.0
    %1250 = vmatpush1.msra.mxu0 0.0
    %1251 = vmatprep.subr.mxu0 0.0
    %1252 = vmatpush1.msra.mxu0 0.0
    %1253 = vmatprep.subr.mxu0 0.0
    %1254 = vmatpush1.msra.mxu0 0.0
    %1255 = vmatprep.subr.mxu0 0.0
    %1256 = vmatpush1.msra.mxu0 0.0
    %1257 = vmatprep.subr.mxu0 0.0
    %1258 = vmatpush1.msra.mxu0 0.0
    %1259 = vmatprep.subr.mxu0 0.0
    %1260 = vmatpush1.msra.mxu0 0.0
    %1261 = vmatprep.subr.mxu0 0.0
    %1262 = vmatpush1.msra.mxu0 0.0
    %1263 = vmatprep.subr.mxu0 0.0
    %1264 = vmatpush1.msra.mxu0 0.0
    %1265 = vmatprep.subr.mxu0 0.0
    %1266 = vmatpush1.msra.mxu0 0.0
    %1267 = vmatprep.subr.mxu0 0.0
    %1268 = vmatpush1.msra.mxu0 0.0
    %1269 = vmatprep.subr.mxu0 0.0
    %1270 = vmatpush1.msra.mxu0 0.0
    %1271 = vmatprep.subr.mxu0 0.0
    %1272 = vmatpush1.msra.mxu0 0.0
    %1273 = vmatprep.subr.mxu0 0.0
    %1274 = vmatpush1.msra.mxu0 0.0
    %1275 = vmatprep.subr.mxu0 0.0
    %1276 = vmatpush1.msra.mxu0 0.0
    %1277 = vmatprep.subr.mxu0 0.0
    %1278 = vmatpush1.msra.mxu0 0.0
    %1279 = vmatprep.subr.mxu0 0.0
    %1280 = vmatpush1.msra.mxu0 0.0
    %1281 = vmatprep.subr.mxu0 0.0
    %1282 = vmatpush1.msra.mxu0 0.0
    %1283 = vmatprep.mubr.f32.mxu0 0.0
    %1284 = vmatmul.mubr.f32.gmra.mrb[0].mxu0 %v1214
    %v1285 = vpop.f32.mrb[0].mxu0
    %v1286 = vadd.f32 %v1211, %v1285
    %v1287 = vpop.f32.mrb[0].mxu0
    %1288 = vmatprep.mubr.f32.mxu0 0.0
    %1289 = vmatmul.mubr.f32.gmra.mrb[0].mxu0 %v1217
    %v1290 = vpop.f32.mrb[0].mxu0
    %v1291 = vadd.f32 %v1211, %v1290
    %v1292 = vpop.f32.mrb[0].mxu0
    %1293 = vdwg.mxu0
    %v1294 = vadd.f32 %v429, %v1286
    %v1295 = vadd.f32 %v430, %v1291
    %v1296 = vld [vmem:[#allocation12] sm:$0x1]
    %v1297 = vld [vmem:[#allocation13] sm:$0x1]
    %v1298 = vsel %vm387, %v1294, 0.0
    %1299 = vadd.xlane.f32.xlu0 %v1298
    %v1300 = vpop.xlane.xlu0 %1299
    %v1301 = vsel %vm387, %v1295, 0.0
    %1302 = vadd.xlane.f32.xlu0 %v1301
    %v1303 = vpop.xlane.xlu0 %1302
    %v1304 = vmul.f32 %v1300, %v394
    %v1305 = vmul.f32 %v1303, %v394
    %v1306 = vsub.f32 %v1294, %v1304
    %v1307 = vsub.f32 %v1295, %v1305
    %v1308 = vmul.f32 %v1306, %v1306
    %v1309 = vmul.f32 %v1307, %v1307
    %v1310 = vsel %vm387, %v1308, 0.0
    %1311 = vadd.xlane.f32.xlu0 %v1310
    %v1312 = vpop.xlane.xlu0 %1311
    %v1313 = vsel %vm387, %v1309, 0.0
    %1314 = vadd.xlane.f32.xlu0 %v1313
    %v1315 = vpop.xlane.xlu0 %1314
    %v1316 = vmul.f32 %v1312, %v394
    %v1317 = vmul.f32 %v1315, %v394
    %v1318 = vadd.f32 %v1316, 1e-05
    %v1319 = vadd.f32 %v1317, 1e-05
    %v1320 = vrsqrt.pop %v1318
    %v1321 = vrsqrt.pop %v1319
    %v1322 = vmul.f32 %v1306, %v1320
    %v1323 = vmul.f32 %v1307, %v1321
    %v1325 = vlaneseq
    %v1326 = vshrl.u32 %v1325, 7
    %v1327 = vsub.s32 0, %v1326
    %v1328 = vrot.slane %v1296, %v1327
    %v1330 = vmul.f32 %v1322, %v1328
    %v1331 = vmul.f32 %v1323, %v1328
    %v1333 = vlaneseq
    %v1334 = vshrl.u32 %v1333, 7
    %v1335 = vsub.s32 0, %v1334
    %v1336 = vrot.slane %v1297, %v1335
    %v1338 = vadd.f32 %v1330, %v1336
    %v1339 = vadd.f32 %v1331, %v1336
    %v1340 = vld [vmem:[%s21] sm:$0xff]
    %v1341 = vld [vmem:[%s21 + $0x8] sm:$0xff]
    %v1342 = vld [vmem:[%s21 + $0x10] sm:$0xff]
    %v1343 = vld [vmem:[%s21 + $0x18] sm:$0xff]
    %v1344 = vld [vmem:[#allocation15] sm:$0x1]
    %v1346 = vlaneseq
    %v1347 = vshrl.u32 %v1346, 7
    %v1348 = vsub.s32 0, %v1347
    %v1349 = vrot.slane %v1344, %v1348
    %v1352 = vsel %vm387, %v1338, 0
    %v1355 = vsel %vm387, %v1339, 0
    %1357 = vmatprep.subr.mxu0 0.0
    %1358 = vmatpush1.msra.mxu0 %v1340
    %1359 = vmatprep.subr.mxu0 0.0
    %1360 = vmatpush1.msra.mxu0 %v1341
    %1361 = vmatprep.subr.mxu0 0.0
    %1362 = vmatpush1.msra.mxu0 %v1342
    %1363 = vmatprep.subr.mxu0 0.0
    %1364 = vmatpush1.msra.mxu0 %v1343
    %1365 = vmatprep.subr.mxu0 0.0
    %1366 = vmatpush1.msra.mxu0 0.0
    %1367 = vmatprep.subr.mxu0 0.0
    %1368 = vmatpush1.msra.mxu0 0.0
    %1369 = vmatprep.subr.mxu0 0.0
    %1370 = vmatpush1.msra.mxu0 0.0
    %1371 = vmatprep.subr.mxu0 0.0
    %1372 = vmatpush1.msra.mxu0 0.0
    %1373 = vmatprep.subr.mxu0 0.0
    %1374 = vmatpush1.msra.mxu0 0.0
    %1375 = vmatprep.subr.mxu0 0.0
    %1376 = vmatpush1.msra.mxu0 0.0
    %1377 = vmatprep.subr.mxu0 0.0
    %1378 = vmatpush1.msra.mxu0 0.0
    %1379 = vmatprep.subr.mxu0 0.0
    %1380 = vmatpush1.msra.mxu0 0.0
    %1381 = vmatprep.subr.mxu0 0.0
    %1382 = vmatpush1.msra.mxu0 0.0
    %1383 = vmatprep.subr.mxu0 0.0
    %1384 = vmatpush1.msra.mxu0 0.0
    %1385 = vmatprep.subr.mxu0 0.0
    %1386 = vmatpush1.msra.mxu0 0.0
    %1387 = vmatprep.subr.mxu0 0.0
    %1388 = vmatpush1.msra.mxu0 0.0
    %1389 = vmatprep.subr.mxu0 0.0
    %1390 = vmatpush1.msra.mxu0 0.0
    %1391 = vmatprep.subr.mxu0 0.0
    %1392 = vmatpush1.msra.mxu0 0.0
    %1393 = vmatprep.subr.mxu0 0.0
    %1394 = vmatpush1.msra.mxu0 0.0
    %1395 = vmatprep.subr.mxu0 0.0
    %1396 = vmatpush1.msra.mxu0 0.0
    %1397 = vmatprep.subr.mxu0 0.0
    %1398 = vmatpush1.msra.mxu0 0.0
    %1399 = vmatprep.subr.mxu0 0.0
    %1400 = vmatpush1.msra.mxu0 0.0
    %1401 = vmatprep.subr.mxu0 0.0
    %1402 = vmatpush1.msra.mxu0 0.0
    %1403 = vmatprep.subr.mxu0 0.0
    %1404 = vmatpush1.msra.mxu0 0.0
    %1405 = vmatprep.subr.mxu0 0.0
    %1406 = vmatpush1.msra.mxu0 0.0
    %1407 = vmatprep.subr.mxu0 0.0
    %1408 = vmatpush1.msra.mxu0 0.0
    %1409 = vmatprep.subr.mxu0 0.0
    %1410 = vmatpush1.msra.mxu0 0.0
    %1411 = vmatprep.subr.mxu0 0.0
    %1412 = vmatpush1.msra.mxu0 0.0
    %1413 = vmatprep.subr.mxu0 0.0
    %1414 = vmatpush1.msra.mxu0 0.0
    %1415 = vmatprep.subr.mxu0 0.0
    %1416 = vmatpush1.msra.mxu0 0.0
    %1417 = vmatprep.subr.mxu0 0.0
    %1418 = vmatpush1.msra.mxu0 0.0
    %1419 = vmatprep.subr.mxu0 0.0
    %1420 = vmatpush1.msra.mxu0 0.0
    %1421 = vmatprep.mubr.f32.mxu0 0.0
    %1422 = vmatmul.mubr.f32.gmra.mrb[0].mxu0 %v1352
    %v1423 = vpop.f32.mrb[0].mxu0
    %v1424 = vadd.f32 %v1349, %v1423
    %v1425 = vpop.f32.mrb[0].mxu0
    %1426 = vmatprep.mubr.f32.mxu0 0.0
    %1427 = vmatmul.mubr.f32.gmra.mrb[0].mxu0 %v1355
    %v1428 = vpop.f32.mrb[0].mxu0
    %v1429 = vadd.f32 %v1349, %v1428
    %v1430 = vpop.f32.mrb[0].mxu0
    %1431 = vdwg.mxu0
    %v1432 = vmul.f32 %v1424, %v1424
    %v1433 = vmul.f32 %v1429, %v1429
    %v1434 = vmul.f32 %v1424, %v1432
    %v1435 = vmul.f32 %v1429, %v1433
    %v1436 = vmul.f32 %v1434, 0.044715
    %v1437 = vmul.f32 %v1435, 0.044715
    %v1438 = vadd.f32 %v1424, %v1436
    %v1439 = vadd.f32 %v1429, %v1437
    %v1440 = vmul.f32 %v1438, 0.7978846
    %v1441 = vmul.f32 %v1439, 0.7978846
    %v1442 = vtanh.pop %v1440
    %v1443 = vtanh.pop %v1441
    %v1444 = vadd.f32 %v1442, 1.0
    %v1445 = vadd.f32 %v1443, 1.0
    %v1446 = vmul.f32 %v1444, 0.5
    %v1447 = vmul.f32 %v1445, 0.5
    %v1448 = vmul.f32 %v1424, %v1446
    %v1449 = vmul.f32 %v1429, %v1447
    %v1450 = vld [vmem:[%s25] sm:$0xff]
    %v1451 = vld [vmem:[%s25 + $0x8] sm:$0xff]
    %v1452 = vld [vmem:[%s25 + $0x10] sm:$0xff]
    %v1453 = vld [vmem:[%s25 + $0x18] sm:$0xff]
    %v1454 = vld [vmem:[%s25 + $0x20] sm:$0xff]
    %v1455 = vld [vmem:[%s25 + $0x28] sm:$0xff]
    %v1456 = vld [vmem:[%s25 + $0x30] sm:$0xff]
    %v1457 = vld [vmem:[%s25 + $0x38] sm:$0xff]
    %v1458 = vld [vmem:[#allocation16] sm:$0x1]
    %v1460 = vlaneseq
    %v1461 = vshrl.u32 %v1460, 7
    %v1462 = vsub.s32 0, %v1461
    %v1463 = vrot.slane %v1458, %v1462
    %vm1465 = vcmask 523264
    %v1467 = vsel %vm1465, %v1448, 0
    %v1470 = vsel %vm1465, %v1449, 0
    %1472 = vmatprep.subr.mxu0 0.0
    %1473 = vmatpush1.msra.mxu0 %v1450
    %1474 = vmatprep.subr.mxu0 0.0
    %1475 = vmatpush1.msra.mxu0 %v1451
    %1476 = vmatprep.subr.mxu0 0.0
    %1477 = vmatpush1.msra.mxu0 %v1452
    %1478 = vmatprep.subr.mxu0 0.0
    %1479 = vmatpush1.msra.mxu0 %v1453
    %1480 = vmatprep.subr.mxu0 0.0
    %1481 = vmatpush1.msra.mxu0 %v1454
    %1482 = vmatprep.subr.mxu0 0.0
    %1483 = vmatpush1.msra.mxu0 %v1455
    %1484 = vmatprep.subr.mxu0 0.0
    %1485 = vmatpush1.msra.mxu0 %v1456
    %1486 = vmatprep.subr.mxu0 0.0
    %1487 = vmatpush1.msra.mxu0 %v1457
    %1488 = vmatprep.subr.mxu0 0.0
    %1489 = vmatpush1.msra.mxu0 0.0
    %1490 = vmatprep.subr.mxu0 0.0
    %1491 = vmatpush1.msra.mxu0 0.0
    %1492 = vmatprep.subr.mxu0 0.0
    %1493 = vmatpush1.msra.mxu0 0.0
    %1494 = vmatprep.subr.mxu0 0.0
    %1495 = vmatpush1.msra.mxu0 0.0
    %1496 = vmatprep.subr.mxu0 0.0
    %1497 = vmatpush1.msra.mxu0 0.0
    %1498 = vmatprep.subr.mxu0 0.0
    %1499 = vmatpush1.msra.mxu0 0.0
    %1500 = vmatprep.subr.mxu0 0.0
    %1501 = vmatpush1.msra.mxu0 0.0
    %1502 = vmatprep.subr.mxu0 0.0
    %1503 = vmatpush1.msra.mxu0 0.0
    %1504 = vmatprep.subr.mxu0 0.0
    %1505 = vmatpush1.msra.mxu0 0.0
    %1506 = vmatprep.subr.mxu0 0.0
    %1507 = vmatpush1.msra.mxu0 0.0
    %1508 = vmatprep.subr.mxu0 0.0
    %1509 = vmatpush1.msra.mxu0 0.0
    %1510 = vmatprep.subr.mxu0 0.0
    %1511 = vmatpush1.msra.mxu0 0.0
    %1512 = vmatprep.subr.mxu0 0.0
    %1513 = vmatpush1.msra.mxu0 0.0
    %1514 = vmatprep.subr.mxu0 0.0
    %1515 = vmatpush1.msra.mxu0 0.0
    %1516 = vmatprep.subr.mxu0 0.0
    %1517 = vmatpush1.msra.mxu0 0.0
    %1518 = vmatprep.subr.mxu0 0.0
    %1519 = vmatpush1.msra.mxu0 0.0
    %1520 = vmatprep.subr.mxu0 0.0
    %1521 = vmatpush1.msra.mxu0 0.0
    %1522 = vmatprep.subr.mxu0 0.0
    %1523 = vmatpush1.msra.mxu0 0.0
    %1524 = vmatprep.subr.mxu0 0.0
    %1525 = vmatpush1.msra.mxu0 0.0
    %1526 = vmatprep.subr.mxu0 0.0
    %1527 = vmatpush1.msra.mxu0 0.0
    %1528 = vmatprep.subr.mxu0 0.0
    %1529 = vmatpush1.msra.mxu0 0.0
    %1530 = vmatprep.subr.mxu0 0.0
    %1531 = vmatpush1.msra.mxu0 0.0
    %1532 = vmatprep.subr.mxu0 0.0
    %1533 = vmatpush1.msra.mxu0 0.0
    %1534 = vmatprep.subr.mxu0 0.0
    %1535 = vmatpush1.msra.mxu0 0.0
    %1536 = vmatprep.mubr.f32.mxu0 0.0
    %1537 = vmatmul.mubr.f32.gmra.mrb[0].mxu0 %v1467
    %v1538 = vpop.f32.mrb[0].mxu0
    %v1539 = vadd.f32 %v1463, %v1538
    %v1540 = vpop.f32.mrb[0].mxu0
    %1541 = vmatprep.mubr.f32.mxu0 0.0
    %1542 = vmatmul.mubr.f32.gmra.mrb[0].mxu0 %v1470
    %v1543 = vpop.f32.mrb[0].mxu0
    %v1544 = vadd.f32 %v1463, %v1543
    %v1545 = vpop.f32.mrb[0].mxu0
    %1546 = vdwg.mxu0
    %v1547 = vadd.f32 %v1338, %v1539
    %v1548 = vadd.f32 %v1339, %v1544
    %v1549 = vld [vmem:[#allocation18] sm:$0x1]
    %v1550 = vld [vmem:[#allocation19] sm:$0x1]
    %v1551 = vsel %vm387, %v1547, 0.0
    %1552 = vadd.xlane.f32.xlu0 %v1551
    %v1553 = vpop.xlane.xlu0 %1552
    %v1554 = vsel %vm387, %v1548, 0.0
    %1555 = vadd.xlane.f32.xlu0 %v1554
    %v1556 = vpop.xlane.xlu0 %1555
    %v1557 = vmul.f32 %v1553, %v394
    %v1558 = vmul.f32 %v1556, %v394
    %v1559 = vsub.f32 %v1547, %v1557
    %v1560 = vsub.f32 %v1548, %v1558
    %v1561 = vmul.f32 %v1559, %v1559
    %v1562 = vmul.f32 %v1560, %v1560
    %v1563 = vsel %vm387, %v1561, 0.0
    %1564 = vadd.xlane.f32.xlu0 %v1563
    %v1565 = vpop.xlane.xlu0 %1564
    %v1566 = vsel %vm387, %v1562, 0.0
    %1567 = vadd.xlane.f32.xlu0 %v1566
    %v1568 = vpop.xlane.xlu0 %1567
    %v1569 = vmul.f32 %v1565, %v394
    %v1570 = vmul.f32 %v1568, %v394
    %v1571 = vadd.f32 %v1569, 1e-05
    %v1572 = vadd.f32 %v1570, 1e-05
    %v1573 = vrsqrt.pop %v1571
    %v1574 = vrsqrt.pop %v1572
    %v1575 = vmul.f32 %v1559, %v1573
    %v1576 = vmul.f32 %v1560, %v1574
    %v1578 = vlaneseq
    %v1579 = vshrl.u32 %v1578, 7
    %v1580 = vsub.s32 0, %v1579
    %v1581 = vrot.slane %v1549, %v1580
    %v1583 = vmul.f32 %v1575, %v1581
    %v1584 = vmul.f32 %v1576, %v1581
    %v1586 = vlaneseq
    %v1587 = vshrl.u32 %v1586, 7
    %v1588 = vsub.s32 0, %v1587
    %v1589 = vrot.slane %v1550, %v1588
    %v1591 = vadd.f32 %v1583, %v1589
    %v1592 = vadd.f32 %v1584, %v1589
    %v1593 = vld [vmem:[#allocation7] sm:$0xff]
    %v1594 = vld [vmem:[#allocation7 + $0x8] sm:$0xff]
    %v1595 = vld [vmem:[#allocation21] sm:$0x1]
    %v1596 = vld [vmem:[#allocation22] sm:$0x1]
    %v1597 = vsel %vm387, %v1593, 0.0
    %1598 = vadd.xlane.f32.xlu0 %v1597
    %v1599 = vpop.xlane.xlu0 %1598
    %v1600 = vsel %vm387, %v1594, 0.0
    %1601 = vadd.xlane.f32.xlu0 %v1600
    %v1602 = vpop.xlane.xlu0 %1601
    %v1603 = vmul.f32 %v1599, %v394
    %v1604 = vmul.f32 %v1602, %v394
    %v1605 = vsub.f32 %v1593, %v1603
    %v1606 = vsub.f32 %v1594, %v1604
    %v1607 = vmul.f32 %v1605, %v1605
    %v1608 = vmul.f32 %v1606, %v1606
    %v1609 = vsel %vm387, %v1607, 0.0
    %1610 = vadd.xlane.f32.xlu0 %v1609
    %v1611 = vpop.xlane.xlu0 %1610
    %v1612 = vsel %vm387, %v1608, 0.0
    %1613 = vadd.xlane.f32.xlu0 %v1612
    %v1614 = vpop.xlane.xlu0 %1613
    %v1615 = vmul.f32 %v1611, %v394
    %v1616 = vmul.f32 %v1614, %v394
    %v1617 = vadd.f32 %v1615, 1e-05
    %v1618 = vadd.f32 %v1616, 1e-05
    %v1619 = vrsqrt.pop %v1617
    %v1620 = vrsqrt.pop %v1618
    %v1621 = vmul.f32 %v1605, %v1619
    %v1622 = vmul.f32 %v1606, %v1620
    %v1624 = vlaneseq
    %v1625 = vshrl.u32 %v1624, 7
    %v1626 = vsub.s32 0, %v1625
    %v1627 = vrot.slane %v1595, %v1626
    %v1629 = vmul.f32 %v1621, %v1627
    %v1630 = vmul.f32 %v1622, %v1627
    %v1632 = vlaneseq
    %v1633 = vshrl.u32 %v1632, 7
    %v1634 = vsub.s32 0, %v1633
    %v1635 = vrot.slane %v1596, %v1634
    %v1637 = vadd.f32 %v1629, %v1635
    %v1638 = vadd.f32 %v1630, %v1635
    %v1639 = vlaneseq
    %v1640 = vshrl.u32 %v1639, 7
    %v1641 = vlaneseq
    %v1642 = vand.u32 %v1641, 127
    %vm1643 = vcmp.ge.s32.totalorder %v1640, %v1642
    %v1644 = vsel %vm1643, 0.0, -1e+09
    %v1645 = vld [vmem:[%s37] sm:$0xff]
    %v1646 = vld [vmem:[%s37 + $0x8] sm:$0xff]
    %v1647 = vld [vmem:[%s37 + $0x10] sm:$0xff]
    %v1648 = vld [vmem:[%s37 + $0x18] sm:$0xff]
    %v1649 = vld [vmem:[#allocation24] sm:$0x1]
    %v1651 = vlaneseq
    %v1652 = vshrl.u32 %v1651, 7
    %v1653 = vsub.s32 0, %v1652
    %v1654 = vrot.slane %v1649, %v1653
    %v1657 = vsel %vm387, %v1637, 0
    %v1660 = vsel %vm387, %v1638, 0
    %1662 = vmatprep.subr.mxu0 0.0
    %1663 = vmatpush1.msra.mxu0 %v1645
    %1664 = vmatprep.subr.mxu0 0.0
    %1665 = vmatpush1.msra.mxu0 %v1646
    %1666 = vmatprep.subr.mxu0 0.0
    %1667 = vmatpush1.msra.mxu0 %v1647
    %1668 = vmatprep.subr.mxu0 0.0
    %1669 = vmatpush1.msra.mxu0 %v1648
    %1670 = vmatprep.subr.mxu0 0.0
    %1671 = vmatpush1.msra.mxu0 0.0
    %1672 = vmatprep.subr.mxu0 0.0
    %1673 = vmatpush1.msra.mxu0 0.0
    %1674 = vmatprep.subr.mxu0 0.0
    %1675 = vmatpush1.msra.mxu0 0.0
    %1676 = vmatprep.subr.mxu0 0.0
    %1677 = vmatpush1.msra.mxu0 0.0
    %1678 = vmatprep.subr.mxu0 0.0
    %1679 = vmatpush1.msra.mxu0 0.0
    %1680 = vmatprep.subr.mxu0 0.0
    %1681 = vmatpush1.msra.mxu0 0.0
    %1682 = vmatprep.subr.mxu0 0.0
    %1683 = vmatpush1.msra.mxu0 0.0
    %1684 = vmatprep.subr.mxu0 0.0
    %1685 = vmatpush1.msra.mxu0 0.0
    %1686 = vmatprep.subr.mxu0 0.0
    %1687 = vmatpush1.msra.mxu0 0.0
    %1688 = vmatprep.subr.mxu0 0.0
    %1689 = vmatpush1.msra.mxu0 0.0
    %1690 = vmatprep.subr.mxu0 0.0
    %1691 = vmatpush1.msra.mxu0 0.0
    %1692 = vmatprep.subr.mxu0 0.0
    %1693 = vmatpush1.msra.mxu0 0.0
    %1694 = vmatprep.subr.mxu0 0.0
    %1695 = vmatpush1.msra.mxu0 0.0
    %1696 = vmatprep.subr.mxu0 0.0
    %1697 = vmatpush1.msra.mxu0 0.0
    %1698 = vmatprep.subr.mxu0 0.0
    %1699 = vmatpush1.msra.mxu0 0.0
    %1700 = vmatprep.subr.mxu0 0.0
    %1701 = vmatpush1.msra.mxu0 0.0
    %1702 = vmatprep.subr.mxu0 0.0
    %1703 = vmatpush1.msra.mxu0 0.0
    %1704 = vmatprep.subr.mxu0 0.0
    %1705 = vmatpush1.msra.mxu0 0.0
    %1706 = vmatprep.subr.mxu0 0.0
    %1707 = vmatpush1.msra.mxu0 0.0
    %1708 = vmatprep.subr.mxu0 0.0
    %1709 = vmatpush1.msra.mxu0 0.0
    %1710 = vmatprep.subr.mxu0 0.0
    %1711 = vmatpush1.msra.mxu0 0.0
    %1712 = vmatprep.subr.mxu0 0.0
    %1713 = vmatpush1.msra.mxu0 0.0
    %1714 = vmatprep.subr.mxu0 0.0
    %1715 = vmatpush1.msra.mxu0 0.0
    %1716 = vmatprep.subr.mxu0 0.0
    %1717 = vmatpush1.msra.mxu0 0.0
    %1718 = vmatprep.subr.mxu0 0.0
    %1719 = vmatpush1.msra.mxu0 0.0
    %1720 = vmatprep.subr.mxu0 0.0
    %1721 = vmatpush1.msra.mxu0 0.0
    %1722 = vmatprep.subr.mxu0 0.0
    %1723 = vmatpush1.msra.mxu0 0.0
    %1724 = vmatprep.subr.mxu0 0.0
    %1725 = vmatpush1.msra.mxu0 0.0
    %1726 = vmatprep.mubr.f32.mxu0 0.0
    %1727 = vmatmul.mubr.f32.gmra.mrb[0].mxu0 %v1657
    %v1728 = vpop.f32.mrb[0].mxu0
    %v1729 = vadd.f32 %v1654, %v1728
    %v1730 = vpop.f32.mrb[0].mxu0
    %1731 = vmatprep.mubr.f32.mxu0 0.0
    %1732 = vmatmul.mubr.f32.gmra.mrb[0].mxu0 %v1660
    %v1733 = vpop.f32.mrb[0].mxu0
    %v1734 = vadd.f32 %v1654, %v1733
    %v1735 = vpop.f32.mrb[0].mxu0
    %1736 = vdwg.mxu0
    %1738 = vrot.lane.b32.xlu0 %v1729, 96
    %v1739 = vpop.permute.xlu0 %1738
    %v1740 = vsel %vm526, %v1729, 0
    %v1742 = vsel %vm526, %v1739, 0
    %1744 = vmatprep.subr.mxu0 0.0
    %1745 = vmatpush1.xpose.msra.mxu0 %v1742
    %1746 = vmatprep.subr.mxu0 0.0
    %1747 = vmatpush1.xpose.msra.mxu0 0.0
    %1748 = vmatprep.subr.mxu0 0.0
    %1749 = vmatpush1.xpose.msra.mxu0 0.0
    %1750 = vmatprep.subr.mxu0 0.0
    %1751 = vmatpush1.xpose.msra.mxu0 0.0
    %1752 = vmatprep.subr.mxu0 0.0
    %1753 = vmatpush1.xpose.msra.mxu0 0.0
    %1754 = vmatprep.subr.mxu0 0.0
    %1755 = vmatpush1.xpose.msra.mxu0 0.0
    %1756 = vmatprep.subr.mxu0 0.0
    %1757 = vmatpush1.xpose.msra.mxu0 0.0
    %1758 = vmatprep.subr.mxu0 0.0
    %1759 = vmatpush1.xpose.msra.mxu0 0.0
    %1760 = vmatprep.subr.mxu0 0.0
    %1761 = vmatpush1.xpose.msra.mxu0 0.0
    %1762 = vmatprep.subr.mxu0 0.0
    %1763 = vmatpush1.xpose.msra.mxu0 0.0
    %1764 = vmatprep.subr.mxu0 0.0
    %1765 = vmatpush1.xpose.msra.mxu0 0.0
    %1766 = vmatprep.subr.mxu0 0.0
    %1767 = vmatpush1.xpose.msra.mxu0 0.0
    %1768 = vmatprep.subr.mxu0 0.0
    %1769 = vmatpush1.xpose.msra.mxu0 0.0
    %1770 = vmatprep.subr.mxu0 0.0
    %1771 = vmatpush1.xpose.msra.mxu0 0.0
    %1772 = vmatprep.subr.mxu0 0.0
    %1773 = vmatpush1.xpose.msra.mxu0 0.0
    %1774 = vmatprep.subr.mxu0 0.0
    %1775 = vmatpush1.xpose.msra.mxu0 0.0
    %1776 = vmatprep.subr.mxu0 0.0
    %1777 = vmatpush1.xpose.msra.mxu0 0.0
    %1778 = vmatprep.subr.mxu0 0.0
    %1779 = vmatpush1.xpose.msra.mxu0 0.0
    %1780 = vmatprep.subr.mxu0 0.0
    %1781 = vmatpush1.xpose.msra.mxu0 0.0
    %1782 = vmatprep.subr.mxu0 0.0
    %1783 = vmatpush1.xpose.msra.mxu0 0.0
    %1784 = vmatprep.subr.mxu0 0.0
    %1785 = vmatpush1.xpose.msra.mxu0 0.0
    %1786 = vmatprep.subr.mxu0 0.0
    %1787 = vmatpush1.xpose.msra.mxu0 0.0
    %1788 = vmatprep.subr.mxu0 0.0
    %1789 = vmatpush1.xpose.msra.mxu0 0.0
    %1790 = vmatprep.subr.mxu0 0.0
    %1791 = vmatpush1.xpose.msra.mxu0 0.0
    %1792 = vmatprep.subr.mxu0 0.0
    %1793 = vmatpush1.xpose.msra.mxu0 0.0
    %1794 = vmatprep.subr.mxu0 0.0
    %1795 = vmatpush1.xpose.msra.mxu0 0.0
    %1796 = vmatprep.subr.mxu0 0.0
    %1797 = vmatpush1.xpose.msra.mxu0 0.0
    %1798 = vmatprep.subr.mxu0 0.0
    %1799 = vmatpush1.xpose.msra.mxu0 0.0
    %1800 = vmatprep.subr.mxu0 0.0
    %1801 = vmatpush1.xpose.msra.mxu0 0.0
    %1802 = vmatprep.subr.mxu0 0.0
    %1803 = vmatpush1.xpose.msra.mxu0 0.0
    %1804 = vmatprep.subr.mxu0 0.0
    %1805 = vmatpush1.xpose.msra.mxu0 0.0
    %1806 = vmatprep.subr.mxu0 0.0
    %1807 = vmatpush1.xpose.msra.mxu0 0.0
    %1808 = vmatprep.mubr.f32.mxu0 0.0
    %1809 = vmatmul.mubr.f32.gmra.mrb[0].mxu0 %v1740
    %v1810 = vpop.f32.mrb[0].mxu0
    %v1811 = vadd.f32 0.0, %v1810
    %v1812 = vpop.f32.mrb[0].mxu0
    %1813 = vdwg.mxu0
    %v1814 = vmul.f32 %v1811, 0.25
    %v1815 = vadd.f32 %v1814, %v1644
    %v1816 = vsel %vm602, %v1815, -inf
    %1817 = vmax.xlane.f32.xlu0 %v1816
    %v1818 = vpop.xlane.xlu0 %1817
    %v1819 = vsub.f32 %v1815, %v1818
    %v1820 = vmul.f32 %v1819, 1.442695
    %v1821 = vpow.pop %v1820
    %v1822 = vsel %vm602, %v1821, 0.0
    %1823 = vadd.xlane.f32.xlu0 %v1822
    %v1824 = vpop.xlane.xlu0 %1823
    %v1825 = vrcp.pop %v1824
    %v1826 = vmul.f32 %v1821, %v1825
    %1827 = vrot.lane.b32.xlu0 %v1729, 64
    %v1828 = vpop.permute.xlu0 %1827
    %v1831 = vsel %vm602, %v1826, 0
    %1833 = vmatprep.subr.mxu0 0.0
    %1834 = vmatpush1.msra.mxu0 %v1828
    %1835 = vmatprep.subr.mxu0 0.0
    %1836 = vmatpush1.msra.mxu0 0.0
    %1837 = vmatprep.subr.mxu0 0.0
    %1838 = vmatpush1.msra.mxu0 0.0
    %1839 = vmatprep.subr.mxu0 0.0
    %1840 = vmatpush1.msra.mxu0 0.0
    %1841 = vmatprep.subr.mxu0 0.0
    %1842 = vmatpush1.msra.mxu0 0.0
    %1843 = vmatprep.subr.mxu0 0.0
    %1844 = vmatpush1.msra.mxu0 0.0
    %1845 = vmatprep.subr.mxu0 0.0
    %1846 = vmatpush1.msra.mxu0 0.0
    %1847 = vmatprep.subr.mxu0 0.0
    %1848 = vmatpush1.msra.mxu0 0.0
    %1849 = vmatprep.subr.mxu0 0.0
    %1850 = vmatpush1.msra.mxu0 0.0
    %1851 = vmatprep.subr.mxu0 0.0
    %1852 = vmatpush1.msra.mxu0 0.0
    %1853 = vmatprep.subr.mxu0 0.0
    %1854 = vmatpush1.msra.mxu0 0.0
    %1855 = vmatprep.subr.mxu0 0.0
    %1856 = vmatpush1.msra.mxu0 0.0
    %1857 = vmatprep.subr.mxu0 0.0
    %1858 = vmatpush1.msra.mxu0 0.0
    %1859 = vmatprep.subr.mxu0 0.0
    %1860 = vmatpush1.msra.mxu0 0.0
    %1861 = vmatprep.subr.mxu0 0.0
    %1862 = vmatpush1.msra.mxu0 0.0
    %1863 = vmatprep.subr.mxu0 0.0
    %1864 = vmatpush1.msra.mxu0 0.0
    %1865 = vmatprep.subr.mxu0 0.0
    %1866 = vmatpush1.msra.mxu0 0.0
    %1867 = vmatprep.subr.mxu0 0.0
    %1868 = vmatpush1.msra.mxu0 0.0
    %1869 = vmatprep.subr.mxu0 0.0
    %1870 = vmatpush1.msra.mxu0 0.0
    %1871 = vmatprep.subr.mxu0 0.0
    %1872 = vmatpush1.msra.mxu0 0.0
    %1873 = vmatprep.subr.mxu0 0.0
    %1874 = vmatpush1.msra.mxu0 0.0
    %1875 = vmatprep.subr.mxu0 0.0
    %1876 = vmatpush1.msra.mxu0 0.0
    %1877 = vmatprep.subr.mxu0 0.0
    %1878 = vmatpush1.msra.mxu0 0.0
    %1879 = vmatprep.subr.mxu0 0.0
    %1880 = vmatpush1.msra.mxu0 0.0
    %1881 = vmatprep.subr.mxu0 0.0
    %1882 = vmatpush1.msra.mxu0 0.0
    %1883 = vmatprep.subr.mxu0 0.0
    %1884 = vmatpush1.msra.mxu0 0.0
    %1885 = vmatprep.subr.mxu0 0.0
    %1886 = vmatpush1.msra.mxu0 0.0
    %1887 = vmatprep.subr.mxu0 0.0
    %1888 = vmatpush1.msra.mxu0 0.0
    %1889 = vmatprep.subr.mxu0 0.0
    %1890 = vmatpush1.msra.mxu0 0.0
    %1891 = vmatprep.subr.mxu0 0.0
    %1892 = vmatpush1.msra.mxu0 0.0
    %1893 = vmatprep.subr.mxu0 0.0
    %1894 = vmatpush1.msra.mxu0 0.0
    %1895 = vmatprep.subr.mxu0 0.0
    %1896 = vmatpush1.msra.mxu0 0.0
    %1897 = vmatprep.mubr.f32.mxu0 0.0
    %1898 = vmatmul.mubr.f32.gmra.mrb[0].mxu0 %v1831
    %v1899 = vpop.f32.mrb[0].mxu0
    %v1900 = vadd.f32 0.0, %v1899
    %v1901 = vpop.f32.mrb[0].mxu0
    %1902 = vdwg.mxu0
    %1903 = vst.msk [vmem:[#allocation3] sm:$0xff] %vm526, %v1900
    %1904 = vrot.lane.b32.xlu0 %v1729, 112
    %v1905 = vpop.permute.xlu0 %1904
    %1906 = vrot.lane.b32.xlu0 %v1729, 80
    %v1907 = vpop.permute.xlu0 %1906
    %v1908 = vsel %vm526, %v1905, 0
    %v1910 = vsel %vm526, %v1907, 0
    %1912 = vmatprep.subr.mxu0 0.0
    %1913 = vmatpush1.xpose.msra.mxu0 %v1910
    %1914 = vmatprep.subr.mxu0 0.0
    %1915 = vmatpush1.xpose.msra.mxu0 0.0
    %1916 = vmatprep.subr.mxu0 0.0
    %1917 = vmatpush1.xpose.msra.mxu0 0.0
    %1918 = vmatprep.subr.mxu0 0.0
    %1919 = vmatpush1.xpose.msra.mxu0 0.0
    %1920 = vmatprep.subr.mxu0 0.0
    %1921 = vmatpush1.xpose.msra.mxu0 0.0
    %1922 = vmatprep.subr.mxu0 0.0
    %1923 = vmatpush1.xpose.msra.mxu0 0.0
    %1924 = vmatprep.subr.mxu0 0.0
    %1925 = vmatpush1.xpose.msra.mxu0 0.0
    %1926 = vmatprep.subr.mxu0 0.0
    %1927 = vmatpush1.xpose.msra.mxu0 0.0
    %1928 = vmatprep.subr.mxu0 0.0
    %1929 = vmatpush1.xpose.msra.mxu0 0.0
    %1930 = vmatprep.subr.mxu0 0.0
    %1931 = vmatpush1.xpose.msra.mxu0 0.0
    %1932 = vmatprep.subr.mxu0 0.0
    %1933 = vmatpush1.xpose.msra.mxu0 0.0
    %1934 = vmatprep.subr.mxu0 0.0
    %1935 = vmatpush1.xpose.msra.mxu0 0.0
    %1936 = vmatprep.subr.mxu0 0.0
    %1937 = vmatpush1.xpose.msra.mxu0 0.0
    %1938 = vmatprep.subr.mxu0 0.0
    %1939 = vmatpush1.xpose.msra.mxu0 0.0
    %1940 = vmatprep.subr.mxu0 0.0
    %1941 = vmatpush1.xpose.msra.mxu0 0.0
    %1942 = vmatprep.subr.mxu0 0.0
    %1943 = vmatpush1.xpose.msra.mxu0 0.0
    %1944 = vmatprep.subr.mxu0 0.0
    %1945 = vmatpush1.xpose.msra.mxu0 0.0
    %1946 = vmatprep.subr.mxu0 0.0
    %1947 = vmatpush1.xpose.msra.mxu0 0.0
    %1948 = vmatprep.subr.mxu0 0.0
    %1949 = vmatpush1.xpose.msra.mxu0 0.0
    %1950 = vmatprep.subr.mxu0 0.0
    %1951 = vmatpush1.xpose.msra.mxu0 0.0
    %1952 = vmatprep.subr.mxu0 0.0
    %1953 = vmatpush1.xpose.msra.mxu0 0.0
    %1954 = vmatprep.subr.mxu0 0.0
    %1955 = vmatpush1.xpose.msra.mxu0 0.0
    %1956 = vmatprep.subr.mxu0 0.0
    %1957 = vmatpush1.xpose.msra.mxu0 0.0
    %1958 = vmatprep.subr.mxu0 0.0
    %1959 = vmatpush1.xpose.msra.mxu0 0.0
    %1960 = vmatprep.subr.mxu0 0.0
    %1961 = vmatpush1.xpose.msra.mxu0 0.0
    %1962 = vmatprep.subr.mxu0 0.0
    %1963 = vmatpush1.xpose.msra.mxu0 0.0
    %1964 = vmatprep.subr.mxu0 0.0
    %1965 = vmatpush1.xpose.msra.mxu0 0.0
    %1966 = vmatprep.subr.mxu0 0.0
    %1967 = vmatpush1.xpose.msra.mxu0 0.0
    %1968 = vmatprep.subr.mxu0 0.0
    %1969 = vmatpush1.xpose.msra.mxu0 0.0
    %1970 = vmatprep.subr.mxu0 0.0
    %1971 = vmatpush1.xpose.msra.mxu0 0.0
    %1972 = vmatprep.subr.mxu0 0.0
    %1973 = vmatpush1.xpose.msra.mxu0 0.0
    %1974 = vmatprep.subr.mxu0 0.0
    %1975 = vmatpush1.xpose.msra.mxu0 0.0
    %1976 = vmatprep.mubr.f32.mxu0 0.0
    %1977 = vmatmul.mubr.f32.gmra.mrb[0].mxu0 %v1908
    %v1978 = vpop.f32.mrb[0].mxu0
    %v1979 = vadd.f32 0.0, %v1978
    %v1980 = vpop.f32.mrb[0].mxu0
    %1981 = vdwg.mxu0
    %v1982 = vmul.f32 %v1979, 0.25
    %v1983 = vadd.f32 %v1982, %v1644
    %v1984 = vsel %vm602, %v1983, -inf
    %1985 = vmax.xlane.f32.xlu0 %v1984
    %v1986 = vpop.xlane.xlu0 %1985
    %v1987 = vsub.f32 %v1983, %v1986
    %v1988 = vmul.f32 %v1987, 1.442695
    %v1989 = vpow.pop %v1988
    %v1990 = vsel %vm602, %v1989, 0.0
    %1991 = vadd.xlane.f32.xlu0 %v1990
    %v1992 = vpop.xlane.xlu0 %1991
    %v1993 = vrcp.pop %v1992
    %v1994 = vmul.f32 %v1989, %v1993
    %1995 = vrot.lane.b32.xlu0 %v1729, 48
    %v1996 = vpop.permute.xlu0 %1995
    %v1999 = vsel %vm602, %v1994, 0
    %2001 = vmatprep.subr.mxu0 0.0
    %2002 = vmatpush1.msra.mxu0 %v1996
    %2003 = vmatprep.subr.mxu0 0.0
    %2004 = vmatpush1.msra.mxu0 0.0
    %2005 = vmatprep.subr.mxu0 0.0
    %2006 = vmatpush1.msra.mxu0 0.0
    %2007 = vmatprep.subr.mxu0 0.0
    %2008 = vmatpush1.msra.mxu0 0.0
    %2009 = vmatprep.subr.mxu0 0.0
    %2010 = vmatpush1.msra.mxu0 0.0
    %2011 = vmatprep.subr.mxu0 0.0
    %2012 = vmatpush1.msra.mxu0 0.0
    %2013 = vmatprep.subr.mxu0 0.0
    %2014 = vmatpush1.msra.mxu0 0.0
    %2015 = vmatprep.subr.mxu0 0.0
    %2016 = vmatpush1.msra.mxu0 0.0
    %2017 = vmatprep.subr.mxu0 0.0
    %2018 = vmatpush1.msra.mxu0 0.0
    %2019 = vmatprep.subr.mxu0 0.0
    %2020 = vmatpush1.msra.mxu0 0.0
    %2021 = vmatprep.subr.mxu0 0.0
    %2022 = vmatpush1.msra.mxu0 0.0
    %2023 = vmatprep.subr.mxu0 0.0
    %2024 = vmatpush1.msra.mxu0 0.0
    %2025 = vmatprep.subr.mxu0 0.0
    %2026 = vmatpush1.msra.mxu0 0.0
    %2027 = vmatprep.subr.mxu0 0.0
    %2028 = vmatpush1.msra.mxu0 0.0
    %2029 = vmatprep.subr.mxu0 0.0
    %2030 = vmatpush1.msra.mxu0 0.0
    %2031 = vmatprep.subr.mxu0 0.0
    %2032 = vmatpush1.msra.mxu0 0.0
    %2033 = vmatprep.subr.mxu0 0.0
    %2034 = vmatpush1.msra.mxu0 0.0
    %2035 = vmatprep.subr.mxu0 0.0
    %2036 = vmatpush1.msra.mxu0 0.0
    %2037 = vmatprep.subr.mxu0 0.0
    %2038 = vmatpush1.msra.mxu0 0.0
    %2039 = vmatprep.subr.mxu0 0.0
    %2040 = vmatpush1.msra.mxu0 0.0
    %2041 = vmatprep.subr.mxu0 0.0
    %2042 = vmatpush1.msra.mxu0 0.0
    %2043 = vmatprep.subr.mxu0 0.0
    %2044 = vmatpush1.msra.mxu0 0.0
    %2045 = vmatprep.subr.mxu0 0.0
    %2046 = vmatpush1.msra.mxu0 0.0
    %2047 = vmatprep.subr.mxu0 0.0
    %2048 = vmatpush1.msra.mxu0 0.0
    %2049 = vmatprep.subr.mxu0 0.0
    %2050 = vmatpush1.msra.mxu0 0.0
    %2051 = vmatprep.subr.mxu0 0.0
    %2052 = vmatpush1.msra.mxu0 0.0
    %2053 = vmatprep.subr.mxu0 0.0
    %2054 = vmatpush1.msra.mxu0 0.0
    %2055 = vmatprep.subr.mxu0 0.0
    %2056 = vmatpush1.msra.mxu0 0.0
    %2057 = vmatprep.subr.mxu0 0.0
    %2058 = vmatpush1.msra.mxu0 0.0
    %2059 = vmatprep.subr.mxu0 0.0
    %2060 = vmatpush1.msra.mxu0 0.0
    %2061 = vmatprep.subr.mxu0 0.0
    %2062 = vmatpush1.msra.mxu0 0.0
    %2063 = vmatprep.subr.mxu0 0.0
    %2064 = vmatpush1.msra.mxu0 0.0
    %2065 = vmatprep.mubr.f32.mxu0 0.0
    %2066 = vmatmul.mubr.f32.gmra.mrb[0].mxu0 %v1999
    %v2067 = vpop.f32.mrb[0].mxu0
    %v2068 = vadd.f32 0.0, %v2067
    %v2069 = vpop.f32.mrb[0].mxu0
    %2070 = vdwg.mxu0
    %2072 = vrot.lane.b32.xlu0 %v2068, 16
    %v2073 = vpop.permute.xlu0 %2072
    %2075 = vst.msk [vmem:[#allocation3] sm:$0xff] %vm861, %v2073
    %2077 = vrot.lane.b32.xlu0 %v1734, 96
    %v2078 = vpop.permute.xlu0 %2077
    %v2079 = vsel %vm526, %v1734, 0
    %v2081 = vsel %vm526, %v2078, 0
    %2083 = vmatprep.subr.mxu0 0.0
    %2084 = vmatpush1.xpose.msra.mxu0 %v2081
    %2085 = vmatprep.subr.mxu0 0.0
    %2086 = vmatpush1.xpose.msra.mxu0 0.0
    %2087 = vmatprep.subr.mxu0 0.0
    %2088 = vmatpush1.xpose.msra.mxu0 0.0
    %2089 = vmatprep.subr.mxu0 0.0
    %2090 = vmatpush1.xpose.msra.mxu0 0.0
    %2091 = vmatprep.subr.mxu0 0.0
    %2092 = vmatpush1.xpose.msra.mxu0 0.0
    %2093 = vmatprep.subr.mxu0 0.0
    %2094 = vmatpush1.xpose.msra.mxu0 0.0
    %2095 = vmatprep.subr.mxu0 0.0
    %2096 = vmatpush1.xpose.msra.mxu0 0.0
    %2097 = vmatprep.subr.mxu0 0.0
    %2098 = vmatpush1.xpose.msra.mxu0 0.0
    %2099 = vmatprep.subr.mxu0 0.0
    %2100 = vmatpush1.xpose.msra.mxu0 0.0
    %2101 = vmatprep.subr.mxu0 0.0
    %2102 = vmatpush1.xpose.msra.mxu0 0.0
    %2103 = vmatprep.subr.mxu0 0.0
    %2104 = vmatpush1.xpose.msra.mxu0 0.0
    %2105 = vmatprep.subr.mxu0 0.0
    %2106 = vmatpush1.xpose.msra.mxu0 0.0
    %2107 = vmatprep.subr.mxu0 0.0
    %2108 = vmatpush1.xpose.msra.mxu0 0.0
    %2109 = vmatprep.subr.mxu0 0.0
    %2110 = vmatpush1.xpose.msra.mxu0 0.0
    %2111 = vmatprep.subr.mxu0 0.0
    %2112 = vmatpush1.xpose.msra.mxu0 0.0
    %2113 = vmatprep.subr.mxu0 0.0
    %2114 = vmatpush1.xpose.msra.mxu0 0.0
    %2115 = vmatprep.subr.mxu0 0.0
    %2116 = vmatpush1.xpose.msra.mxu0 0.0
    %2117 = vmatprep.subr.mxu0 0.0
    %2118 = vmatpush1.xpose.msra.mxu0 0.0
    %2119 = vmatprep.subr.mxu0 0.0
    %2120 = vmatpush1.xpose.msra.mxu0 0.0
    %2121 = vmatprep.subr.mxu0 0.0
    %2122 = vmatpush1.xpose.msra.mxu0 0.0
    %2123 = vmatprep.subr.mxu0 0.0
    %2124 = vmatpush1.xpose.msra.mxu0 0.0
    %2125 = vmatprep.subr.mxu0 0.0
    %2126 = vmatpush1.xpose.msra.mxu0 0.0
    %2127 = vmatprep.subr.mxu0 0.0
    %2128 = vmatpush1.xpose.msra.mxu0 0.0
    %2129 = vmatprep.subr.mxu0 0.0
    %2130 = vmatpush1.xpose.msra.mxu0 0.0
    %2131 = vmatprep.subr.mxu0 0.0
    %2132 = vmatpush1.xpose.msra.mxu0 0.0
    %2133 = vmatprep.subr.mxu0 0.0
    %2134 = vmatpush1.xpose.msra.mxu0 0.0
    %2135 = vmatprep.subr.mxu0 0.0
    %2136 = vmatpush1.xpose.msra.mxu0 0.0
    %2137 = vmatprep.subr.mxu0 0.0
    %2138 = vmatpush1.xpose.msra.mxu0 0.0
    %2139 = vmatprep.subr.mxu0 0.0
    %2140 = vmatpush1.xpose.msra.mxu0 0.0
    %2141 = vmatprep.subr.mxu0 0.0
    %2142 = vmatpush1.xpose.msra.mxu0 0.0
    %2143 = vmatprep.subr.mxu0 0.0
    %2144 = vmatpush1.xpose.msra.mxu0 0.0
    %2145 = vmatprep.subr.mxu0 0.0
    %2146 = vmatpush1.xpose.msra.mxu0 0.0
    %2147 = vmatprep.mubr.f32.mxu0 0.0
    %2148 = vmatmul.mubr.f32.gmra.mrb[0].mxu0 %v2079
    %v2149 = vpop.f32.mrb[0].mxu0
    %v2150 = vadd.f32 0.0, %v2149
    %v2151 = vpop.f32.mrb[0].mxu0
    %2152 = vdwg.mxu0
    %v2153 = vmul.f32 %v2150, 0.25
    %v2154 = vadd.f32 %v2153, %v1644
    %v2155 = vsel %vm602, %v2154, -inf
    %2156 = vmax.xlane.f32.xlu0 %v2155
    %v2157 = vpop.xlane.xlu0 %2156
    %v2158 = vsub.f32 %v2154, %v2157
    %v2159 = vmul.f32 %v2158, 1.442695
    %v2160 = vpow.pop %v2159
    %v2161 = vsel %vm602, %v2160, 0.0
    %2162 = vadd.xlane.f32.xlu0 %v2161
    %v2163 = vpop.xlane.xlu0 %2162
    %v2164 = vrcp.pop %v2163
    %v2165 = vmul.f32 %v2160, %v2164
    %2166 = vrot.lane.b32.xlu0 %v1734, 64
    %v2167 = vpop.permute.xlu0 %2166
    %v2170 = vsel %vm602, %v2165, 0
    %2172 = vmatprep.subr.mxu0 0.0
    %2173 = vmatpush1.msra.mxu0 %v2167
    %2174 = vmatprep.subr.mxu0 0.0
    %2175 = vmatpush1.msra.mxu0 0.0
    %2176 = vmatprep.subr.mxu0 0.0
    %2177 = vmatpush1.msra.mxu0 0.0
    %2178 = vmatprep.subr.mxu0 0.0
    %2179 = vmatpush1.msra.mxu0 0.0
    %2180 = vmatprep.subr.mxu0 0.0
    %2181 = vmatpush1.msra.mxu0 0.0
    %2182 = vmatprep.subr.mxu0 0.0
    %2183 = vmatpush1.msra.mxu0 0.0
    %2184 = vmatprep.subr.mxu0 0.0
    %2185 = vmatpush1.msra.mxu0 0.0
    %2186 = vmatprep.subr.mxu0 0.0
    %2187 = vmatpush1.msra.mxu0 0.0
    %2188 = vmatprep.subr.mxu0 0.0
    %2189 = vmatpush1.msra.mxu0 0.0
    %2190 = vmatprep.subr.mxu0 0.0
    %2191 = vmatpush1.msra.mxu0 0.0
    %2192 = vmatprep.subr.mxu0 0.0
    %2193 = vmatpush1.msra.mxu0 0.0
    %2194 = vmatprep.subr.mxu0 0.0
    %2195 = vmatpush1.msra.mxu0 0.0
    %2196 = vmatprep.subr.mxu0 0.0
    %2197 = vmatpush1.msra.mxu0 0.0
    %2198 = vmatprep.subr.mxu0 0.0
    %2199 = vmatpush1.msra.mxu0 0.0
    %2200 = vmatprep.subr.mxu0 0.0
    %2201 = vmatpush1.msra.mxu0 0.0
    %2202 = vmatprep.subr.mxu0 0.0
    %2203 = vmatpush1.msra.mxu0 0.0
    %2204 = vmatprep.subr.mxu0 0.0
    %2205 = vmatpush1.msra.mxu0 0.0
    %2206 = vmatprep.subr.mxu0 0.0
    %2207 = vmatpush1.msra.mxu0 0.0
    %2208 = vmatprep.subr.mxu0 0.0
    %2209 = vmatpush1.msra.mxu0 0.0
    %2210 = vmatprep.subr.mxu0 0.0
    %2211 = vmatpush1.msra.mxu0 0.0
    %2212 = vmatprep.subr.mxu0 0.0
    %2213 = vmatpush1.msra.mxu0 0.0
    %2214 = vmatprep.subr.mxu0 0.0
    %2215 = vmatpush1.msra.mxu0 0.0
    %2216 = vmatprep.subr.mxu0 0.0
    %2217 = vmatpush1.msra.mxu0 0.0
    %2218 = vmatprep.subr.mxu0 0.0
    %2219 = vmatpush1.msra.mxu0 0.0
    %2220 = vmatprep.subr.mxu0 0.0
    %2221 = vmatpush1.msra.mxu0 0.0
    %2222 = vmatprep.subr.mxu0 0.0
    %2223 = vmatpush1.msra.mxu0 0.0
    %2224 = vmatprep.subr.mxu0 0.0
    %2225 = vmatpush1.msra.mxu0 0.0
    %2226 = vmatprep.subr.mxu0 0.0
    %2227 = vmatpush1.msra.mxu0 0.0
    %2228 = vmatprep.subr.mxu0 0.0
    %2229 = vmatpush1.msra.mxu0 0.0
    %2230 = vmatprep.subr.mxu0 0.0
    %2231 = vmatpush1.msra.mxu0 0.0
    %2232 = vmatprep.subr.mxu0 0.0
    %2233 = vmatpush1.msra.mxu0 0.0
    %2234 = vmatprep.subr.mxu0 0.0
    %2235 = vmatpush1.msra.mxu0 0.0
    %2236 = vmatprep.mubr.f32.mxu0 0.0
    %2237 = vmatmul.mubr.f32.gmra.mrb[0].mxu0 %v2170
    %v2238 = vpop.f32.mrb[0].mxu0
    %v2239 = vadd.f32 0.0, %v2238
    %v2240 = vpop.f32.mrb[0].mxu0
    %2241 = vdwg.mxu0
    %2242 = vst.msk [vmem:[#allocation3 + $0x8] sm:$0xff] %vm526, %v2239
    %2243 = vrot.lane.b32.xlu0 %v1734, 112
    %v2244 = vpop.permute.xlu0 %2243
    %2245 = vrot.lane.b32.xlu0 %v1734, 80
    %v2246 = vpop.permute.xlu0 %2245
    %v2247 = vsel %vm526, %v2244, 0
    %v2249 = vsel %vm526, %v2246, 0
    %2251 = vmatprep.subr.mxu0 0.0
    %2252 = vmatpush1.xpose.msra.mxu0 %v2249
    %2253 = vmatprep.subr.mxu0 0.0
    %2254 = vmatpush1.xpose.msra.mxu0 0.0
    %2255 = vmatprep.subr.mxu0 0.0
    %2256 = vmatpush1.xpose.msra.mxu0 0.0
    %2257 = vmatprep.subr.mxu0 0.0
    %2258 = vmatpush1.xpose.msra.mxu0 0.0
    %2259 = vmatprep.subr.mxu0 0.0
    %2260 = vmatpush1.xpose.msra.mxu0 0.0
    %2261 = vmatprep.subr.mxu0 0.0
    %2262 = vmatpush1.xpose.msra.mxu0 0.0
    %2263 = vmatprep.subr.mxu0 0.0
    %2264 = vmatpush1.xpose.msra.mxu0 0.0
    %2265 = vmatprep.subr.mxu0 0.0
    %2266 = vmatpush1.xpose.msra.mxu0 0.0
    %2267 = vmatprep.subr.mxu0 0.0
    %2268 = vmatpush1.xpose.msra.mxu0 0.0
    %2269 = vmatprep.subr.mxu0 0.0
    %2270 = vmatpush1.xpose.msra.mxu0 0.0
    %2271 = vmatprep.subr.mxu0 0.0
    %2272 = vmatpush1.xpose.msra.mxu0 0.0
    %2273 = vmatprep.subr.mxu0 0.0
    %2274 = vmatpush1.xpose.msra.mxu0 0.0
    %2275 = vmatprep.subr.mxu0 0.0
    %2276 = vmatpush1.xpose.msra.mxu0 0.0
    %2277 = vmatprep.subr.mxu0 0.0
    %2278 = vmatpush1.xpose.msra.mxu0 0.0
    %2279 = vmatprep.subr.mxu0 0.0
    %2280 = vmatpush1.xpose.msra.mxu0 0.0
    %2281 = vmatprep.subr.mxu0 0.0
    %2282 = vmatpush1.xpose.msra.mxu0 0.0
    %2283 = vmatprep.subr.mxu0 0.0
    %2284 = vmatpush1.xpose.msra.mxu0 0.0
    %2285 = vmatprep.subr.mxu0 0.0
    %2286 = vmatpush1.xpose.msra.mxu0 0.0
    %2287 = vmatprep.subr.mxu0 0.0
    %2288 = vmatpush1.xpose.msra.mxu0 0.0
    %2289 = vmatprep.subr.mxu0 0.0
    %2290 = vmatpush1.xpose.msra.mxu0 0.0
    %2291 = vmatprep.subr.mxu0 0.0
    %2292 = vmatpush1.xpose.msra.mxu0 0.0
    %2293 = vmatprep.subr.mxu0 0.0
    %2294 = vmatpush1.xpose.msra.mxu0 0.0
    %2295 = vmatprep.subr.mxu0 0.0
    %2296 = vmatpush1.xpose.msra.mxu0 0.0
    %2297 = vmatprep.subr.mxu0 0.0
    %2298 = vmatpush1.xpose.msra.mxu0 0.0
    %2299 = vmatprep.subr.mxu0 0.0
    %2300 = vmatpush1.xpose.msra.mxu0 0.0
    %2301 = vmatprep.subr.mxu0 0.0
    %2302 = vmatpush1.xpose.msra.mxu0 0.0
    %2303 = vmatprep.subr.mxu0 0.0
    %2304 = vmatpush1.xpose.msra.mxu0 0.0
    %2305 = vmatprep.subr.mxu0 0.0
    %2306 = vmatpush1.xpose.msra.mxu0 0.0
    %2307 = vmatprep.subr.mxu0 0.0
    %2308 = vmatpush1.xpose.msra.mxu0 0.0
    %2309 = vmatprep.subr.mxu0 0.0
    %2310 = vmatpush1.xpose.msra.mxu0 0.0
    %2311 = vmatprep.subr.mxu0 0.0
    %2312 = vmatpush1.xpose.msra.mxu0 0.0
    %2313 = vmatprep.subr.mxu0 0.0
    %2314 = vmatpush1.xpose.msra.mxu0 0.0
    %2315 = vmatprep.mubr.f32.mxu0 0.0
    %2316 = vmatmul.mubr.f32.gmra.mrb[0].mxu0 %v2247
    %v2317 = vpop.f32.mrb[0].mxu0
    %v2318 = vadd.f32 0.0, %v2317
    %v2319 = vpop.f32.mrb[0].mxu0
    %2320 = vdwg.mxu0
    %v2321 = vmul.f32 %v2318, 0.25
    %v2322 = vadd.f32 %v2321, %v1644
    %v2323 = vsel %vm602, %v2322, -inf
    %2324 = vmax.xlane.f32.xlu0 %v2323
    %v2325 = vpop.xlane.xlu0 %2324
    %v2326 = vsub.f32 %v2322, %v2325
    %v2327 = vmul.f32 %v2326, 1.442695
    %v2328 = vpow.pop %v2327
    %v2329 = vsel %vm602, %v2328, 0.0
    %2330 = vadd.xlane.f32.xlu0 %v2329
    %v2331 = vpop.xlane.xlu0 %2330
    %v2332 = vrcp.pop %v2331
    %v2333 = vmul.f32 %v2328, %v2332
    %2334 = vrot.lane.b32.xlu0 %v1734, 48
    %v2335 = vpop.permute.xlu0 %2334
    %v2338 = vsel %vm602, %v2333, 0
    %2340 = vmatprep.subr.mxu0 0.0
    %2341 = vmatpush1.msra.mxu0 %v2335
    %2342 = vmatprep.subr.mxu0 0.0
    %2343 = vmatpush1.msra.mxu0 0.0
    %2344 = vmatprep.subr.mxu0 0.0
    %2345 = vmatpush1.msra.mxu0 0.0
    %2346 = vmatprep.subr.mxu0 0.0
    %2347 = vmatpush1.msra.mxu0 0.0
    %2348 = vmatprep.subr.mxu0 0.0
    %2349 = vmatpush1.msra.mxu0 0.0
    %2350 = vmatprep.subr.mxu0 0.0
    %2351 = vmatpush1.msra.mxu0 0.0
    %2352 = vmatprep.subr.mxu0 0.0
    %2353 = vmatpush1.msra.mxu0 0.0
    %2354 = vmatprep.subr.mxu0 0.0
    %2355 = vmatpush1.msra.mxu0 0.0
    %2356 = vmatprep.subr.mxu0 0.0
    %2357 = vmatpush1.msra.mxu0 0.0
    %2358 = vmatprep.subr.mxu0 0.0
    %2359 = vmatpush1.msra.mxu0 0.0
    %2360 = vmatprep.subr.mxu0 0.0
    %2361 = vmatpush1.msra.mxu0 0.0
    %2362 = vmatprep.subr.mxu0 0.0
    %2363 = vmatpush1.msra.mxu0 0.0
    %2364 = vmatprep.subr.mxu0 0.0
    %2365 = vmatpush1.msra.mxu0 0.0
    %2366 = vmatprep.subr.mxu0 0.0
    %2367 = vmatpush1.msra.mxu0 0.0
    %2368 = vmatprep.subr.mxu0 0.0
    %2369 = vmatpush1.msra.mxu0 0.0
    %2370 = vmatprep.subr.mxu0 0.0
    %2371 = vmatpush1.msra.mxu0 0.0
    %2372 = vmatprep.subr.mxu0 0.0
    %2373 = vmatpush1.msra.mxu0 0.0
    %2374 = vmatprep.subr.mxu0 0.0
    %2375 = vmatpush1.msra.mxu0 0.0
    %2376 = vmatprep.subr.mxu0 0.0
    %2377 = vmatpush1.msra.mxu0 0.0
    %2378 = vmatprep.subr.mxu0 0.0
    %2379 = vmatpush1.msra.mxu0 0.0
    %2380 = vmatprep.subr.mxu0 0.0
    %2381 = vmatpush1.msra.mxu0 0.0
    %2382 = vmatprep.subr.mxu0 0.0
    %2383 = vmatpush1.msra.mxu0 0.0
    %2384 = vmatprep.subr.mxu0 0.0
    %2385 = vmatpush1.msra.mxu0 0.0
    %2386 = vmatprep.subr.mxu0 0.0
    %2387 = vmatpush1.msra.mxu0 0.0
    %2388 = vmatprep.subr.mxu0 0.0
    %2389 = vmatpush1.msra.mxu0 0.0
    %2390 = vmatprep.subr.mxu0 0.0
    %2391 = vmatpush1.msra.mxu0 0.0
    %2392 = vmatprep.subr.mxu0 0.0
    %2393 = vmatpush1.msra.mxu0 0.0
    %2394 = vmatprep.subr.mxu0 0.0
    %2395 = vmatpush1.msra.mxu0 0.0
    %2396 = vmatprep.subr.mxu0 0.0
    %2397 = vmatpush1.msra.mxu0 0.0
    %2398 = vmatprep.subr.mxu0 0.0
    %2399 = vmatpush1.msra.mxu0 0.0
    %2400 = vmatprep.subr.mxu0 0.0
    %2401 = vmatpush1.msra.mxu0 0.0
    %2402 = vmatprep.subr.mxu0 0.0
    %2403 = vmatpush1.msra.mxu0 0.0
    %2404 = vmatprep.mubr.f32.mxu0 0.0
    %2405 = vmatmul.mubr.f32.gmra.mrb[0].mxu0 %v2338
    %v2406 = vpop.f32.mrb[0].mxu0
    %v2407 = vadd.f32 0.0, %v2406
    %v2408 = vpop.f32.mrb[0].mxu0
    %2409 = vdwg.mxu0
    %2411 = vrot.lane.b32.xlu0 %v2407, 16
    %v2412 = vpop.permute.xlu0 %2411
    %2414 = vst.msk [vmem:[#allocation3 + $0x8] sm:$0xff] %vm861, %v2412
    %v2415 = vld [vmem:[#allocation3] sm:$0xff]
    %v2416 = vld [vmem:[#allocation3 + $0x8] sm:$0xff]
    %v2417 = vld [vmem:[%s41] sm:$0xff]
    %v2418 = vld [vmem:[%s41 + $0x8] sm:$0xff]
    %v2419 = vld [vmem:[%s41 + $0x10] sm:$0xff]
    %v2420 = vld [vmem:[%s41 + $0x18] sm:$0xff]
    %v2421 = vld [vmem:[#allocation25] sm:$0x1]
    %v2423 = vlaneseq
    %v2424 = vshrl.u32 %v2423, 7
    %v2425 = vsub.s32 0, %v2424
    %v2426 = vrot.slane %v2421, %v2425
    %v2429 = vsel %vm387, %v2415, 0
    %v2432 = vsel %vm387, %v2416, 0
    %2434 = vmatprep.subr.mxu0 0.0
    %2435 = vmatpush1.msra.mxu0 %v2417
    %2436 = vmatprep.subr.mxu0 0.0
    %2437 = vmatpush1.msra.mxu0 %v2418
    %2438 = vmatprep.subr.mxu0 0.0
    %2439 = vmatpush1.msra.mxu0 %v2419
    %2440 = vmatprep.subr.mxu0 0.0
    %2441 = vmatpush1.msra.mxu0 %v2420
    %2442 = vmatprep.subr.mxu0 0.0
    %2443 = vmatpush1.msra.mxu0 0.0
    %2444 = vmatprep.subr.mxu0 0.0
    %2445 = vmatpush1.msra.mxu0 0.0
    %2446 = vmatprep.subr.mxu0 0.0
    %2447 = vmatpush1.msra.mxu0 0.0
    %2448 = vmatprep.subr.mxu0 0.0
    %2449 = vmatpush1.msra.mxu0 0.0
    %2450 = vmatprep.subr.mxu0 0.0
    %2451 = vmatpush1.msra.mxu0 0.0
    %2452 = vmatprep.subr.mxu0 0.0
    %2453 = vmatpush1.msra.mxu0 0.0
    %2454 = vmatprep.subr.mxu0 0.0
    %2455 = vmatpush1.msra.mxu0 0.0
    %2456 = vmatprep.subr.mxu0 0.0
    %2457 = vmatpush1.msra.mxu0 0.0
    %2458 = vmatprep.subr.mxu0 0.0
    %2459 = vmatpush1.msra.mxu0 0.0
    %2460 = vmatprep.subr.mxu0 0.0
    %2461 = vmatpush1.msra.mxu0 0.0
    %2462 = vmatprep.subr.mxu0 0.0
    %2463 = vmatpush1.msra.mxu0 0.0
    %2464 = vmatprep.subr.mxu0 0.0
    %2465 = vmatpush1.msra.mxu0 0.0
    %2466 = vmatprep.subr.mxu0 0.0
    %2467 = vmatpush1.msra.mxu0 0.0
    %2468 = vmatprep.subr.mxu0 0.0
    %2469 = vmatpush1.msra.mxu0 0.0
    %2470 = vmatprep.subr.mxu0 0.0
    %2471 = vmatpush1.msra.mxu0 0.0
    %2472 = vmatprep.subr.mxu0 0.0
    %2473 = vmatpush1.msra.mxu0 0.0
    %2474 = vmatprep.subr.mxu0 0.0
    %2475 = vmatpush1.msra.mxu0 0.0
    %2476 = vmatprep.subr.mxu0 0.0
    %2477 = vmatpush1.msra.mxu0 0.0
    %2478 = vmatprep.subr.mxu0 0.0
    %2479 = vmatpush1.msra.mxu0 0.0
    %2480 = vmatprep.subr.mxu0 0.0
    %2481 = vmatpush1.msra.mxu0 0.0
    %2482 = vmatprep.subr.mxu0 0.0
    %2483 = vmatpush1.msra.mxu0 0.0
    %2484 = vmatprep.subr.mxu0 0.0
    %2485 = vmatpush1.msra.mxu0 0.0
    %2486 = vmatprep.subr.mxu0 0.0
    %2487 = vmatpush1.msra.mxu0 0.0
    %2488 = vmatprep.subr.mxu0 0.0
    %2489 = vmatpush1.msra.mxu0 0.0
    %2490 = vmatprep.subr.mxu0 0.0
    %2491 = vmatpush1.msra.mxu0 0.0
    %2492 = vmatprep.subr.mxu0 0.0
    %2493 = vmatpush1.msra.mxu0 0.0
    %2494 = vmatprep.subr.mxu0 0.0
    %2495 = vmatpush1.msra.mxu0 0.0
    %2496 = vmatprep.subr.mxu0 0.0
    %2497 = vmatpush1.msra.mxu0 0.0
    %2498 = vmatprep.mubr.f32.mxu0 0.0
    %2499 = vmatmul.mubr.f32.gmra.mrb[0].mxu0 %v2429
    %v2500 = vpop.f32.mrb[0].mxu0
    %v2501 = vadd.f32 %v2426, %v2500
    %v2502 = vpop.f32.mrb[0].mxu0
    %2503 = vmatprep.mubr.f32.mxu0 0.0
    %2504 = vmatmul.mubr.f32.gmra.mrb[0].mxu0 %v2432
    %v2505 = vpop.f32.mrb[0].mxu0
    %v2506 = vadd.f32 %v2426, %v2505
    %v2507 = vpop.f32.mrb[0].mxu0
    %2508 = vdwg.mxu0
    %v2509 = vadd.f32 %v1637, %v2501
    %v2510 = vadd.f32 %v1638, %v2506
    %v2511 = vld [vmem:[#allocation27] sm:$0x1]
    %v2512 = vld [vmem:[#allocation28] sm:$0x1]
    %v2513 = vsel %vm387, %v2509, 0.0
    %2514 = vadd.xlane.f32.xlu0 %v2513
    %v2515 = vpop.xlane.xlu0 %2514
    %v2516 = vsel %vm387, %v2510, 0.0
    %2517 = vadd.xlane.f32.xlu0 %v2516
    %v2518 = vpop.xlane.xlu0 %2517
    %v2519 = vmul.f32 %v2515, %v394
    %v2520 = vmul.f32 %v2518, %v394
    %v2521 = vsub.f32 %v2509, %v2519
    %v2522 = vsub.f32 %v2510, %v2520
    %v2523 = vmul.f32 %v2521, %v2521
    %v2524 = vmul.f32 %v2522, %v2522
    %v2525 = vsel %vm387, %v2523, 0.0
    %2526 = vadd.xlane.f32.xlu0 %v2525
    %v2527 = vpop.xlane.xlu0 %2526
    %v2528 = vsel %vm387, %v2524, 0.0
    %2529 = vadd.xlane.f32.xlu0 %v2528
    %v2530 = vpop.xlane.xlu0 %2529
    %v2531 = vmul.f32 %v2527, %v394
    %v2532 = vmul.f32 %v2530, %v394
    %v2533 = vadd.f32 %v2531, 1e-05
    %v2534 = vadd.f32 %v2532, 1e-05
    %v2535 = vrsqrt.pop %v2533
    %v2536 = vrsqrt.pop %v2534
    %v2537 = vmul.f32 %v2521, %v2535
    %v2538 = vmul.f32 %v2522, %v2536
    %v2540 = vlaneseq
    %v2541 = vshrl.u32 %v2540, 7
    %v2542 = vsub.s32 0, %v2541
    %v2543 = vrot.slane %v2511, %v2542
    %v2545 = vmul.f32 %v2537, %v2543
    %v2546 = vmul.f32 %v2538, %v2543
    %v2548 = vlaneseq
    %v2549 = vshrl.u32 %v2548, 7
    %v2550 = vsub.s32 0, %v2549
    %v2551 = vrot.slane %v2512, %v2550
    %v2553 = vadd.f32 %v2545, %v2551
    %v2554 = vadd.f32 %v2546, %v2551
    %v2555 = vld [vmem:[%s49] sm:$0xff]
    %v2556 = vld [vmem:[%s49 + $0x8] sm:$0xff]
    %v2557 = vld [vmem:[%s49 + $0x10] sm:$0xff]
    %v2558 = vld [vmem:[%s49 + $0x18] sm:$0xff]
    %v2559 = vld [vmem:[#allocation30] sm:$0x1]
    %v2561 = vlaneseq
    %v2562 = vshrl.u32 %v2561, 7
    %v2563 = vsub.s32 0, %v2562
    %v2564 = vrot.slane %v2559, %v2563
    %v2567 = vsel %vm387, %v2553, 0
    %v2570 = vsel %vm387, %v2554, 0
    %2572 = vmatprep.subr.mxu0 0.0
    %2573 = vmatpush1.msra.mxu0 %v2555
    %2574 = vmatprep.subr.mxu0 0.0
    %2575 = vmatpush1.msra.mxu0 %v2556
    %2576 = vmatprep.subr.mxu0 0.0
    %2577 = vmatpush1.msra.mxu0 %v2557
    %2578 = vmatprep.subr.mxu0 0.0
    %2579 = vmatpush1.msra.mxu0 %v2558
    %2580 = vmatprep.subr.mxu0 0.0
    %2581 = vmatpush1.msra.mxu0 0.0
    %2582 = vmatprep.subr.mxu0 0.0
    %2583 = vmatpush1.msra.mxu0 0.0
    %2584 = vmatprep.subr.mxu0 0.0
    %2585 = vmatpush1.msra.mxu0 0.0
    %2586 = vmatprep.subr.mxu0 0.0
    %2587 = vmatpush1.msra.mxu0 0.0
    %2588 = vmatprep.subr.mxu0 0.0
    %2589 = vmatpush1.msra.mxu0 0.0
    %2590 = vmatprep.subr.mxu0 0.0
    %2591 = vmatpush1.msra.mxu0 0.0
    %2592 = vmatprep.subr.mxu0 0.0
    %2593 = vmatpush1.msra.mxu0 0.0
    %2594 = vmatprep.subr.mxu0 0.0
    %2595 = vmatpush1.msra.mxu0 0.0
    %2596 = vmatprep.subr.mxu0 0.0
    %2597 = vmatpush1.msra.mxu0 0.0
    %2598 = vmatprep.subr.mxu0 0.0
    %2599 = vmatpush1.msra.mxu0 0.0
    %2600 = vmatprep.subr.mxu0 0.0
    %2601 = vmatpush1.msra.mxu0 0.0
    %2602 = vmatprep.subr.mxu0 0.0
    %2603 = vmatpush1.msra.mxu0 0.0
    %2604 = vmatprep.subr.mxu0 0.0
    %2605 = vmatpush1.msra.mxu0 0.0
    %2606 = vmatprep.subr.mxu0 0.0
    %2607 = vmatpush1.msra.mxu0 0.0
    %2608 = vmatprep.subr.mxu0 0.0
    %2609 = vmatpush1.msra.mxu0 0.0
    %2610 = vmatprep.subr.mxu0 0.0
    %2611 = vmatpush1.msra.mxu0 0.0
    %2612 = vmatprep.subr.mxu0 0.0
    %2613 = vmatpush1.msra.mxu0 0.0
    %2614 = vmatprep.subr.mxu0 0.0
    %2615 = vmatpush1.msra.mxu0 0.0
    %2616 = vmatprep.subr.mxu0 0.0
    %2617 = vmatpush1.msra.mxu0 0.0
    %2618 = vmatprep.subr.mxu0 0.0
    %2619 = vmatpush1.msra.mxu0 0.0
    %2620 = vmatprep.subr.mxu0 0.0
    %2621 = vmatpush1.msra.mxu0 0.0
    %2622 = vmatprep.subr.mxu0 0.0
    %2623 = vmatpush1.msra.mxu0 0.0
    %2624 = vmatprep.subr.mxu0 0.0
    %2625 = vmatpush1.msra.mxu0 0.0
    %2626 = vmatprep.subr.mxu0 0.0
    %2627 = vmatpush1.msra.mxu0 0.0
    %2628 = vmatprep.subr.mxu0 0.0
    %2629 = vmatpush1.msra.mxu0 0.0
    %2630 = vmatprep.subr.mxu0 0.0
    %2631 = vmatpush1.msra.mxu0 0.0
    %2632 = vmatprep.subr.mxu0 0.0
    %2633 = vmatpush1.msra.mxu0 0.0
    %2634 = vmatprep.subr.mxu0 0.0
    %2635 = vmatpush1.msra.mxu0 0.0
    %2636 = vmatprep.mubr.f32.mxu0 0.0
    %2637 = vmatmul.mubr.f32.gmra.mrb[0].mxu0 %v2567
    %v2638 = vpop.f32.mrb[0].mxu0
    %v2639 = vadd.f32 %v2564, %v2638
    %v2640 = vpop.f32.mrb[0].mxu0
    %2641 = vmatprep.mubr.f32.mxu0 0.0
    %2642 = vmatmul.mubr.f32.gmra.mrb[0].mxu0 %v2570
    %v2643 = vpop.f32.mrb[0].mxu0
    %v2644 = vadd.f32 %v2564, %v2643
    %v2645 = vpop.f32.mrb[0].mxu0
    %2646 = vdwg.mxu0
    %v2647 = vld [vmem:[%s53] sm:$0xff]
    %v2648 = vld [vmem:[%s53 + $0x8] sm:$0xff]
    %v2649 = vld [vmem:[%s53 + $0x10] sm:$0xff]
    %v2650 = vld [vmem:[%s53 + $0x18] sm:$0xff]
    %v2651 = vld [vmem:[#allocation31] sm:$0x1]
    %v2653 = vlaneseq
    %v2654 = vshrl.u32 %v2653, 7
    %v2655 = vsub.s32 0, %v2654
    %v2656 = vrot.slane %v2651, %v2655
    %v2659 = vsel %vm387, %v1591, 0
    %v2662 = vsel %vm387, %v1592, 0
    %2664 = vmatprep.subr.mxu0 0.0
    %2665 = vmatpush1.msra.mxu0 %v2647
    %2666 = vmatprep.subr.mxu0 0.0
    %2667 = vmatpush1.msra.mxu0 %v2648
    %2668 = vmatprep.subr.mxu0 0.0
    %2669 = vmatpush1.msra.mxu0 %v2649
    %2670 = vmatprep.subr.mxu0 0.0
    %2671 = vmatpush1.msra.mxu0 %v2650
    %2672 = vmatprep.subr.mxu0 0.0
    %2673 = vmatpush1.msra.mxu0 0.0
    %2674 = vmatprep.subr.mxu0 0.0
    %2675 = vmatpush1.msra.mxu0 0.0
    %2676 = vmatprep.subr.mxu0 0.0
    %2677 = vmatpush1.msra.mxu0 0.0
    %2678 = vmatprep.subr.mxu0 0.0
    %2679 = vmatpush1.msra.mxu0 0.0
    %2680 = vmatprep.subr.mxu0 0.0
    %2681 = vmatpush1.msra.mxu0 0.0
    %2682 = vmatprep.subr.mxu0 0.0
    %2683 = vmatpush1.msra.mxu0 0.0
    %2684 = vmatprep.subr.mxu0 0.0
    %2685 = vmatpush1.msra.mxu0 0.0
    %2686 = vmatprep.subr.mxu0 0.0
    %2687 = vmatpush1.msra.mxu0 0.0
    %2688 = vmatprep.subr.mxu0 0.0
    %2689 = vmatpush1.msra.mxu0 0.0
    %2690 = vmatprep.subr.mxu0 0.0
    %2691 = vmatpush1.msra.mxu0 0.0
    %2692 = vmatprep.subr.mxu0 0.0
    %2693 = vmatpush1.msra.mxu0 0.0
    %2694 = vmatprep.subr.mxu0 0.0
    %2695 = vmatpush1.msra.mxu0 0.0
    %2696 = vmatprep.subr.mxu0 0.0
    %2697 = vmatpush1.msra.mxu0 0.0
    %2698 = vmatprep.subr.mxu0 0.0
    %2699 = vmatpush1.msra.mxu0 0.0
    %2700 = vmatprep.subr.mxu0 0.0
    %2701 = vmatpush1.msra.mxu0 0.0
    %2702 = vmatprep.subr.mxu0 0.0
    %2703 = vmatpush1.msra.mxu0 0.0
    %2704 = vmatprep.subr.mxu0 0.0
    %2705 = vmatpush1.msra.mxu0 0.0
    %2706 = vmatprep.subr.mxu0 0.0
    %2707 = vmatpush1.msra.mxu0 0.0
    %2708 = vmatprep.subr.mxu0 0.0
    %2709 = vmatpush1.msra.mxu0 0.0
    %2710 = vmatprep.subr.mxu0 0.0
    %2711 = vmatpush1.msra.mxu0 0.0
    %2712 = vmatprep.subr.mxu0 0.0
    %2713 = vmatpush1.msra.mxu0 0.0
    %2714 = vmatprep.subr.mxu0 0.0
    %2715 = vmatpush1.msra.mxu0 0.0
    %2716 = vmatprep.subr.mxu0 0.0
    %2717 = vmatpush1.msra.mxu0 0.0
    %2718 = vmatprep.subr.mxu0 0.0
    %2719 = vmatpush1.msra.mxu0 0.0
    %2720 = vmatprep.subr.mxu0 0.0
    %2721 = vmatpush1.msra.mxu0 0.0
    %2722 = vmatprep.subr.mxu0 0.0
    %2723 = vmatpush1.msra.mxu0 0.0
    %2724 = vmatprep.subr.mxu0 0.0
    %2725 = vmatpush1.msra.mxu0 0.0
    %2726 = vmatprep.subr.mxu0 0.0
    %2727 = vmatpush1.msra.mxu0 0.0
    %2728 = vmatprep.mubr.f32.mxu0 0.0
    %2729 = vmatmul.mubr.f32.gmra.mrb[0].mxu0 %v2659
    %v2730 = vpop.f32.mrb[0].mxu0
    %v2731 = vadd.f32 %v2656, %v2730
    %v2732 = vpop.f32.mrb[0].mxu0
    %2733 = vmatprep.mubr.f32.mxu0 0.0
    %2734 = vmatmul.mubr.f32.gmra.mrb[0].mxu0 %v2662
    %v2735 = vpop.f32.mrb[0].mxu0
    %v2736 = vadd.f32 %v2656, %v2735
    %v2737 = vpop.f32.mrb[0].mxu0
    %2738 = vdwg.mxu0
    %v2740 = vsel %vm526, %v2639, 0
    %v2743 = vsel %vm526, %v2731, 0
    %2745 = vmatprep.subr.mxu0 0.0
    %2746 = vmatpush1.xpose.msra.mxu0 %v2743
    %2747 = vmatprep.subr.mxu0 0.0
    %2748 = vmatpush1.xpose.msra.mxu0 0.0
    %2749 = vmatprep.subr.mxu0 0.0
    %2750 = vmatpush1.xpose.msra.mxu0 0.0
    %2751 = vmatprep.subr.mxu0 0.0
    %2752 = vmatpush1.xpose.msra.mxu0 0.0
    %2753 = vmatprep.subr.mxu0 0.0
    %2754 = vmatpush1.xpose.msra.mxu0 0.0
    %2755 = vmatprep.subr.mxu0 0.0
    %2756 = vmatpush1.xpose.msra.mxu0 0.0
    %2757 = vmatprep.subr.mxu0 0.0
    %2758 = vmatpush1.xpose.msra.mxu0 0.0
    %2759 = vmatprep.subr.mxu0 0.0
    %2760 = vmatpush1.xpose.msra.mxu0 0.0
    %2761 = vmatprep.subr.mxu0 0.0
    %2762 = vmatpush1.xpose.msra.mxu0 0.0
    %2763 = vmatprep.subr.mxu0 0.0
    %2764 = vmatpush1.xpose.msra.mxu0 0.0
    %2765 = vmatprep.subr.mxu0 0.0
    %2766 = vmatpush1.xpose.msra.mxu0 0.0
    %2767 = vmatprep.subr.mxu0 0.0
    %2768 = vmatpush1.xpose.msra.mxu0 0.0
    %2769 = vmatprep.subr.mxu0 0.0
    %2770 = vmatpush1.xpose.msra.mxu0 0.0
    %2771 = vmatprep.subr.mxu0 0.0
    %2772 = vmatpush1.xpose.msra.mxu0 0.0
    %2773 = vmatprep.subr.mxu0 0.0
    %2774 = vmatpush1.xpose.msra.mxu0 0.0
    %2775 = vmatprep.subr.mxu0 0.0
    %2776 = vmatpush1.xpose.msra.mxu0 0.0
    %2777 = vmatprep.subr.mxu0 0.0
    %2778 = vmatpush1.xpose.msra.mxu0 0.0
    %2779 = vmatprep.subr.mxu0 0.0
    %2780 = vmatpush1.xpose.msra.mxu0 0.0
    %2781 = vmatprep.subr.mxu0 0.0
    %2782 = vmatpush1.xpose.msra.mxu0 0.0
    %2783 = vmatprep.subr.mxu0 0.0
    %2784 = vmatpush1.xpose.msra.mxu0 0.0
    %2785 = vmatprep.subr.mxu0 0.0
    %2786 = vmatpush1.xpose.msra.mxu0 0.0
    %2787 = vmatprep.subr.mxu0 0.0
    %2788 = vmatpush1.xpose.msra.mxu0 0.0
    %2789 = vmatprep.subr.mxu0 0.0
    %2790 = vmatpush1.xpose.msra.mxu0 0.0
    %2791 = vmatprep.subr.mxu0 0.0
    %2792 = vmatpush1.xpose.msra.mxu0 0.0
    %2793 = vmatprep.subr.mxu0 0.0
    %2794 = vmatpush1.xpose.msra.mxu0 0.0
    %2795 = vmatprep.subr.mxu0 0.0
    %2796 = vmatpush1.xpose.msra.mxu0 0.0
    %2797 = vmatprep.subr.mxu0 0.0
    %2798 = vmatpush1.xpose.msra.mxu0 0.0
    %2799 = vmatprep.subr.mxu0 0.0
    %2800 = vmatpush1.xpose.msra.mxu0 0.0
    %2801 = vmatprep.subr.mxu0 0.0
    %2802 = vmatpush1.xpose.msra.mxu0 0.0
    %2803 = vmatprep.subr.mxu0 0.0
    %2804 = vmatpush1.xpose.msra.mxu0 0.0
    %2805 = vmatprep.subr.mxu0 0.0
    %2806 = vmatpush1.xpose.msra.mxu0 0.0
    %2807 = vmatprep.subr.mxu0 0.0
    %2808 = vmatpush1.xpose.msra.mxu0 0.0
    %2809 = vmatprep.mubr.f32.mxu0 0.0
    %2810 = vmatmul.mubr.f32.gmra.mrb[0].mxu0 %v2740
    %v2811 = vpop.f32.mrb[0].mxu0
    %v2812 = vadd.f32 0.0, %v2811
    %v2813 = vpop.f32.mrb[0].mxu0
    %2814 = vdwg.mxu0
    %v2815 = vmul.f32 %v2812, 0.25
    %v2816 = vsel %vm602, %v2815, -inf
    %2817 = vmax.xlane.f32.xlu0 %v2816
    %v2818 = vpop.xlane.xlu0 %2817
    %v2819 = vsub.f32 %v2815, %v2818
    %v2820 = vmul.f32 %v2819, 1.442695
    %v2821 = vpow.pop %v2820
    %v2822 = vsel %vm602, %v2821, 0.0
    %2823 = vadd.xlane.f32.xlu0 %v2822
    %v2824 = vpop.xlane.xlu0 %2823
    %v2825 = vrcp.pop %v2824
    %v2826 = vmul.f32 %v2821, %v2825
    %2827 = vrot.lane.b32.xlu0 %v2731, 96
    %v2828 = vpop.permute.xlu0 %2827
    %v2831 = vsel %vm602, %v2826, 0
    %2833 = vmatprep.subr.mxu0 0.0
    %2834 = vmatpush1.msra.mxu0 %v2828
    %2835 = vmatprep.subr.mxu0 0.0
    %2836 = vmatpush1.msra.mxu0 0.0
    %2837 = vmatprep.subr.mxu0 0.0
    %2838 = vmatpush1.msra.mxu0 0.0
    %2839 = vmatprep.subr.mxu0 0.0
    %2840 = vmatpush1.msra.mxu0 0.0
    %2841 = vmatprep.subr.mxu0 0.0
    %2842 = vmatpush1.msra.mxu0 0.0
    %2843 = vmatprep.subr.mxu0 0.0
    %2844 = vmatpush1.msra.mxu0 0.0
    %2845 = vmatprep.subr.mxu0 0.0
    %2846 = vmatpush1.msra.mxu0 0.0
    %2847 = vmatprep.subr.mxu0 0.0
    %2848 = vmatpush1.msra.mxu0 0.0
    %2849 = vmatprep.subr.mxu0 0.0
    %2850 = vmatpush1.msra.mxu0 0.0
    %2851 = vmatprep.subr.mxu0 0.0
    %2852 = vmatpush1.msra.mxu0 0.0
    %2853 = vmatprep.subr.mxu0 0.0
    %2854 = vmatpush1.msra.mxu0 0.0
    %2855 = vmatprep.subr.mxu0 0.0
    %2856 = vmatpush1.msra.mxu0 0.0
    %2857 = vmatprep.subr.mxu0 0.0
    %2858 = vmatpush1.msra.mxu0 0.0
    %2859 = vmatprep.subr.mxu0 0.0
    %2860 = vmatpush1.msra.mxu0 0.0
    %2861 = vmatprep.subr.mxu0 0.0
    %2862 = vmatpush1.msra.mxu0 0.0
    %2863 = vmatprep.subr.mxu0 0.0
    %2864 = vmatpush1.msra.mxu0 0.0
    %2865 = vmatprep.subr.mxu0 0.0
    %2866 = vmatpush1.msra.mxu0 0.0
    %2867 = vmatprep.subr.mxu0 0.0
    %2868 = vmatpush1.msra.mxu0 0.0
    %2869 = vmatprep.subr.mxu0 0.0
    %2870 = vmatpush1.msra.mxu0 0.0
    %2871 = vmatprep.subr.mxu0 0.0
    %2872 = vmatpush1.msra.mxu0 0.0
    %2873 = vmatprep.subr.mxu0 0.0
    %2874 = vmatpush1.msra.mxu0 0.0
    %2875 = vmatprep.subr.mxu0 0.0
    %2876 = vmatpush1.msra.mxu0 0.0
    %2877 = vmatprep.subr.mxu0 0.0
    %2878 = vmatpush1.msra.mxu0 0.0
    %2879 = vmatprep.subr.mxu0 0.0
    %2880 = vmatpush1.msra.mxu0 0.0
    %2881 = vmatprep.subr.mxu0 0.0
    %2882 = vmatpush1.msra.mxu0 0.0
    %2883 = vmatprep.subr.mxu0 0.0
    %2884 = vmatpush1.msra.mxu0 0.0
    %2885 = vmatprep.subr.mxu0 0.0
    %2886 = vmatpush1.msra.mxu0 0.0
    %2887 = vmatprep.subr.mxu0 0.0
    %2888 = vmatpush1.msra.mxu0 0.0
    %2889 = vmatprep.subr.mxu0 0.0
    %2890 = vmatpush1.msra.mxu0 0.0
    %2891 = vmatprep.subr.mxu0 0.0
    %2892 = vmatpush1.msra.mxu0 0.0
    %2893 = vmatprep.subr.mxu0 0.0
    %2894 = vmatpush1.msra.mxu0 0.0
    %2895 = vmatprep.subr.mxu0 0.0
    %2896 = vmatpush1.msra.mxu0 0.0
    %2897 = vmatprep.mubr.f32.mxu0 0.0
    %2898 = vmatmul.mubr.f32.gmra.mrb[0].mxu0 %v2831
    %v2899 = vpop.f32.mrb[0].mxu0
    %v2900 = vadd.f32 0.0, %v2899
    %v2901 = vpop.f32.mrb[0].mxu0
    %2902 = vdwg.mxu0
    %2903 = vst.msk [vmem:[#allocation3] sm:$0xff] %vm526, %v2900
    %2904 = vrot.lane.b32.xlu0 %v2639, 112
    %v2905 = vpop.permute.xlu0 %2904
    %2906 = vrot.lane.b32.xlu0 %v2731, 112
    %v2907 = vpop.permute.xlu0 %2906
    %v2908 = vsel %vm526, %v2905, 0
    %v2910 = vsel %vm526, %v2907, 0
    %2912 = vmatprep.subr.mxu0 0.0
    %2913 = vmatpush1.xpose.msra.mxu0 %v2910
    %2914 = vmatprep.subr.mxu0 0.0
    %2915 = vmatpush1.xpose.msra.mxu0 0.0
    %2916 = vmatprep.subr.mxu0 0.0
    %2917 = vmatpush1.xpose.msra.mxu0 0.0
    %2918 = vmatprep.subr.mxu0 0.0
    %2919 = vmatpush1.xpose.msra.mxu0 0.0
    %2920 = vmatprep.subr.mxu0 0.0
    %2921 = vmatpush1.xpose.msra.mxu0 0.0
    %2922 = vmatprep.subr.mxu0 0.0
    %2923 = vmatpush1.xpose.msra.mxu0 0.0
    %2924 = vmatprep.subr.mxu0 0.0
    %2925 = vmatpush1.xpose.msra.mxu0 0.0
    %2926 = vmatprep.subr.mxu0 0.0
    %2927 = vmatpush1.xpose.msra.mxu0 0.0
    %2928 = vmatprep.subr.mxu0 0.0
    %2929 = vmatpush1.xpose.msra.mxu0 0.0
    %2930 = vmatprep.subr.mxu0 0.0
    %2931 = vmatpush1.xpose.msra.mxu0 0.0
    %2932 = vmatprep.subr.mxu0 0.0
    %2933 = vmatpush1.xpose.msra.mxu0 0.0
    %2934 = vmatprep.subr.mxu0 0.0
    %2935 = vmatpush1.xpose.msra.mxu0 0.0
    %2936 = vmatprep.subr.mxu0 0.0
    %2937 = vmatpush1.xpose.msra.mxu0 0.0
    %2938 = vmatprep.subr.mxu0 0.0
    %2939 = vmatpush1.xpose.msra.mxu0 0.0
    %2940 = vmatprep.subr.mxu0 0.0
    %2941 = vmatpush1.xpose.msra.mxu0 0.0
    %2942 = vmatprep.subr.mxu0 0.0
    %2943 = vmatpush1.xpose.msra.mxu0 0.0
    %2944 = vmatprep.subr.mxu0 0.0
    %2945 = vmatpush1.xpose.msra.mxu0 0.0
    %2946 = vmatprep.subr.mxu0 0.0
    %2947 = vmatpush1.xpose.msra.mxu0 0.0
    %2948 = vmatprep.subr.mxu0 0.0
    %2949 = vmatpush1.xpose.msra.mxu0 0.0
    %2950 = vmatprep.subr.mxu0 0.0
    %2951 = vmatpush1.xpose.msra.mxu0 0.0
    %2952 = vmatprep.subr.mxu0 0.0
    %2953 = vmatpush1.xpose.msra.mxu0 0.0
    %2954 = vmatprep.subr.mxu0 0.0
    %2955 = vmatpush1.xpose.msra.mxu0 0.0
    %2956 = vmatprep.subr.mxu0 0.0
    %2957 = vmatpush1.xpose.msra.mxu0 0.0
    %2958 = vmatprep.subr.mxu0 0.0
    %2959 = vmatpush1.xpose.msra.mxu0 0.0
    %2960 = vmatprep.subr.mxu0 0.0
    %2961 = vmatpush1.xpose.msra.mxu0 0.0
    %2962 = vmatprep.subr.mxu0 0.0
    %2963 = vmatpush1.xpose.msra.mxu0 0.0
    %2964 = vmatprep.subr.mxu0 0.0
    %2965 = vmatpush1.xpose.msra.mxu0 0.0
    %2966 = vmatprep.subr.mxu0 0.0
    %2967 = vmatpush1.xpose.msra.mxu0 0.0
    %2968 = vmatprep.subr.mxu0 0.0
    %2969 = vmatpush1.xpose.msra.mxu0 0.0
    %2970 = vmatprep.subr.mxu0 0.0
    %2971 = vmatpush1.xpose.msra.mxu0 0.0
    %2972 = vmatprep.subr.mxu0 0.0
    %2973 = vmatpush1.xpose.msra.mxu0 0.0
    %2974 = vmatprep.subr.mxu0 0.0
    %2975 = vmatpush1.xpose.msra.mxu0 0.0
    %2976 = vmatprep.mubr.f32.mxu0 0.0
    %2977 = vmatmul.mubr.f32.gmra.mrb[0].mxu0 %v2908
    %v2978 = vpop.f32.mrb[0].mxu0
    %v2979 = vadd.f32 0.0, %v2978
    %v2980 = vpop.f32.mrb[0].mxu0
    %2981 = vdwg.mxu0
    %v2982 = vmul.f32 %v2979, 0.25
    %v2983 = vsel %vm602, %v2982, -inf
    %2984 = vmax.xlane.f32.xlu0 %v2983
    %v2985 = vpop.xlane.xlu0 %2984
    %v2986 = vsub.f32 %v2982, %v2985
    %v2987 = vmul.f32 %v2986, 1.442695
    %v2988 = vpow.pop %v2987
    %v2989 = vsel %vm602, %v2988, 0.0
    %2990 = vadd.xlane.f32.xlu0 %v2989
    %v2991 = vpop.xlane.xlu0 %2990
    %v2992 = vrcp.pop %v2991
    %v2993 = vmul.f32 %v2988, %v2992
    %2994 = vrot.lane.b32.xlu0 %v2731, 80
    %v2995 = vpop.permute.xlu0 %2994
    %v2998 = vsel %vm602, %v2993, 0
    %3000 = vmatprep.subr.mxu0 0.0
    %3001 = vmatpush1.msra.mxu0 %v2995
    %3002 = vmatprep.subr.mxu0 0.0
    %3003 = vmatpush1.msra.mxu0 0.0
    %3004 = vmatprep.subr.mxu0 0.0
    %3005 = vmatpush1.msra.mxu0 0.0
    %3006 = vmatprep.subr.mxu0 0.0
    %3007 = vmatpush1.msra.mxu0 0.0
    %3008 = vmatprep.subr.mxu0 0.0
    %3009 = vmatpush1.msra.mxu0 0.0
    %3010 = vmatprep.subr.mxu0 0.0
    %3011 = vmatpush1.msra.mxu0 0.0
    %3012 = vmatprep.subr.mxu0 0.0
    %3013 = vmatpush1.msra.mxu0 0.0
    %3014 = vmatprep.subr.mxu0 0.0
    %3015 = vmatpush1.msra.mxu0 0.0
    %3016 = vmatprep.subr.mxu0 0.0
    %3017 = vmatpush1.msra.mxu0 0.0
    %3018 = vmatprep.subr.mxu0 0.0
    %3019 = vmatpush1.msra.mxu0 0.0
    %3020 = vmatprep.subr.mxu0 0.0
    %3021 = vmatpush1.msra.mxu0 0.0
    %3022 = vmatprep.subr.mxu0 0.0
    %3023 = vmatpush1.msra.mxu0 0.0
    %3024 = vmatprep.subr.mxu0 0.0
    %3025 = vmatpush1.msra.mxu0 0.0
    %3026 = vmatprep.subr.mxu0 0.0
    %3027 = vmatpush1.msra.mxu0 0.0
    %3028 = vmatprep.subr.mxu0 0.0
    %3029 = vmatpush1.msra.mxu0 0.0
    %3030 = vmatprep.subr.mxu0 0.0
    %3031 = vmatpush1.msra.mxu0 0.0
    %3032 = vmatprep.subr.mxu0 0.0
    %3033 = vmatpush1.msra.mxu0 0.0
    %3034 = vmatprep.subr.mxu0 0.0
    %3035 = vmatpush1.msra.mxu0 0.0
    %3036 = vmatprep.subr.mxu0 0.0
    %3037 = vmatpush1.msra.mxu0 0.0
    %3038 = vmatprep.subr.mxu0 0.0
    %3039 = vmatpush1.msra.mxu0 0.0
    %3040 = vmatprep.subr.mxu0 0.0
    %3041 = vmatpush1.msra.mxu0 0.0
    %3042 = vmatprep.subr.mxu0 0.0
    %3043 = vmatpush1.msra.mxu0 0.0
    %3044 = vmatprep.subr.mxu0 0.0
    %3045 = vmatpush1.msra.mxu0 0.0
    %3046 = vmatprep.subr.mxu0 0.0
    %3047 = vmatpush1.msra.mxu0 0.0
    %3048 = vmatprep.subr.mxu0 0.0
    %3049 = vmatpush1.msra.mxu0 0.0
    %3050 = vmatprep.subr.mxu0 0.0
    %3051 = vmatpush1.msra.mxu0 0.0
    %3052 = vmatprep.subr.mxu0 0.0
    %3053 = vmatpush1.msra.mxu0 0.0
    %3054 = vmatprep.subr.mxu0 0.0
    %3055 = vmatpush1.msra.mxu0 0.0
    %3056 = vmatprep.subr.mxu0 0.0
    %3057 = vmatpush1.msra.mxu0 0.0
    %3058 = vmatprep.subr.mxu0 0.0
    %3059 = vmatpush1.msra.mxu0 0.0
    %3060 = vmatprep.subr.mxu0 0.0
    %3061 = vmatpush1.msra.mxu0 0.0
    %3062 = vmatprep.subr.mxu0 0.0
    %3063 = vmatpush1.msra.mxu0 0.0
    %3064 = vmatprep.mubr.f32.mxu0 0.0
    %3065 = vmatmul.mubr.f32.gmra.mrb[0].mxu0 %v2998
    %v3066 = vpop.f32.mrb[0].mxu0
    %v3067 = vadd.f32 0.0, %v3066
    %v3068 = vpop.f32.mrb[0].mxu0
    %3069 = vdwg.mxu0
    %3071 = vrot.lane.b32.xlu0 %v3067, 16
    %v3072 = vpop.permute.xlu0 %3071
    %3074 = vst.msk [vmem:[#allocation3] sm:$0xff] %vm861, %v3072
    %v3076 = vsel %vm526, %v2644, 0
    %v3079 = vsel %vm526, %v2736, 0
    %3081 = vmatprep.subr.mxu0 0.0
    %3082 = vmatpush1.xpose.msra.mxu0 %v3079
    %3083 = vmatprep.subr.mxu0 0.0
    %3084 = vmatpush1.xpose.msra.mxu0 0.0
    %3085 = vmatprep.subr.mxu0 0.0
    %3086 = vmatpush1.xpose.msra.mxu0 0.0
    %3087 = vmatprep.subr.mxu0 0.0
    %3088 = vmatpush1.xpose.msra.mxu0 0.0
    %3089 = vmatprep.subr.mxu0 0.0
    %3090 = vmatpush1.xpose.msra.mxu0 0.0
    %3091 = vmatprep.subr.mxu0 0.0
    %3092 = vmatpush1.xpose.msra.mxu0 0.0
    %3093 = vmatprep.subr.mxu0 0.0
    %3094 = vmatpush1.xpose.msra.mxu0 0.0
    %3095 = vmatprep.subr.mxu0 0.0
    %3096 = vmatpush1.xpose.msra.mxu0 0.0
    %3097 = vmatprep.subr.mxu0 0.0
    %3098 = vmatpush1.xpose.msra.mxu0 0.0
    %3099 = vmatprep.subr.mxu0 0.0
    %3100 = vmatpush1.xpose.msra.mxu0 0.0
    %3101 = vmatprep.subr.mxu0 0.0
    %3102 = vmatpush1.xpose.msra.mxu0 0.0
    %3103 = vmatprep.subr.mxu0 0.0
    %3104 = vmatpush1.xpose.msra.mxu0 0.0
    %3105 = vmatprep.subr.mxu0 0.0
    %3106 = vmatpush1.xpose.msra.mxu0 0.0
    %3107 = vmatprep.subr.mxu0 0.0
    %3108 = vmatpush1.xpose.msra.mxu0 0.0
    %3109 = vmatprep.subr.mxu0 0.0
    %3110 = vmatpush1.xpose.msra.mxu0 0.0
    %3111 = vmatprep.subr.mxu0 0.0
    %3112 = vmatpush1.xpose.msra.mxu0 0.0
    %3113 = vmatprep.subr.mxu0 0.0
    %3114 = vmatpush1.xpose.msra.mxu0 0.0
    %3115 = vmatprep.subr.mxu0 0.0
    %3116 = vmatpush1.xpose.msra.mxu0 0.0
    %3117 = vmatprep.subr.mxu0 0.0
    %3118 = vmatpush1.xpose.msra.mxu0 0.0
    %3119 = vmatprep.subr.mxu0 0.0
    %3120 = vmatpush1.xpose.msra.mxu0 0.0
    %3121 = vmatprep.subr.mxu0 0.0
    %3122 = vmatpush1.xpose.msra.mxu0 0.0
    %3123 = vmatprep.subr.mxu0 0.0
    %3124 = vmatpush1.xpose.msra.mxu0 0.0
    %3125 = vmatprep.subr.mxu0 0.0
    %3126 = vmatpush1.xpose.msra.mxu0 0.0
    %3127 = vmatprep.subr.mxu0 0.0
    %3128 = vmatpush1.xpose.msra.mxu0 0.0
    %3129 = vmatprep.subr.mxu0 0.0
    %3130 = vmatpush1.xpose.msra.mxu0 0.0
    %3131 = vmatprep.subr.mxu0 0.0
    %3132 = vmatpush1.xpose.msra.mxu0 0.0
    %3133 = vmatprep.subr.mxu0 0.0
    %3134 = vmatpush1.xpose.msra.mxu0 0.0
    %3135 = vmatprep.subr.mxu0 0.0
    %3136 = vmatpush1.xpose.msra.mxu0 0.0
    %3137 = vmatprep.subr.mxu0 0.0
    %3138 = vmatpush1.xpose.msra.mxu0 0.0
    %3139 = vmatprep.subr.mxu0 0.0
    %3140 = vmatpush1.xpose.msra.mxu0 0.0
    %3141 = vmatprep.subr.mxu0 0.0
    %3142 = vmatpush1.xpose.msra.mxu0 0.0
    %3143 = vmatprep.subr.mxu0 0.0
    %3144 = vmatpush1.xpose.msra.mxu0 0.0
    %3145 = vmatprep.mubr.f32.mxu0 0.0
    %3146 = vmatmul.mubr.f32.gmra.mrb[0].mxu0 %v3076
    %v3147 = vpop.f32.mrb[0].mxu0
    %v3148 = vadd.f32 0.0, %v3147
    %v3149 = vpop.f32.mrb[0].mxu0
    %3150 = vdwg.mxu0
    %v3151 = vmul.f32 %v3148, 0.25
    %v3152 = vsel %vm602, %v3151, -inf
    %3153 = vmax.xlane.f32.xlu0 %v3152
    %v3154 = vpop.xlane.xlu0 %3153
    %v3155 = vsub.f32 %v3151, %v3154
    %v3156 = vmul.f32 %v3155, 1.442695
    %v3157 = vpow.pop %v3156
    %v3158 = vsel %vm602, %v3157, 0.0
    %3159 = vadd.xlane.f32.xlu0 %v3158
    %v3160 = vpop.xlane.xlu0 %3159
    %v3161 = vrcp.pop %v3160
    %v3162 = vmul.f32 %v3157, %v3161
    %3163 = vrot.lane.b32.xlu0 %v2736, 96
    %v3164 = vpop.permute.xlu0 %3163
    %v3167 = vsel %vm602, %v3162, 0
    %3169 = vmatprep.subr.mxu0 0.0
    %3170 = vmatpush1.msra.mxu0 %v3164
    %3171 = vmatprep.subr.mxu0 0.0
    %3172 = vmatpush1.msra.mxu0 0.0
    %3173 = vmatprep.subr.mxu0 0.0
    %3174 = vmatpush1.msra.mxu0 0.0
    %3175 = vmatprep.subr.mxu0 0.0
    %3176 = vmatpush1.msra.mxu0 0.0
    %3177 = vmatprep.subr.mxu0 0.0
    %3178 = vmatpush1.msra.mxu0 0.0
    %3179 = vmatprep.subr.mxu0 0.0
    %3180 = vmatpush1.msra.mxu0 0.0
    %3181 = vmatprep.subr.mxu0 0.0
    %3182 = vmatpush1.msra.mxu0 0.0
    %3183 = vmatprep.subr.mxu0 0.0
    %3184 = vmatpush1.msra.mxu0 0.0
    %3185 = vmatprep.subr.mxu0 0.0
    %3186 = vmatpush1.msra.mxu0 0.0
    %3187 = vmatprep.subr.mxu0 0.0
    %3188 = vmatpush1.msra.mxu0 0.0
    %3189 = vmatprep.subr.mxu0 0.0
    %3190 = vmatpush1.msra.mxu0 0.0
    %3191 = vmatprep.subr.mxu0 0.0
    %3192 = vmatpush1.msra.mxu0 0.0
    %3193 = vmatprep.subr.mxu0 0.0
    %3194 = vmatpush1.msra.mxu0 0.0
    %3195 = vmatprep.subr.mxu0 0.0
    %3196 = vmatpush1.msra.mxu0 0.0
    %3197 = vmatprep.subr.mxu0 0.0
    %3198 = vmatpush1.msra.mxu0 0.0
    %3199 = vmatprep.subr.mxu0 0.0
    %3200 = vmatpush1.msra.mxu0 0.0
    %3201 = vmatprep.subr.mxu0 0.0
    %3202 = vmatpush1.msra.mxu0 0.0
    %3203 = vmatprep.subr.mxu0 0.0
    %3204 = vmatpush1.msra.mxu0 0.0
    %3205 = vmatprep.subr.mxu0 0.0
    %3206 = vmatpush1.msra.mxu0 0.0
    %3207 = vmatprep.subr.mxu0 0.0
    %3208 = vmatpush1.msra.mxu0 0.0
    %3209 = vmatprep.subr.mxu0 0.0
    %3210 = vmatpush1.msra.mxu0 0.0
    %3211 = vmatprep.subr.mxu0 0.0
    %3212 = vmatpush1.msra.mxu0 0.0
    %3213 = vmatprep.subr.mxu0 0.0
    %3214 = vmatpush1.msra.mxu0 0.0
    %3215 = vmatprep.subr.mxu0 0.0
    %3216 = vmatpush1.msra.mxu0 0.0
    %3217 = vmatprep.subr.mxu0 0.0
    %3218 = vmatpush1.msra.mxu0 0.0
    %3219 = vmatprep.subr.mxu0 0.0
    %3220 = vmatpush1.msra.mxu0 0.0
    %3221 = vmatprep.subr.mxu0 0.0
    %3222 = vmatpush1.msra.mxu0 0.0
    %3223 = vmatprep.subr.mxu0 0.0
    %3224 = vmatpush1.msra.mxu0 0.0
    %3225 = vmatprep.subr.mxu0 0.0
    %3226 = vmatpush1.msra.mxu0 0.0
    %3227 = vmatprep.subr.mxu0 0.0
    %3228 = vmatpush1.msra.mxu0 0.0
    %3229 = vmatprep.subr.mxu0 0.0
    %3230 = vmatpush1.msra.mxu0 0.0
    %3231 = vmatprep.subr.mxu0 0.0
    %3232 = vmatpush1.msra.mxu0 0.0
    %3233 = vmatprep.mubr.f32.mxu0 0.0
    %3234 = vmatmul.mubr.f32.gmra.mrb[0].mxu0 %v3167
    %v3235 = vpop.f32.mrb[0].mxu0
    %v3236 = vadd.f32 0.0, %v3235
    %v3237 = vpop.f32.mrb[0].mxu0
    %3238 = vdwg.mxu0
    %3239 = vst.msk [vmem:[#allocation3 + $0x8] sm:$0xff] %vm526, %v3236
    %3240 = vrot.lane.b32.xlu0 %v2644, 112
    %v3241 = vpop.permute.xlu0 %3240
    %3242 = vrot.lane.b32.xlu0 %v2736, 112
    %v3243 = vpop.permute.xlu0 %3242
    %v3244 = vsel %vm526, %v3241, 0
    %v3246 = vsel %vm526, %v3243, 0
    %3248 = vmatprep.subr.mxu0 0.0
    %3249 = vmatpush1.xpose.msra.mxu0 %v3246
    %3250 = vmatprep.subr.mxu0 0.0
    %3251 = vmatpush1.xpose.msra.mxu0 0.0
    %3252 = vmatprep.subr.mxu0 0.0
    %3253 = vmatpush1.xpose.msra.mxu0 0.0
    %3254 = vmatprep.subr.mxu0 0.0
    %3255 = vmatpush1.xpose.msra.mxu0 0.0
    %3256 = vmatprep.subr.mxu0 0.0
    %3257 = vmatpush1.xpose.msra.mxu0 0.0
    %3258 = vmatprep.subr.mxu0 0.0
    %3259 = vmatpush1.xpose.msra.mxu0 0.0
    %3260 = vmatprep.subr.mxu0 0.0
    %3261 = vmatpush1.xpose.msra.mxu0 0.0
    %3262 = vmatprep.subr.mxu0 0.0
    %3263 = vmatpush1.xpose.msra.mxu0 0.0
    %3264 = vmatprep.subr.mxu0 0.0
    %3265 = vmatpush1.xpose.msra.mxu0 0.0
    %3266 = vmatprep.subr.mxu0 0.0
    %3267 = vmatpush1.xpose.msra.mxu0 0.0
    %3268 = vmatprep.subr.mxu0 0.0
    %3269 = vmatpush1.xpose.msra.mxu0 0.0
    %3270 = vmatprep.subr.mxu0 0.0
    %3271 = vmatpush1.xpose.msra.mxu0 0.0
    %3272 = vmatprep.subr.mxu0 0.0
    %3273 = vmatpush1.xpose.msra.mxu0 0.0
    %3274 = vmatprep.subr.mxu0 0.0
    %3275 = vmatpush1.xpose.msra.mxu0 0.0
    %3276 = vmatprep.subr.mxu0 0.0
    %3277 = vmatpush1.xpose.msra.mxu0 0.0
    %3278 = vmatprep.subr.mxu0 0.0
    %3279 = vmatpush1.xpose.msra.mxu0 0.0
    %3280 = vmatprep.subr.mxu0 0.0
    %3281 = vmatpush1.xpose.msra.mxu0 0.0
    %3282 = vmatprep.subr.mxu0 0.0
    %3283 = vmatpush1.xpose.msra.mxu0 0.0
    %3284 = vmatprep.subr.mxu0 0.0
    %3285 = vmatpush1.xpose.msra.mxu0 0.0
    %3286 = vmatprep.subr.mxu0 0.0
    %3287 = vmatpush1.xpose.msra.mxu0 0.0
    %3288 = vmatprep.subr.mxu0 0.0
    %3289 = vmatpush1.xpose.msra.mxu0 0.0
    %3290 = vmatprep.subr.mxu0 0.0
    %3291 = vmatpush1.xpose.msra.mxu0 0.0
    %3292 = vmatprep.subr.mxu0 0.0
    %3293 = vmatpush1.xpose.msra.mxu0 0.0
    %3294 = vmatprep.subr.mxu0 0.0
    %3295 = vmatpush1.xpose.msra.mxu0 0.0
    %3296 = vmatprep.subr.mxu0 0.0
    %3297 = vmatpush1.xpose.msra.mxu0 0.0
    %3298 = vmatprep.subr.mxu0 0.0
    %3299 = vmatpush1.xpose.msra.mxu0 0.0
    %3300 = vmatprep.subr.mxu0 0.0
    %3301 = vmatpush1.xpose.msra.mxu0 0.0
    %3302 = vmatprep.subr.mxu0 0.0
    %3303 = vmatpush1.xpose.msra.mxu0 0.0
    %3304 = vmatprep.subr.mxu0 0.0
    %3305 = vmatpush1.xpose.msra.mxu0 0.0
    %3306 = vmatprep.subr.mxu0 0.0
    %3307 = vmatpush1.xpose.msra.mxu0 0.0
    %3308 = vmatprep.subr.mxu0 0.0
    %3309 = vmatpush1.xpose.msra.mxu0 0.0
    %3310 = vmatprep.subr.mxu0 0.0
    %3311 = vmatpush1.xpose.msra.mxu0 0.0
    %3312 = vmatprep.mubr.f32.mxu0 0.0
    %3313 = vmatmul.mubr.f32.gmra.mrb[0].mxu0 %v3244
    %v3314 = vpop.f32.mrb[0].mxu0
    %v3315 = vadd.f32 0.0, %v3314
    %v3316 = vpop.f32.mrb[0].mxu0
    %3317 = vdwg.mxu0
    %v3318 = vmul.f32 %v3315, 0.25
    %v3319 = vsel %vm602, %v3318, -inf
    %3320 = vmax.xlane.f32.xlu0 %v3319
    %v3321 = vpop.xlane.xlu0 %3320
    %v3322 = vsub.f32 %v3318, %v3321
    %v3323 = vmul.f32 %v3322, 1.442695
    %v3324 = vpow.pop %v3323
    %v3325 = vsel %vm602, %v3324, 0.0
    %3326 = vadd.xlane.f32.xlu0 %v3325
    %v3327 = vpop.xlane.xlu0 %3326
    %v3328 = vrcp.pop %v3327
    %v3329 = vmul.f32 %v3324, %v3328
    %3330 = vrot.lane.b32.xlu0 %v2736, 80
    %v3331 = vpop.permute.xlu0 %3330
    %v3334 = vsel %vm602, %v3329, 0
    %3336 = vmatprep.subr.mxu0 0.0
    %3337 = vmatpush1.msra.mxu0 %v3331
    %3338 = vmatprep.subr.mxu0 0.0
    %3339 = vmatpush1.msra.mxu0 0.0
    %3340 = vmatprep.subr.mxu0 0.0
    %3341 = vmatpush1.msra.mxu0 0.0
    %3342 = vmatprep.subr.mxu0 0.0
    %3343 = vmatpush1.msra.mxu0 0.0
    %3344 = vmatprep.subr.mxu0 0.0
    %3345 = vmatpush1.msra.mxu0 0.0
    %3346 = vmatprep.subr.mxu0 0.0
    %3347 = vmatpush1.msra.mxu0 0.0
    %3348 = vmatprep.subr.mxu0 0.0
    %3349 = vmatpush1.msra.mxu0 0.0
    %3350 = vmatprep.subr.mxu0 0.0
    %3351 = vmatpush1.msra.mxu0 0.0
    %3352 = vmatprep.subr.mxu0 0.0
    %3353 = vmatpush1.msra.mxu0 0.0
    %3354 = vmatprep.subr.mxu0 0.0
    %3355 = vmatpush1.msra.mxu0 0.0
    %3356 = vmatprep.subr.mxu0 0.0
    %3357 = vmatpush1.msra.mxu0 0.0
    %3358 = vmatprep.subr.mxu0 0.0
    %3359 = vmatpush1.msra.mxu0 0.0
    %3360 = vmatprep.subr.mxu0 0.0
    %3361 = vmatpush1.msra.mxu0 0.0
    %3362 = vmatprep.subr.mxu0 0.0
    %3363 = vmatpush1.msra.mxu0 0.0
    %3364 = vmatprep.subr.mxu0 0.0
    %3365 = vmatpush1.msra.mxu0 0.0
    %3366 = vmatprep.subr.mxu0 0.0
    %3367 = vmatpush1.msra.mxu0 0.0
    %3368 = vmatprep.subr.mxu0 0.0
    %3369 = vmatpush1.msra.mxu0 0.0
    %3370 = vmatprep.subr.mxu0 0.0
    %3371 = vmatpush1.msra.mxu0 0.0
    %3372 = vmatprep.subr.mxu0 0.0
    %3373 = vmatpush1.msra.mxu0 0.0
    %3374 = vmatprep.subr.mxu0 0.0
    %3375 = vmatpush1.msra.mxu0 0.0
    %3376 = vmatprep.subr.mxu0 0.0
    %3377 = vmatpush1.msra.mxu0 0.0
    %3378 = vmatprep.subr.mxu0 0.0
    %3379 = vmatpush1.msra.mxu0 0.0
    %3380 = vmatprep.subr.mxu0 0.0
    %3381 = vmatpush1.msra.mxu0 0.0
    %3382 = vmatprep.subr.mxu0 0.0
    %3383 = vmatpush1.msra.mxu0 0.0
    %3384 = vmatprep.subr.mxu0 0.0
    %3385 = vmatpush1.msra.mxu0 0.0
    %3386 = vmatprep.subr.mxu0 0.0
    %3387 = vmatpush1.msra.mxu0 0.0
    %3388 = vmatprep.subr.mxu0 0.0
    %3389 = vmatpush1.msra.mxu0 0.0
    %3390 = vmatprep.subr.mxu0 0.0
    %3391 = vmatpush1.msra.mxu0 0.0
    %3392 = vmatprep.subr.mxu0 0.0
    %3393 = vmatpush1.msra.mxu0 0.0
    %3394 = vmatprep.subr.mxu0 0.0
    %3395 = vmatpush1.msra.mxu0 0.0
    %3396 = vmatprep.subr.mxu0 0.0
    %3397 = vmatpush1.msra.mxu0 0.0
    %3398 = vmatprep.subr.mxu0 0.0
    %3399 = vmatpush1.msra.mxu0 0.0
    %3400 = vmatprep.mubr.f32.mxu0 0.0
    %3401 = vmatmul.mubr.f32.gmra.mrb[0].mxu0 %v3334
    %v3402 = vpop.f32.mrb[0].mxu0
    %v3403 = vadd.f32 0.0, %v3402
    %v3404 = vpop.f32.mrb[0].mxu0
    %3405 = vdwg.mxu0
    %3407 = vrot.lane.b32.xlu0 %v3403, 16
    %v3408 = vpop.permute.xlu0 %3407
    %3410 = vst.msk [vmem:[#allocation3 + $0x8] sm:$0xff] %vm861, %v3408
    %v3411 = vld [vmem:[#allocation3] sm:$0xff]
    %v3412 = vld [vmem:[#allocation3 + $0x8] sm:$0xff]
    %v3413 = vld [vmem:[%s57] sm:$0xff]
    %v3414 = vld [vmem:[%s57 + $0x8] sm:$0xff]
    %v3415 = vld [vmem:[%s57 + $0x10] sm:$0xff]
    %v3416 = vld [vmem:[%s57 + $0x18] sm:$0xff]
    %v3417 = vld [vmem:[%s59] sm:$0x1]
    %v3419 = vlaneseq
    %v3420 = vshrl.u32 %v3419, 7
    %v3421 = vsub.s32 0, %v3420
    %v3422 = vrot.slane %v3417, %v3421
    %v3425 = vsel %vm387, %v3411, 0
    %v3428 = vsel %vm387, %v3412, 0
    %3430 = vmatprep.subr.mxu0 0.0
    %3431 = vmatpush1.msra.mxu0 %v3413
    %3432 = vmatprep.subr.mxu0 0.0
    %3433 = vmatpush1.msra.mxu0 %v3414
    %3434 = vmatprep.subr.mxu0 0.0
    %3435 = vmatpush1.msra.mxu0 %v3415
    %3436 = vmatprep.subr.mxu0 0.0
    %3437 = vmatpush1.msra.mxu0 %v3416
    %3438 = vmatprep.subr.mxu0 0.0
    %3439 = vmatpush1.msra.mxu0 0.0
    %3440 = vmatprep.subr.mxu0 0.0
    %3441 = vmatpush1.msra.mxu0 0.0
    %3442 = vmatprep.subr.mxu0 0.0
    %3443 = vmatpush1.msra.mxu0 0.0
    %3444 = vmatprep.subr.mxu0 0.0
    %3445 = vmatpush1.msra.mxu0 0.0
    %3446 = vmatprep.subr.mxu0 0.0
    %3447 = vmatpush1.msra.mxu0 0.0
    %3448 = vmatprep.subr.mxu0 0.0
    %3449 = vmatpush1.msra.mxu0 0.0
    %3450 = vmatprep.subr.mxu0 0.0
    %3451 = vmatpush1.msra.mxu0 0.0
    %3452 = vmatprep.subr.mxu0 0.0
    %3453 = vmatpush1.msra.mxu0 0.0
    %3454 = vmatprep.subr.mxu0 0.0
    %3455 = vmatpush1.msra.mxu0 0.0
    %3456 = vmatprep.subr.mxu0 0.0
    %3457 = vmatpush1.msra.mxu0 0.0
    %3458 = vmatprep.subr.mxu0 0.0
    %3459 = vmatpush1.msra.mxu0 0.0
    %3460 = vmatprep.subr.mxu0 0.0
    %3461 = vmatpush1.msra.mxu0 0.0
    %3462 = vmatprep.subr.mxu0 0.0
    %3463 = vmatpush1.msra.mxu0 0.0
    %3464 = vmatprep.subr.mxu0 0.0
    %3465 = vmatpush1.msra.mxu0 0.0
    %3466 = vmatprep.subr.mxu0 0.0
    %3467 = vmatpush1.msra.mxu0 0.0
    %3468 = vmatprep.subr.mxu0 0.0
    %3469 = vmatpush1.msra.mxu0 0.0
    %3470 = vmatprep.subr.mxu0 0.0
    %3471 = vmatpush1.msra.mxu0 0.0
    %3472 = vmatprep.subr.mxu0 0.0
    %3473 = vmatpush1.msra.mxu0 0.0
    %3474 = vmatprep.subr.mxu0 0.0
    %3475 = vmatpush1.msra.mxu0 0.0
    %3476 = vmatprep.subr.mxu0 0.0
    %3477 = vmatpush1.msra.mxu0 0.0
    %3478 = vmatprep.subr.mxu0 0.0
    %3479 = vmatpush1.msra.mxu0 0.0
    %3480 = vmatprep.subr.mxu0 0.0
    %3481 = vmatpush1.msra.mxu0 0.0
    %3482 = vmatprep.subr.mxu0 0.0
    %3483 = vmatpush1.msra.mxu0 0.0
    %3484 = vmatprep.subr.mxu0 0.0
    %3485 = vmatpush1.msra.mxu0 0.0
    %3486 = vmatprep.subr.mxu0 0.0
    %3487 = vmatpush1.msra.mxu0 0.0
    %3488 = vmatprep.subr.mxu0 0.0
    %3489 = vmatpush1.msra.mxu0 0.0
    %3490 = vmatprep.subr.mxu0 0.0
    %3491 = vmatpush1.msra.mxu0 0.0
    %3492 = vmatprep.subr.mxu0 0.0
    %3493 = vmatpush1.msra.mxu0 0.0
    %3494 = vmatprep.mubr.f32.mxu0 0.0
    %3495 = vmatmul.mubr.f32.gmra.mrb[0].mxu0 %v3425
    %v3496 = vpop.f32.mrb[0].mxu0
    %v3497 = vadd.f32 %v3422, %v3496
    %v3498 = vpop.f32.mrb[0].mxu0
    %3499 = vmatprep.mubr.f32.mxu0 0.0
    %3500 = vmatmul.mubr.f32.gmra.mrb[0].mxu0 %v3428
    %v3501 = vpop.f32.mrb[0].mxu0
    %v3502 = vadd.f32 %v3422, %v3501
    %v3503 = vpop.f32.mrb[0].mxu0
    %3504 = vdwg.mxu0
    %v3505 = vadd.f32 %v2553, %v3497
    %v3506 = vadd.f32 %v2554, %v3502
    %v3507 = vld [vmem:[%s61] sm:$0x1]
    %v3508 = vld [vmem:[%s63] sm:$0x1]
    %v3509 = vsel %vm387, %v3505, 0.0
    %3510 = vadd.xlane.f32.xlu0 %v3509
    %v3511 = vpop.xlane.xlu0 %3510
    %v3512 = vsel %vm387, %v3506, 0.0
    %3513 = vadd.xlane.f32.xlu0 %v3512
    %v3514 = vpop.xlane.xlu0 %3513
    %v3515 = vmul.f32 %v3511, %v394
    %v3516 = vmul.f32 %v3514, %v394
    %v3517 = vsub.f32 %v3505, %v3515
    %v3518 = vsub.f32 %v3506, %v3516
    %v3519 = vmul.f32 %v3517, %v3517
    %v3520 = vmul.f32 %v3518, %v3518
    %v3521 = vsel %vm387, %v3519, 0.0
    %3522 = vadd.xlane.f32.xlu0 %v3521
    %v3523 = vpop.xlane.xlu0 %3522
    %v3524 = vsel %vm387, %v3520, 0.0
    %3525 = vadd.xlane.f32.xlu0 %v3524
    %v3526 = vpop.xlane.xlu0 %3525
    %v3527 = vmul.f32 %v3523, %v394
    %v3528 = vmul.f32 %v3526, %v394
    %v3529 = vadd.f32 %v3527, 1e-05
    %v3530 = vadd.f32 %v3528, 1e-05
    %v3531 = vrsqrt.pop %v3529
    %v3532 = vrsqrt.pop %v3530
    %v3533 = vmul.f32 %v3517, %v3531
    %v3534 = vmul.f32 %v3518, %v3532
    %v3536 = vlaneseq
    %v3537 = vshrl.u32 %v3536, 7
    %v3538 = vsub.s32 0, %v3537
    %v3539 = vrot.slane %v3507, %v3538
    %v3541 = vmul.f32 %v3533, %v3539
    %v3542 = vmul.f32 %v3534, %v3539
    %v3544 = vlaneseq
    %v3545 = vshrl.u32 %v3544, 7
    %v3546 = vsub.s32 0, %v3545
    %v3547 = vrot.slane %v3508, %v3546
    %v3549 = vadd.f32 %v3541, %v3547
    %v3550 = vadd.f32 %v3542, %v3547
    %v3551 = vld [vmem:[%s65] sm:$0xff]
    %v3552 = vld [vmem:[%s65 + $0x8] sm:$0xff]
    %v3553 = vld [vmem:[%s65 + $0x10] sm:$0xff]
    %v3554 = vld [vmem:[%s65 + $0x18] sm:$0xff]
    %v3555 = vld [vmem:[%s67] sm:$0x1]
    %v3557 = vlaneseq
    %v3558 = vshrl.u32 %v3557, 7
    %v3559 = vsub.s32 0, %v3558
    %v3560 = vrot.slane %v3555, %v3559
    %v3563 = vsel %vm387, %v3549, 0
    %v3566 = vsel %vm387, %v3550, 0
    %3568 = vmatprep.subr.mxu0 0.0
    %3569 = vmatpush1.msra.mxu0 %v3551
    %3570 = vmatprep.subr.mxu0 0.0
    %3571 = vmatpush1.msra.mxu0 %v3552
    %3572 = vmatprep.subr.mxu0 0.0
    %3573 = vmatpush1.msra.mxu0 %v3553
    %3574 = vmatprep.subr.mxu0 0.0
    %3575 = vmatpush1.msra.mxu0 %v3554
    %3576 = vmatprep.subr.mxu0 0.0
    %3577 = vmatpush1.msra.mxu0 0.0
    %3578 = vmatprep.subr.mxu0 0.0
    %3579 = vmatpush1.msra.mxu0 0.0
    %3580 = vmatprep.subr.mxu0 0.0
    %3581 = vmatpush1.msra.mxu0 0.0
    %3582 = vmatprep.subr.mxu0 0.0
    %3583 = vmatpush1.msra.mxu0 0.0
    %3584 = vmatprep.subr.mxu0 0.0
    %3585 = vmatpush1.msra.mxu0 0.0
    %3586 = vmatprep.subr.mxu0 0.0
    %3587 = vmatpush1.msra.mxu0 0.0
    %3588 = vmatprep.subr.mxu0 0.0
    %3589 = vmatpush1.msra.mxu0 0.0
    %3590 = vmatprep.subr.mxu0 0.0
    %3591 = vmatpush1.msra.mxu0 0.0
    %3592 = vmatprep.subr.mxu0 0.0
    %3593 = vmatpush1.msra.mxu0 0.0
    %3594 = vmatprep.subr.mxu0 0.0
    %3595 = vmatpush1.msra.mxu0 0.0
    %3596 = vmatprep.subr.mxu0 0.0
    %3597 = vmatpush1.msra.mxu0 0.0
    %3598 = vmatprep.subr.mxu0 0.0
    %3599 = vmatpush1.msra.mxu0 0.0
    %3600 = vmatprep.subr.mxu0 0.0
    %3601 = vmatpush1.msra.mxu0 0.0
    %3602 = vmatprep.subr.mxu0 0.0
    %3603 = vmatpush1.msra.mxu0 0.0
    %3604 = vmatprep.subr.mxu0 0.0
    %3605 = vmatpush1.msra.mxu0 0.0
    %3606 = vmatprep.subr.mxu0 0.0
    %3607 = vmatpush1.msra.mxu0 0.0
    %3608 = vmatprep.subr.mxu0 0.0
    %3609 = vmatpush1.msra.mxu0 0.0
    %3610 = vmatprep.subr.mxu0 0.0
    %3611 = vmatpush1.msra.mxu0 0.0
    %3612 = vmatprep.subr.mxu0 0.0
    %3613 = vmatpush1.msra.mxu0 0.0
    %3614 = vmatprep.subr.mxu0 0.0
    %3615 = vmatpush1.msra.mxu0 0.0
    %3616 = vmatprep.subr.mxu0 0.0
    %3617 = vmatpush1.msra.mxu0 0.0
    %3618 = vmatprep.subr.mxu0 0.0
    %3619 = vmatpush1.msra.mxu0 0.0
    %3620 = vmatprep.subr.mxu0 0.0
    %3621 = vmatpush1.msra.mxu0 0.0
    %3622 = vmatprep.subr.mxu0 0.0
    %3623 = vmatpush1.msra.mxu0 0.0
    %3624 = vmatprep.subr.mxu0 0.0
    %3625 = vmatpush1.msra.mxu0 0.0
    %3626 = vmatprep.subr.mxu0 0.0
    %3627 = vmatpush1.msra.mxu0 0.0
    %3628 = vmatprep.subr.mxu0 0.0
    %3629 = vmatpush1.msra.mxu0 0.0
    %3630 = vmatprep.subr.mxu0 0.0
    %3631 = vmatpush1.msra.mxu0 0.0
    %3632 = vmatprep.mubr.f32.mxu0 0.0
    %3633 = vmatmul.mubr.f32.gmra.mrb[0].mxu0 %v3563
    %v3634 = vpop.f32.mrb[0].mxu0
    %v3635 = vadd.f32 %v3560, %v3634
    %v3636 = vpop.f32.mrb[0].mxu0
    %3637 = vmatprep.mubr.f32.mxu0 0.0
    %3638 = vmatmul.mubr.f32.gmra.mrb[0].mxu0 %v3566
    %v3639 = vpop.f32.mrb[0].mxu0
    %v3640 = vadd.f32 %v3560, %v3639
    %v3641 = vpop.f32.mrb[0].mxu0
    %3642 = vdwg.mxu0
    %v3643 = vmul.f32 %v3635, %v3635
    %v3644 = vmul.f32 %v3640, %v3640
    %v3645 = vmul.f32 %v3635, %v3643
    %v3646 = vmul.f32 %v3640, %v3644
    %v3647 = vmul.f32 %v3645, 0.044715
    %v3648 = vmul.f32 %v3646, 0.044715
    %v3649 = vadd.f32 %v3635, %v3647
    %v3650 = vadd.f32 %v3640, %v3648
    %v3651 = vmul.f32 %v3649, 0.7978846
    %v3652 = vmul.f32 %v3650, 0.7978846
    %v3653 = vtanh.pop %v3651
    %v3654 = vtanh.pop %v3652
    %v3655 = vadd.f32 %v3653, 1.0
    %v3656 = vadd.f32 %v3654, 1.0
    %v3657 = vmul.f32 %v3655, 0.5
    %v3658 = vmul.f32 %v3656, 0.5
    %v3659 = vmul.f32 %v3635, %v3657
    %v3660 = vmul.f32 %v3640, %v3658
    %v3661 = vld [vmem:[%s69] sm:$0xff]
    %v3662 = vld [vmem:[%s69 + $0x8] sm:$0xff]
    %v3663 = vld [vmem:[%s69 + $0x10] sm:$0xff]
    %v3664 = vld [vmem:[%s69 + $0x18] sm:$0xff]
    %v3665 = vld [vmem:[%s69 + $0x20] sm:$0xff]
    %v3666 = vld [vmem:[%s69 + $0x28] sm:$0xff]
    %v3667 = vld [vmem:[%s69 + $0x30] sm:$0xff]
    %v3668 = vld [vmem:[%s69 + $0x38] sm:$0xff]
    %v3669 = vld [vmem:[%s71] sm:$0x1]
    %v3671 = vlaneseq
    %v3672 = vshrl.u32 %v3671, 7
    %v3673 = vsub.s32 0, %v3672
    %v3674 = vrot.slane %v3669, %v3673
    %v3677 = vsel %vm1465, %v3659, 0
    %v3680 = vsel %vm1465, %v3660, 0
    %3682 = vmatprep.subr.mxu0 0.0
    %3683 = vmatpush1.msra.mxu0 %v3661
    %3684 = vmatprep.subr.mxu0 0.0
    %3685 = vmatpush1.msra.mxu0 %v3662
    %3686 = vmatprep.subr.mxu0 0.0
    %3687 = vmatpush1.msra.mxu0 %v3663
    %3688 = vmatprep.subr.mxu0 0.0
    %3689 = vmatpush1.msra.mxu0 %v3664
    %3690 = vmatprep.subr.mxu0 0.0
    %3691 = vmatpush1.msra.mxu0 %v3665
    %3692 = vmatprep.subr.mxu0 0.0
    %3693 = vmatpush1.msra.mxu0 %v3666
    %3694 = vmatprep.subr.mxu0 0.0
    %3695 = vmatpush1.msra.mxu0 %v3667
    %3696 = vmatprep.subr.mxu0 0.0
    %3697 = vmatpush1.msra.mxu0 %v3668
    %3698 = vmatprep.subr.mxu0 0.0
    %3699 = vmatpush1.msra.mxu0 0.0
    %3700 = vmatprep.subr.mxu0 0.0
    %3701 = vmatpush1.msra.mxu0 0.0
    %3702 = vmatprep.subr.mxu0 0.0
    %3703 = vmatpush1.msra.mxu0 0.0
    %3704 = vmatprep.subr.mxu0 0.0
    %3705 = vmatpush1.msra.mxu0 0.0
    %3706 = vmatprep.subr.mxu0 0.0
    %3707 = vmatpush1.msra.mxu0 0.0
    %3708 = vmatprep.subr.mxu0 0.0
    %3709 = vmatpush1.msra.mxu0 0.0
    %3710 = vmatprep.subr.mxu0 0.0
    %3711 = vmatpush1.msra.mxu0 0.0
    %3712 = vmatprep.subr.mxu0 0.0
    %3713 = vmatpush1.msra.mxu0 0.0
    %3714 = vmatprep.subr.mxu0 0.0
    %3715 = vmatpush1.msra.mxu0 0.0
    %3716 = vmatprep.subr.mxu0 0.0
    %3717 = vmatpush1.msra.mxu0 0.0
    %3718 = vmatprep.subr.mxu0 0.0
    %3719 = vmatpush1.msra.mxu0 0.0
    %3720 = vmatprep.subr.mxu0 0.0
    %3721 = vmatpush1.msra.mxu0 0.0
    %3722 = vmatprep.subr.mxu0 0.0
    %3723 = vmatpush1.msra.mxu0 0.0
    %3724 = vmatprep.subr.mxu0 0.0
    %3725 = vmatpush1.msra.mxu0 0.0
    %3726 = vmatprep.subr.mxu0 0.0
    %3727 = vmatpush1.msra.mxu0 0.0
    %3728 = vmatprep.subr.mxu0 0.0
    %3729 = vmatpush1.msra.mxu0 0.0
    %3730 = vmatprep.subr.mxu0 0.0
    %3731 = vmatpush1.msra.mxu0 0.0
    %3732 = vmatprep.subr.mxu0 0.0
    %3733 = vmatpush1.msra.mxu0 0.0
    %3734 = vmatprep.subr.mxu0 0.0
    %3735 = vmatpush1.msra.mxu0 0.0
    %3736 = vmatprep.subr.mxu0 0.0
    %3737 = vmatpush1.msra.mxu0 0.0
    %3738 = vmatprep.subr.mxu0 0.0
    %3739 = vmatpush1.msra.mxu0 0.0
    %3740 = vmatprep.subr.mxu0 0.0
    %3741 = vmatpush1.msra.mxu0 0.0
    %3742 = vmatprep.subr.mxu0 0.0
    %3743 = vmatpush1.msra.mxu0 0.0
    %3744 = vmatprep.subr.mxu0 0.0
    %3745 = vmatpush1.msra.mxu0 0.0
    %3746 = vmatprep.mubr.f32.mxu0 0.0
    %3747 = vmatmul.mubr.f32.gmra.mrb[0].mxu0 %v3677
    %v3748 = vpop.f32.mrb[0].mxu0
    %v3749 = vadd.f32 %v3674, %v3748
    %v3750 = vpop.f32.mrb[0].mxu0
    %3751 = vmatprep.mubr.f32.mxu0 0.0
    %3752 = vmatmul.mubr.f32.gmra.mrb[0].mxu0 %v3680
    %v3753 = vpop.f32.mrb[0].mxu0
    %v3754 = vadd.f32 %v3674, %v3753
    %v3755 = vpop.f32.mrb[0].mxu0
    %3756 = vdwg.mxu0
    %v3757 = vadd.f32 %v3549, %v3749
    %v3758 = vadd.f32 %v3550, %v3754
    %v3759 = vld [vmem:[%s73] sm:$0x1]
    %v3760 = vld [vmem:[%s75] sm:$0x1]
    %v3761 = vsel %vm387, %v3757, 0.0
    %3762 = vadd.xlane.f32.xlu0 %v3761
    %v3763 = vpop.xlane.xlu0 %3762
    %v3764 = vsel %vm387, %v3758, 0.0
    %3765 = vadd.xlane.f32.xlu0 %v3764
    %v3766 = vpop.xlane.xlu0 %3765
    %v3767 = vmul.f32 %v3763, %v394
    %v3768 = vmul.f32 %v3766, %v394
    %v3769 = vsub.f32 %v3757, %v3767
    %v3770 = vsub.f32 %v3758, %v3768
    %v3771 = vmul.f32 %v3769, %v3769
    %v3772 = vmul.f32 %v3770, %v3770
    %v3773 = vsel %vm387, %v3771, 0.0
    %3774 = vadd.xlane.f32.xlu0 %v3773
    %v3775 = vpop.xlane.xlu0 %3774
    %v3776 = vsel %vm387, %v3772, 0.0
    %3777 = vadd.xlane.f32.xlu0 %v3776
    %v3778 = vpop.xlane.xlu0 %3777
    %v3779 = vmul.f32 %v3775, %v394
    %v3780 = vmul.f32 %v3778, %v394
    %v3781 = vadd.f32 %v3779, 1e-05
    %v3782 = vadd.f32 %v3780, 1e-05
    %v3783 = vrsqrt.pop %v3781
    %v3784 = vrsqrt.pop %v3782
    %v3785 = vmul.f32 %v3769, %v3783
    %v3786 = vmul.f32 %v3770, %v3784
    %v3788 = vlaneseq
    %v3789 = vshrl.u32 %v3788, 7
    %v3790 = vsub.s32 0, %v3789
    %v3791 = vrot.slane %v3759, %v3790
    %v3793 = vmul.f32 %v3785, %v3791
    %v3794 = vmul.f32 %v3786, %v3791
    %v3796 = vlaneseq
    %v3797 = vshrl.u32 %v3796, 7
    %v3798 = vsub.s32 0, %v3797
    %v3799 = vrot.slane %v3760, %v3798
    %v3801 = vadd.f32 %v3793, %v3799
    %v3802 = vadd.f32 %v3794, %v3799
    %3803 = vst.msk [vmem:[#allocation33] sm:$0xff] %vm387, %v3801
    %3804 = vst.msk [vmem:[#allocation33 + $0x8] sm:$0xff] %vm387, %v3802
    %v3805 = vld [vmem:[%s77] sm:$0xff]
    %v3806 = vld [vmem:[%s77 + $0x8] sm:$0xff]
    %v3807 = vld [vmem:[%s77 + $0x10] sm:$0xff]
    %v3808 = vld [vmem:[%s77 + $0x18] sm:$0xff]
    %v3809 = vld [vmem:[%s77 + $0x20] sm:$0xff]
    %v3810 = vld [vmem:[%s77 + $0x28] sm:$0xff]
    %v3811 = vld [vmem:[%s77 + $0x30] sm:$0xff]
    %v3812 = vld [vmem:[%s77 + $0x38] sm:$0xff]
    %v3813 = vld [vmem:[%s79] sm:$0x1]
    %v3815 = vlaneseq
    %v3816 = vshrl.u32 %v3815, 7
    %v3817 = vsub.s32 0, %v3816
    %v3818 = vrot.slane %v3813, %v3817
    %v3821 = vsel %vm387, %v3801, 0
    %v3824 = vsel %vm387, %v3802, 0
    %v3827 = vsel %vm387, %v3805, 0
    %v3830 = vsel %vm387, %v3806, 0
    %v3833 = vsel %vm387, %v3807, 0
    %v3836 = vsel %vm387, %v3808, 0
    %v3839 = vsel %vm387, %v3809, 0
    %v3842 = vsel %vm387, %v3810, 0
    %v3845 = vsel %vm387, %v3811, 0
    %v3848 = vsel %vm387, %v3812, 0
    %3850 = vmatprep.subr.mxu0 0.0
    %3851 = vmatpush1.xpose.msra.mxu0 %v3827
    %3852 = vmatprep.subr.mxu0 0.0
    %3853 = vmatpush1.xpose.msra.mxu0 %v3830
    %3854 = vmatprep.subr.mxu0 0.0
    %3855 = vmatpush1.xpose.msra.mxu0 %v3833
    %3856 = vmatprep.subr.mxu0 0.0
    %3857 = vmatpush1.xpose.msra.mxu0 %v3836
    %3858 = vmatprep.subr.mxu0 0.0
    %3859 = vmatpush1.xpose.msra.mxu0 %v3839
    %3860 = vmatprep.subr.mxu0 0.0
    %3861 = vmatpush1.xpose.msra.mxu0 %v3842
    %3862 = vmatprep.subr.mxu0 0.0
    %3863 = vmatpush1.xpose.msra.mxu0 %v3845
    %3864 = vmatprep.subr.mxu0 0.0
    %3865 = vmatpush1.xpose.msra.mxu0 %v3848
    %3866 = vmatprep.subr.mxu0 0.0
    %3867 = vmatpush1.xpose.msra.mxu0 0.0
    %3868 = vmatprep.subr.mxu0 0.0
    %3869 = vmatpush1.xpose.msra.mxu0 0.0
    %3870 = vmatprep.subr.mxu0 0.0
    %3871 = vmatpush1.xpose.msra.mxu0 0.0
    %3872 = vmatprep.subr.mxu0 0.0
    %3873 = vmatpush1.xpose.msra.mxu0 0.0
    %3874 = vmatprep.subr.mxu0 0.0
    %3875 = vmatpush1.xpose.msra.mxu0 0.0
    %3876 = vmatprep.subr.mxu0 0.0
    %3877 = vmatpush1.xpose.msra.mxu0 0.0
    %3878 = vmatprep.subr.mxu0 0.0
    %3879 = vmatpush1.xpose.msra.mxu0 0.0
    %3880 = vmatprep.subr.mxu0 0.0
    %3881 = vmatpush1.xpose.msra.mxu0 0.0
    %3882 = vmatprep.subr.mxu0 0.0
    %3883 = vmatpush1.xpose.msra.mxu0 0.0
    %3884 = vmatprep.subr.mxu0 0.0
    %3885 = vmatpush1.xpose.msra.mxu0 0.0
    %3886 = vmatprep.subr.mxu0 0.0
    %3887 = vmatpush1.xpose.msra.mxu0 0.0
    %3888 = vmatprep.subr.mxu0 0.0
    %3889 = vmatpush1.xpose.msra.mxu0 0.0
    %3890 = vmatprep.subr.mxu0 0.0
    %3891 = vmatpush1.xpose.msra.mxu0 0.0
    %3892 = vmatprep.subr.mxu0 0.0
    %3893 = vmatpush1.xpose.msra.mxu0 0.0
    %3894 = vmatprep.subr.mxu0 0.0
    %3895 = vmatpush1.xpose.msra.mxu0 0.0
    %3896 = vmatprep.subr.mxu0 0.0
    %3897 = vmatpush1.xpose.msra.mxu0 0.0
    %3898 = vmatprep.subr.mxu0 0.0
    %3899 = vmatpush1.xpose.msra.mxu0 0.0
    %3900 = vmatprep.subr.mxu0 0.0
    %3901 = vmatpush1.xpose.msra.mxu0 0.0
    %3902 = vmatprep.subr.mxu0 0.0
    %3903 = vmatpush1.xpose.msra.mxu0 0.0
    %3904 = vmatprep.subr.mxu0 0.0
    %3905 = vmatpush1.xpose.msra.mxu0 0.0
    %3906 = vmatprep.subr.mxu0 0.0
    %3907 = vmatpush1.xpose.msra.mxu0 0.0
    %3908 = vmatprep.subr.mxu0 0.0
    %3909 = vmatpush1.xpose.msra.mxu0 0.0
    %3910 = vmatprep.subr.mxu0 0.0
    %3911 = vmatpush1.xpose.msra.mxu0 0.0
    %3912 = vmatprep.subr.mxu0 0.0
    %3913 = vmatpush1.xpose.msra.mxu0 0.0
    %3914 = vmatprep.mubr.f32.mxu0 0.0
    %3915 = vmatmul.mubr.f32.gmra.mrb[0].mxu0 %v3821
    %v3916 = vpop.f32.mrb[0].mxu0
    %v3917 = vadd.f32 %v3818, %v3916
    %v3918 = vpop.f32.mrb[0].mxu0
    %3919 = vmatprep.mubr.f32.mxu0 0.0
    %3920 = vmatmul.mubr.f32.gmra.mrb[0].mxu0 %v3824
    %v3921 = vpop.f32.mrb[0].mxu0
    %v3922 = vadd.f32 %v3818, %v3921
    %v3923 = vpop.f32.mrb[0].mxu0
    %3924 = vdwg.mxu0
    %3925 = vst.msk [vmem:[#allocation34] sm:$0xff] %vm1465, %v3917
    %3926 = vst.msk [vmem:[#allocation34 + $0x8] sm:$0xff] %vm1465, %v3922
    // Predicated region
    $region234: #{tpu_custom_call.1} parent=1 // pred_check
      _
    $region235: #{tpu_custom_call.1} parent=1 // pred_check_branch
      %3928 = sbr.rel (0) target = $region237
    $region236: #{tpu_custom_call.1} parent=1 // pred_region
      %s3930 = ssub.s32 256, 256
      %3931 = vsyncadd [#allocation6], %s3930
      %s3932 = sshll.u32 [#allocation33], 4
      %s3933 = int_to_ptr.vmem [resolvable:$true] %s3932
      %3938 = dma.vmem_to_hbm [thread:$0]  %s3933, 256, %s81, [#allocation6], 128, 128, 8
    $region237: #{tpu_custom_call.1} parent=1 // pred_fallthru
      _
    // Predicated region
    $region238: #{tpu_custom_call.1} parent=1 // pred_check
      _
    $region239: #{tpu_custom_call.1} parent=1 // pred_check_branch
      %3940 = sbr.rel (0) target = $region241
    $region240: #{tpu_custom_call.1} parent=1 // pred_region
      %s3942 = ssub.s32 256, 256
      %3943 = vsyncadd [#allocation35], %s3942
      %s3944 = sshll.u32 [#allocation34], 4
      %s3945 = int_to_ptr.vmem [resolvable:$true] %s3944
      %3950 = dma.vmem_to_hbm [thread:$0]  %s3945, 256, %s83, [#allocation35], 128, 128, 8
    $region241: #{tpu_custom_call.1} parent=1 // pred_fallthru
      _
    // Predicated region
    $region242: #{tpu_custom_call.1} parent=1 // pred_check
      _
    $region243: #{tpu_custom_call.1} parent=1 // pred_check_branch
      %3952 = sbr.rel (0) target = $region245
    $region244: #{tpu_custom_call.1} parent=1 // pred_region
      %3953 = dma.done [#allocation6], 256
    $region245: #{tpu_custom_call.1} parent=1 // pred_fallthru
      _
    // Predicated region
    $region246: #{tpu_custom_call.1} parent=1 // pred_check
      _
    $region247: #{tpu_custom_call.1} parent=1 // pred_check_branch
      %3955 = sbr.rel (0) target = $region249
    $region248: #{tpu_custom_call.1} parent=1 // pred_region
      %3956 = dma.done [#allocation35], 256
    $region249: #{tpu_custom_call.1} parent=1 // pred_fallthru
      _
    %3957 = vsyncpa [#allocation5], 1
    %3958 = vsyncpa [#allocation8], 1
    %3959 = vsyncpa [#allocation11], 1
    %3960 = vsyncpa [#allocation14], 1
    %3961 = vsyncpa [#allocation17], 1
    %3962 = vsyncpa [#allocation20], 1
    %3963 = vsyncpa [#allocation23], 1
    %3964 = vsyncpa [#allocation26], 1
    %3965 = vsyncpa [#allocation29], 1
    %3966 = vsyncpa [#allocation32], 1
    %3967 = vsyncpa [#allocation6], 1
    %3968 = vsyncpa [#allocation35], 1

</llo_original>
